<compile_context>
chip_gen: v5e
topology: v5e:2x2
jax: 0.10.0
libtpu: 0.0.40
codegen_flags: <defaults>
</compile_context>

<pallas_src>
import functools

import jax
import jax.numpy as jnp
from jax.experimental import pallas as pl
from jax.experimental.pallas import tpu as pltpu


def _round_up(x, m):
    return ((x + m - 1) // m) * m


def _pad_last(x, target):
    pad = target - x.shape[-1]
    if pad == 0:
        return x
    return jnp.pad(x, [(0, 0)] * (x.ndim - 1) + [(0, pad)])


_GATE_ORDER = (0, 1, 3, 2)   # PyTorch [i, f, g, o] -> kernel [i, f, o, g]


# ----------------------------------------------------------------------------
# Pallas kernel: one T-chunk of the 2-layer LSTM wavefront + final Linear.
# ----------------------------------------------------------------------------
def _char_rnn_kernel(emb_ref,     # (Tc*Bp, Hp)  bf16  streamed chunk of embedded tokens (time-major)
                     w_ih0_ref,   # (Hp, 4Hp)    bf16  layer-0 input->gates  [i,f,o,g]
                     w_hh0_ref,   # (Hp, 4Hp)    bf16  layer-0 hidden->gates [i,f,o,g]
                     w1_ref,      # (2Hp, 4Hp)   bf16  layer-1 fused [W_ih1 ; W_hh1]
                     b_ref,       # (2, 1, 4Hp)  f32   combined bias (b_ih + b_hh) per layer
                     fcw_ref,     # (Hp, Vp)     bf16  final Linear weight (pre-transposed)
                     fcb_ref,     # (1, Vp)      f32   final Linear bias
                     logits_ref,  # (Tc*Bp, Vp)  f32   streamed chunk of logits
                     hn_ref,      # (2, Bp, Hp)  f32   final hidden state (VMEM-resident output)
                     cn_ref,      # (2, Bp, Hp)  f32   final cell state   (VMEM-resident output)
                     h_ref,       # scratch (2, Bp, Hp)     f32: per-layer h carry across chunks
                     c_ref,       # scratch (2, Bp, Hp)     f32: per-layer c carry across chunks
                     seq_ref,     # scratch (Tc, Bp, Hp)    f32: layer-1 outputs of this chunk
                     gx_ref):     # scratch (Tc, Bp, 4Hp)   f32: hoisted layer-0 input projection
    Tc, Bp, Hp = seq_ref.shape
    chunk = pl.program_id(0)

    @pl.when(chunk == 0)
    def _():                                    # hidden=None -> init_hidden() zeros
        h_ref[...] = jnp.zeros_like(h_ref)
        c_ref[...] = jnp.zeros_like(c_ref)

    # Hoisted layer-0 input projection + bias for this chunk: one MXU matmul
    # (bf16 operands, f32 accumulation).
    gx = jnp.dot(emb_ref[...], w_ih0_ref[...],
                 preferred_element_type=jnp.float32) + b_ref[0]
    gx_ref[...] = gx.reshape(Tc, Bp, 4 * Hp)    # tile-aligned (Bp=8, Hp%128==0)

    w_hh0 = w_hh0_ref[...]
    w1 = w1_ref[...]
    b1 = b_ref[1]

    def lstm_cell(gates, c_prev):
        # gate order [i, f, o, g]: one fused sigmoid over 3*Hp contiguous lanes.
        ifo = jax.nn.sigmoid(gates[:, :3 * Hp])
        g_g = jnp.tanh(gates[:, 3 * Hp:])
        c_new = ifo[:, Hp:2 * Hp] * c_prev + ifo[:, :Hp] * g_g
        h_new = ifo[:, 2 * Hp:3 * Hp] * jnp.tanh(c_new)
        return h_new, c_new

    h0, c0 = h_ref[0], c_ref[0]
    h1, c1 = h_ref[1], c_ref[1]

    # Two-layer wavefront over the chunk: iteration s runs layer 0 at timestep
    # s and layer 1 at timestep s-1; both only consume values produced in
    # iteration s-1, so they are independent within the iteration.
    # TODO(synk): lax.fori_loop(unroll=4-8) once chunk_t is beyond toy size.
    for s in range(Tc + 1):                     # static unroll: static Ref slices
        h0_prev, c0_prev = h0, c0
        h1_prev, c1_prev = h1, c1
        if s < Tc:                              # layer 0, chunk-local timestep s
            g0 = gx_ref[s] + jnp.dot(h0_prev.astype(w_hh0.dtype), w_hh0,
                                     preferred_element_type=jnp.float32)
            h0, c0 = lstm_cell(g0, c0_prev)
        if s >= 1:                              # layer 1, chunk-local timestep s-1
            x1 = jnp.concatenate([h0_prev, h1_prev], axis=-1).astype(w1.dtype)
            g1 = jnp.dot(x1, w1, preferred_element_type=jnp.float32) + b1
            h1, c1 = lstm_cell(g1, c1_prev)
            seq_ref[s - 1] = h1                 # layer-1 output for the final Linear

    # Carry (h, c) to the next chunk.
    h_ref[0], c_ref[0] = h0, c0
    h_ref[1], c_ref[1] = h1, c1

    # Final Linear on this chunk's layer-1 outputs (single MXU matmul,
    # lane-dense Vp output, tile-aligned reshape).
    out_flat = seq_ref[...].reshape(Tc * Bp, Hp).astype(fcw_ref.dtype)
    logits_ref[...] = jnp.dot(out_flat, fcw_ref[...],
                              preferred_element_type=jnp.float32) + fcb_ref[...]

    @pl.when(chunk == pl.num_programs(0) - 1)
    def _():
        hn_ref[0], hn_ref[1] = h0, h1
        cn_ref[0], cn_ref[1] = c0, c1


# ----------------------------------------------------------------------------
# Wrapper: layout plumbing (gather, transpose, gate reorder, padding, bf16).
# ----------------------------------------------------------------------------
@functools.partial(jax.jit, static_argnames=("chunk_t",))
def char_rnn_forward(tokens, emb_table, w_ih, w_hh, bias, fc_w, fc_b, *, chunk_t=None):
    """tokens: (B, T) int32.  Returns (logits (B*T, V), (h_n, c_n))."""
    B, T = tokens.shape
    L, four_h, H = w_ih.shape
    V = fc_w.shape[0]
    assert four_h == 4 * H
    assert emb_table.shape[1] == H, "embedding dim must equal hidden_size"
    # TODO(synk): kernel is specialized to the module default num_layers=2.
    assert L == 2, "kernel is specialized to num_layers=2"

    Hp = _round_up(H, 128)    # lane-pad hidden size
    Bp = _round_up(B, 8)      # sublane-pad batch
    Vp = _round_up(V, 128)    # lane-pad vocab (lane-dense logits store)

    if chunk_t is None:
        chunk_t = min(T, 32)
    # TODO(synk): support ragged last chunk (T % chunk_t != 0).
    assert T % chunk_t == 0, "T must be a multiple of chunk_t"
    num_chunks = T // chunk_t

    # --- weight prep: transpose, reorder gates, zero-pad, bf16 (XLA glue) ----
    def prep_gate_mat(w):                                    # (4H, H) -> (Hp, 4Hp)
        w_t = w.T                                            # (H, 4H)
        blocks = [_pad_last(w_t[:, k * H:(k + 1) * H], Hp) for k in _GATE_ORDER]
        return jnp.pad(jnp.concatenate(blocks, axis=-1), ((0, Hp - H), (0, 0)))

    w_ih0_p = prep_gate_mat(w_ih[0]).astype(jnp.bfloat16)            # (Hp, 4Hp)
    w_hh0_p = prep_gate_mat(w_hh[0]).astype(jnp.bfloat16)            # (Hp, 4Hp)
    # Layer-1 input & hidden projections fused along K: [W_ih1 ; W_hh1].
    w1_p = jnp.concatenate([prep_gate_mat(w_ih[1]),
                            prep_gate_mat(w_hh[1])],
                           axis=0).astype(jnp.bfloat16)              # (2Hp, 4Hp)

    bias_p = jnp.concatenate(
        [_pad_last(bias[:, :, k * H:(k + 1) * H], Hp) for k in _GATE_ORDER],
        axis=-1)                                                     # (L, 1, 4Hp) f32
    fcw_p = jnp.pad(fc_w.T, ((0, Hp - H), (0, Vp - V))).astype(jnp.bfloat16)  # (Hp, Vp)
    fcb_p = _pad_last(fc_b, Vp)                                      # (1, Vp) f32

    # --- activations: embedding gather + time-major + pad (XLA glue) ---------
    # TODO(synk): move the gather in-kernel via scalar-prefetched tokens.
    embedded = _pad_last(emb_table, Hp)[tokens]                      # (B, T, Hp)
    emb_tm = jnp.transpose(embedded, (1, 0, 2))                      # (T, B, Hp)
    emb_tm = jnp.pad(emb_tm, ((0, 0), (0, Bp - B), (0, 0)))          # (T, Bp, Hp)
    emb_2d = emb_tm.reshape(T * Bp, Hp).astype(jnp.bfloat16)         # (T*Bp, Hp)

    # --- cost estimate + VMEM budget ------------------------------------------
    flops = (2 * T * Bp * Hp * 4 * Hp                # layer-0 input projection
             + 2 * T * Bp * Hp * 4 * Hp              # layer-0 recurrent matmuls
             + 2 * T * Bp * 2 * Hp * 4 * Hp          # layer-1 fused matmuls
             + 2 * T * Bp * Hp * Vp)                 # final Linear
    transcendentals = 5 * Hp * Bp * T * L            # 3 sigmoid + 2 tanh per step/layer
    weight_bytes = sum(x.size * x.dtype.itemsize
                       for x in (w_ih0_p, w_hh0_p, w1_p, bias_p, fcw_p, fcb_p))
    bytes_accessed = (emb_2d.size * 2 + T * Bp * Vp * 4
                      + weight_bytes + 2 * L * Bp * Hp * 4)

    chunk_io_bytes = chunk_t * Bp * (Hp * 2 + Vp * 4)                # emb in + logits out
    scratch_bytes = (2 * L * Bp * Hp + chunk_t * Bp * (Hp + 4 * Hp)) * 4
    vmem_limit = int(min(max(2 * (2 * chunk_io_bytes + weight_bytes + scratch_bytes),
                             32 * 1024 * 1024),
                         64 * 1024 * 1024))

    vmem = pl.BlockSpec(memory_space=pltpu.MemorySpace.VMEM)         # whole array, resident

    logits_2d, h_n, c_n = pl.pallas_call(
        _char_rnn_kernel,
        out_shape=(
            jax.ShapeDtypeStruct((T * Bp, Vp), jnp.float32),
            jax.ShapeDtypeStruct((L, Bp, Hp), jnp.float32),
            jax.ShapeDtypeStruct((L, Bp, Hp), jnp.float32),
        ),
        grid=(num_chunks,),
        in_specs=[
            pl.BlockSpec((chunk_t * Bp, Hp), lambda c: (c, 0)),      # streamed emb chunk
            vmem, vmem, vmem, vmem, vmem, vmem,                      # resident weights/biases
        ],
        out_specs=(
            pl.BlockSpec((chunk_t * Bp, Vp), lambda c: (c, 0)),      # streamed logits chunk
            pl.BlockSpec((L, Bp, Hp), lambda c: (0, 0, 0)),          # hn: resident accumulator
            pl.BlockSpec((L, Bp, Hp), lambda c: (0, 0, 0)),          # cn: resident accumulator
        ),
        scratch_shapes=[
            pltpu.VMEM((L, Bp, Hp), jnp.float32),                    # h carry across chunks
            pltpu.VMEM((L, Bp, Hp), jnp.float32),                    # c carry across chunks
            pltpu.VMEM((chunk_t, Bp, Hp), jnp.float32),              # layer-1 chunk outputs
            pltpu.VMEM((chunk_t, Bp, 4 * Hp), jnp.float32),          # hoisted layer-0 gates
        ],
        compiler_params=pltpu.CompilerParams(
            dimension_semantics=("arbitrary",),                      # sequential recurrence over chunks
            vmem_limit_bytes=vmem_limit),
        cost_estimate=pl.CostEstimate(flops=int(flops),
                                      transcendentals=int(transcendentals),
                                      bytes_accessed=int(bytes_accessed)),
    )(emb_2d, w_ih0_p, w_hh0_p, w1_p, bias_p, fcw_p, fcb_p)

    # --- strip padding, back to PyTorch convention ----------------------------
    logits_tm = logits_2d.reshape(T, Bp, Vp)[:, :B, :V]              # (T, B, V)
    logits = jnp.transpose(logits_tm, (1, 0, 2)).reshape(B * T, V)   # row order b*T + t
    return logits, (h_n[:, :B, :H], c_n[:, :B, :H])


# ----------------------------------------------------------------------------
# Pure-JAX reference (PyTorch semantics, f32, unpadded) for the correctness check.
# ----------------------------------------------------------------------------
def _reference(tokens, emb_table, w_ih, w_hh, bias, fc_w, fc_b):
    B, T = tokens.shape
    L, _, H = w_ih.shape
    x_seq = emb_table[tokens]                        # (B, T, H)
    h_n, c_n = [], []
    for layer in range(L):
        h = jnp.zeros((B, H), jnp.float32)
        c = jnp.zeros((B, H), jnp.float32)
        outs = []
        for t in range(T):
            x = x_seq[:, t, :]
            g = x @ w_ih[layer].T + h @ w_hh[layer].T + bias[layer]
            i_g = jax.nn.sigmoid(g[:, 0 * H:1 * H])
            f_g = jax.nn.sigmoid(g[:, 1 * H:2 * H])
            g_g = jnp.tanh(g[:, 2 * H:3 * H])
            o_g = jax.nn.sigmoid(g[:, 3 * H:4 * H])
            c = f_g * c + i_g * g_g
            h = o_g * jnp.tanh(c)
            outs.append(h)
        x_seq = jnp.stack(outs, axis=1)              # (B, T, H)
        h_n.append(h)
        c_n.append(c)
    logits = x_seq.reshape(B * T, H) @ fc_w.T + fc_b[0]
    return logits, (jnp.stack(h_n), jnp.stack(c_n))


if __name__ == "__main__":
    # Small shapes consistent with CharRNN(input_size=vocab, hidden_size=32, num_layers=2)
    VOCAB = 16      # input_size
    HIDDEN = 32     # hidden_size
    LAYERS = 2      # num_layers
    BATCH = 2
    SEQ = 8

    key = jax.random.PRNGKey(0)
    k_emb, k_wih, k_whh, k_b, k_fcw, k_fcb, k_tok = jax.random.split(key, 7)

    stdv = 1.0 / jnp.sqrt(HIDDEN)
    emb_table = jax.random.normal(k_emb, (VOCAB, HIDDEN), jnp.float32)            # nn.Embedding ~ N(0,1)
    # Stacked LSTM with equal sizes: weight_ih_l{k} is (4H, H) for every layer.
    w_ih = jax.random.uniform(k_wih, (LAYERS, 4 * HIDDEN, HIDDEN), jnp.float32, -stdv, stdv)
    w_hh = jax.random.uniform(k_whh, (LAYERS, 4 * HIDDEN, HIDDEN), jnp.float32, -stdv, stdv)
    # combined bias = b_ih + b_hh, kept 2D per layer for clean VMEM layout
    bias = jax.random.uniform(k_b, (LAYERS, 1, 4 * HIDDEN), jnp.float32, -2 * stdv, 2 * stdv)
    fc_w = jax.random.uniform(k_fcw, (VOCAB, HIDDEN), jnp.float32, -stdv, stdv)    # nn.Linear(H, V)
    fc_b = jax.random.uniform(k_fcb, (1, VOCAB), jnp.float32, -stdv, stdv)

    tokens = jax.random.randint(k_tok, (BATCH, SEQ), 0, VOCAB, jnp.int32)

    # chunk_t=4 -> 2 grid steps: exercises the streamed emb/logits BlockSpecs
    # and the cross-chunk (h, c) carry in scratch.
    logits, (h_n, c_n) = char_rnn_forward(tokens, emb_table, w_ih, w_hh, bias,
                                          fc_w, fc_b, chunk_t=4)
    jax.block_until_ready((logits, h_n, c_n))

    # Sanity check against pure-JAX f32 reference of the same math.  Matmul
    # operands are bf16 in the kernel (f32 accumulation / gate math), so the
    # tolerance is loosened accordingly.
    ref_logits, (ref_h, ref_c) = _reference(tokens, emb_table, w_ih, w_hh, bias, fc_w, fc_b)
    assert logits.shape == (BATCH * SEQ, VOCAB)
    assert h_n.shape == (LAYERS, BATCH, HIDDEN) and c_n.shape == (LAYERS, BATCH, HIDDEN)
    assert jnp.allclose(logits, ref_logits, atol=5e-2, rtol=5e-2)
    assert jnp.allclose(h_n, ref_h, atol=5e-2, rtol=5e-2)
    assert jnp.allclose(c_n, ref_c, atol=5e-2, rtol=5e-2)

    print("KERNEL_OK")
</pallas_src>

<mosaic_0001>
module attributes {stable_mosaic.version = 11 : i64} {
  func.func @_char_rnn_kernel(%arg0: i32, %arg1: memref<32x128xbf16, #tpu.memory_space<vmem>>, %arg2: memref<128x512xbf16, #tpu.memory_space<vmem>>, %arg3: memref<128x512xbf16, #tpu.memory_space<vmem>>, %arg4: memref<256x512xbf16, #tpu.memory_space<vmem>>, %arg5: memref<2x1x512xf32, #tpu.memory_space<vmem>>, %arg6: memref<128x128xbf16, #tpu.memory_space<vmem>>, %arg7: memref<1x128xf32, #tpu.memory_space<vmem>>, %arg8: memref<32x128xf32, #tpu.memory_space<vmem>>, %arg9: memref<2x8x128xf32, #tpu.memory_space<vmem>>, %arg10: memref<2x8x128xf32, #tpu.memory_space<vmem>>, %arg11: memref<2x8x128xf32, #tpu.memory_space<vmem>>, %arg12: memref<2x8x128xf32, #tpu.memory_space<vmem>>, %arg13: memref<4x8x128xf32, #tpu.memory_space<vmem>>, %arg14: memref<4x8x512xf32, #tpu.memory_space<vmem>>) attributes {dimension_semantics = [#tpu.dimension_semantics<arbitrary>], iteration_bounds = array<i64: 2>, scalar_prefetch = 0 : i64, scratch_operands = 4 : i64, tpu.core_type = #tpu.core_type<tc>, window_params = [{transform_indices = @transform_0, window_bounds = array<i64: 32, 128>}, {pipeline_mode = #tpu.pipeline_mode<synchronous>, transform_indices = @transform_1, window_bounds = array<i64: 128, 512>}, {pipeline_mode = #tpu.pipeline_mode<synchronous>, transform_indices = @transform_2, window_bounds = array<i64: 128, 512>}, {pipeline_mode = #tpu.pipeline_mode<synchronous>, transform_indices = @transform_3, window_bounds = array<i64: 256, 512>}, {pipeline_mode = #tpu.pipeline_mode<synchronous>, transform_indices = @transform_4, window_bounds = array<i64: 2, 1, 512>}, {pipeline_mode = #tpu.pipeline_mode<synchronous>, transform_indices = @transform_5, window_bounds = array<i64: 128, 128>}, {pipeline_mode = #tpu.pipeline_mode<synchronous>, transform_indices = @transform_6, window_bounds = array<i64: 1, 128>}, {transform_indices = @transform_7, window_bounds = array<i64: 32, 128>}, {pipeline_mode = #tpu.pipeline_mode<synchronous>, transform_indices = @transform_8, window_bounds = array<i64: 2, 8, 128>}, {pipeline_mode = #tpu.pipeline_mode<synchronous>, transform_indices = @transform_9, window_bounds = array<i64: 2, 8, 128>}]} {
    %c0_i32 = arith.constant 0 : i32
    %0 = arith.cmpi eq, %arg0, %c0_i32 : i32
    %1 = arith.extui %0 : i1 to i32
    %c0_i32_0 = arith.constant 0 : i32
    %2 = arith.cmpi ne, %1, %c0_i32_0 : i32
    scf.if %2 {
      %cst_89 = arith.constant 0.000000e+00 : f32
      %228 = vector.broadcast %cst_89 : f32 to vector<2x8x128xf32>
      %c0_90 = arith.constant 0 : index
      %c0_91 = arith.constant 0 : index
      %c0_92 = arith.constant 0 : index
      %229 = vector.load %arg11[%c0_90, %c0_91, %c0_92] : memref<2x8x128xf32, #tpu.memory_space<vmem>>, vector<2x8x128xf32>
      tpu.vector_store %arg11[%c0_90, %c0_91, %c0_92], %228 {strides = array<i32>} : memref<2x8x128xf32, #tpu.memory_space<vmem>>, vector<2x8x128xf32>,
      %cst_93 = arith.constant 0.000000e+00 : f32
      %230 = vector.broadcast %cst_93 : f32 to vector<2x8x128xf32>
      %c0_94 = arith.constant 0 : index
      %c0_95 = arith.constant 0 : index
      %c0_96 = arith.constant 0 : index
      %231 = vector.load %arg12[%c0_94, %c0_95, %c0_96] : memref<2x8x128xf32, #tpu.memory_space<vmem>>, vector<2x8x128xf32>
      tpu.vector_store %arg12[%c0_94, %c0_95, %c0_96], %230 {strides = array<i32>} : memref<2x8x128xf32, #tpu.memory_space<vmem>>, vector<2x8x128xf32>,
    } else {
    }
    %c0 = arith.constant 0 : index
    %c0_1 = arith.constant 0 : index
    %3 = vector.load %arg1[%c0, %c0_1] : memref<32x128xbf16, #tpu.memory_space<vmem>>, vector<32x128xbf16>
    %c0_2 = arith.constant 0 : index
    %c0_3 = arith.constant 0 : index
    %4 = vector.load %arg2[%c0_2, %c0_3] : memref<128x512xbf16, #tpu.memory_space<vmem>>, vector<128x512xbf16>
    %cst = arith.constant dense<0.000000e+00> : vector<32x512xf32>
    %5 = tpu.matmul %3, %4, %cst {dimension_numbers = #tpu.dot_dimension_numbers<[1], [0], [0], [1], [0, 0, 1, 1], [], []>} : vector<32x128xbf16>, vector<128x512xbf16>, vector<32x512xf32> -> vector<32x512xf32>
    %c0_4 = arith.constant 0 : index
    %c0_5 = arith.constant 0 : index
    %c0_6 = arith.constant 0 : index
    %6 = vector.load %arg5[%c0_4, %c0_5, %c0_6] : memref<2x1x512xf32, #tpu.memory_space<vmem>>, vector<1x1x512xf32>
    %7 = vector.shape_cast %6 : vector<1x1x512xf32> to vector<1x512xf32>
    %8 = vector.broadcast %7 : vector<1x512xf32> to vector<32x512xf32>
    %9 = arith.addf %5, %8 : vector<32x512xf32>
    %10 = vector.shape_cast %9 : vector<32x512xf32> to vector<4x8x512xf32>
    %c0_7 = arith.constant 0 : index
    %c0_8 = arith.constant 0 : index
    %c0_9 = arith.constant 0 : index
    %11 = vector.load %arg14[%c0_7, %c0_8, %c0_9] : memref<4x8x512xf32, #tpu.memory_space<vmem>>, vector<4x8x512xf32>
    tpu.vector_store %arg14[%c0_7, %c0_8, %c0_9], %10 {strides = array<i32>} : memref<4x8x512xf32, #tpu.memory_space<vmem>>, vector<4x8x512xf32>,
    %c0_10 = arith.constant 0 : index
    %c0_11 = arith.constant 0 : index
    %12 = vector.load %arg3[%c0_10, %c0_11] : memref<128x512xbf16, #tpu.memory_space<vmem>>, vector<128x512xbf16>
    %c0_12 = arith.constant 0 : index
    %c0_13 = arith.constant 0 : index
    %13 = vector.load %arg4[%c0_12, %c0_13] : memref<256x512xbf16, #tpu.memory_space<vmem>>, vector<256x512xbf16>
    %c1 = arith.constant 1 : index
    %c0_14 = arith.constant 0 : index
    %c0_15 = arith.constant 0 : index
    %14 = vector.load %arg5[%c1, %c0_14, %c0_15] : memref<2x1x512xf32, #tpu.memory_space<vmem>>, vector<1x1x512xf32>
    %15 = vector.shape_cast %14 : vector<1x1x512xf32> to vector<1x512xf32>
    %c0_16 = arith.constant 0 : index
    %c0_17 = arith.constant 0 : index
    %c0_18 = arith.constant 0 : index
    %16 = vector.load %arg11[%c0_16, %c0_17, %c0_18] : memref<2x8x128xf32, #tpu.memory_space<vmem>>, vector<1x8x128xf32>
    %17 = vector.shape_cast %16 : vector<1x8x128xf32> to vector<8x128xf32>
    %c0_19 = arith.constant 0 : index
    %c0_20 = arith.constant 0 : index
    %c0_21 = arith.constant 0 : index
    %18 = vector.load %arg12[%c0_19, %c0_20, %c0_21] : memref<2x8x128xf32, #tpu.memory_space<vmem>>, vector<1x8x128xf32>
    %19 = vector.shape_cast %18 : vector<1x8x128xf32> to vector<8x128xf32>
    %c1_22 = arith.constant 1 : index
    %c0_23 = arith.constant 0 : index
    %c0_24 = arith.constant 0 : index
    %20 = vector.load %arg11[%c1_22, %c0_23, %c0_24] : memref<2x8x128xf32, #tpu.memory_space<vmem>>, vector<1x8x128xf32>
    %21 = vector.shape_cast %20 : vector<1x8x128xf32> to vector<8x128xf32>
    %c1_25 = arith.constant 1 : index
    %c0_26 = arith.constant 0 : index
    %c0_27 = arith.constant 0 : index
    %22 = vector.load %arg12[%c1_25, %c0_26, %c0_27] : memref<2x8x128xf32, #tpu.memory_space<vmem>>, vector<1x8x128xf32>
    %23 = vector.shape_cast %22 : vector<1x8x128xf32> to vector<8x128xf32>
    %c0_28 = arith.constant 0 : index
    %c0_29 = arith.constant 0 : index
    %c0_30 = arith.constant 0 : index
    %24 = vector.load %arg14[%c0_28, %c0_29, %c0_30] : memref<4x8x512xf32, #tpu.memory_space<vmem>>, vector<1x8x512xf32>
    %25 = vector.shape_cast %24 : vector<1x8x512xf32> to vector<8x512xf32>
    %26 = arith.truncf %17 : vector<8x128xf32> to vector<8x128xbf16>
    %cst_31 = arith.constant dense<0.000000e+00> : vector<8x512xf32>
    %27 = tpu.matmul %26, %12, %cst_31 {dimension_numbers = #tpu.dot_dimension_numbers<[1], [0], [0], [1], [0, 0, 1, 1], [], []>} : vector<8x128xbf16>, vector<128x512xbf16>, vector<8x512xf32> -> vector<8x512xf32>
    %28 = arith.addf %25, %27 : vector<8x512xf32>
    %29 = vector.extract_strided_slice %28 {offsets = [0, 0], sizes = [8, 384], strides = [1, 1]} : vector<8x512xf32> to vector<8x384xf32>
    %30 = arith.negf %29 : vector<8x384xf32>
    %31 = math.exp %30 : vector<8x384xf32>
    %cst_32 = arith.constant 1.000000e+00 : f32
    %32 = vector.broadcast %cst_32 : f32 to vector<8x384xf32>
    %33 = arith.addf %32, %31 : vector<8x384xf32>
    %34 = arith.divf %32, %33 : vector<8x384xf32>
    %35 = vector.extract_strided_slice %28 {offsets = [0, 384], sizes = [8, 128], strides = [1, 1]} : vector<8x512xf32> to vector<8x128xf32>
    %36 = math.tanh %35 : vector<8x128xf32>
    %37 = vector.extract_strided_slice %34 {offsets = [0, 128], sizes = [8, 128], strides = [1, 1]} : vector<8x384xf32> to vector<8x128xf32>
    %38 = arith.mulf %37, %19 : vector<8x128xf32>
    %39 = vector.extract_strided_slice %34 {offsets = [0, 0], sizes = [8, 128], strides = [1, 1]} : vector<8x384xf32> to vector<8x128xf32>
    %40 = arith.mulf %39, %36 : vector<8x128xf32>
    %41 = arith.addf %38, %40 : vector<8x128xf32>
    %42 = vector.extract_strided_slice %34 {offsets = [0, 256], sizes = [8, 128], strides = [1, 1]} : vector<8x384xf32> to vector<8x128xf32>
    %43 = math.tanh %41 : vector<8x128xf32>
    %44 = arith.mulf %42, %43 : vector<8x128xf32>
    %c1_33 = arith.constant 1 : index
    %c0_34 = arith.constant 0 : index
    %c0_35 = arith.constant 0 : index
    %45 = vector.load %arg14[%c1_33, %c0_34, %c0_35] : memref<4x8x512xf32, #tpu.memory_space<vmem>>, vector<1x8x512xf32>
    %46 = vector.shape_cast %45 : vector<1x8x512xf32> to vector<8x512xf32>
    %47 = arith.truncf %44 : vector<8x128xf32> to vector<8x128xbf16>
    %cst_36 = arith.constant dense<0.000000e+00> : vector<8x512xf32>
    %48 = tpu.matmul %47, %12, %cst_36 {dimension_numbers = #tpu.dot_dimension_numbers<[1], [0], [0], [1], [0, 0, 1, 1], [], []>} : vector<8x128xbf16>, vector<128x512xbf16>, vector<8x512xf32> -> vector<8x512xf32>
    %49 = arith.addf %46, %48 : vector<8x512xf32>
    %50 = vector.extract_strided_slice %49 {offsets = [0, 0], sizes = [8, 384], strides = [1, 1]} : vector<8x512xf32> to vector<8x384xf32>
    %51 = arith.negf %50 : vector<8x384xf32>
    %52 = math.exp %51 : vector<8x384xf32>
    %cst_37 = arith.constant 1.000000e+00 : f32
    %53 = vector.broadcast %cst_37 : f32 to vector<8x384xf32>
    %54 = arith.addf %53, %52 : vector<8x384xf32>
    %55 = arith.divf %53, %54 : vector<8x384xf32>
    %56 = vector.extract_strided_slice %49 {offsets = [0, 384], sizes = [8, 128], strides = [1, 1]} : vector<8x512xf32> to vector<8x128xf32>
    %57 = math.tanh %56 : vector<8x128xf32>
    %58 = vector.extract_strided_slice %55 {offsets = [0, 128], sizes = [8, 128], strides = [1, 1]} : vector<8x384xf32> to vector<8x128xf32>
    %59 = arith.mulf %58, %41 : vector<8x128xf32>
    %60 = vector.extract_strided_slice %55 {offsets = [0, 0], sizes = [8, 128], strides = [1, 1]} : vector<8x384xf32> to vector<8x128xf32>
    %61 = arith.mulf %60, %57 : vector<8x128xf32>
    %62 = arith.addf %59, %61 : vector<8x128xf32>
    %63 = vector.extract_strided_slice %55 {offsets = [0, 256], sizes = [8, 128], strides = [1, 1]} : vector<8x384xf32> to vector<8x128xf32>
    %64 = math.tanh %62 : vector<8x128xf32>
    %65 = arith.mulf %63, %64 : vector<8x128xf32>
    %66 = tpu.concatenate %44, %21 in 1 : vector<8x128xf32>, vector<8x128xf32> -> vector<8x256xf32>
    %67 = arith.truncf %66 : vector<8x256xf32> to vector<8x256xbf16>
    %cst_38 = arith.constant dense<0.000000e+00> : vector<8x512xf32>
    %68 = tpu.matmul %67, %13, %cst_38 {dimension_numbers = #tpu.dot_dimension_numbers<[1], [0], [0], [1], [0, 0, 1, 1], [], []>} : vector<8x256xbf16>, vector<256x512xbf16>, vector<8x512xf32> -> vector<8x512xf32>
    %69 = vector.broadcast %15 : vector<1x512xf32> to vector<8x512xf32>
    %70 = arith.addf %68, %69 : vector<8x512xf32>
    %71 = vector.extract_strided_slice %70 {offsets = [0, 0], sizes = [8, 384], strides = [1, 1]} : vector<8x512xf32> to vector<8x384xf32>
    %72 = arith.negf %71 : vector<8x384xf32>
    %73 = math.exp %72 : vector<8x384xf32>
    %cst_39 = arith.constant 1.000000e+00 : f32
    %74 = vector.broadcast %cst_39 : f32 to vector<8x384xf32>
    %75 = arith.addf %74, %73 : vector<8x384xf32>
    %76 = arith.divf %74, %75 : vector<8x384xf32>
    %77 = vector.extract_strided_slice %70 {offsets = [0, 384], sizes = [8, 128], strides = [1, 1]} : vector<8x512xf32> to vector<8x128xf32>
    %78 = math.tanh %77 : vector<8x128xf32>
    %79 = vector.extract_strided_slice %76 {offsets = [0, 128], sizes = [8, 128], strides = [1, 1]} : vector<8x384xf32> to vector<8x128xf32>
    %80 = arith.mulf %79, %23 : vector<8x128xf32>
    %81 = vector.extract_strided_slice %76 {offsets = [0, 0], sizes = [8, 128], strides = [1, 1]} : vector<8x384xf32> to vector<8x128xf32>
    %82 = arith.mulf %81, %78 : vector<8x128xf32>
    %83 = arith.addf %80, %82 : vector<8x128xf32>
    %84 = vector.extract_strided_slice %76 {offsets = [0, 256], sizes = [8, 128], strides = [1, 1]} : vector<8x384xf32> to vector<8x128xf32>
    %85 = math.tanh %83 : vector<8x128xf32>
    %86 = arith.mulf %84, %85 : vector<8x128xf32>
    %c0_40 = arith.constant 0 : index
    %c0_41 = arith.constant 0 : index
    %c0_42 = arith.constant 0 : index
    %87 = vector.load %arg13[%c0_40, %c0_41, %c0_42] : memref<4x8x128xf32, #tpu.memory_space<vmem>>, vector<1x8x128xf32>
    %88 = vector.shape_cast %87 : vector<1x8x128xf32> to vector<8x128xf32>
    %89 = vector.shape_cast %86 : vector<8x128xf32> to vector<1x8x128xf32>
    tpu.vector_store %arg13[%c0_40, %c0_41, %c0_42], %89 {strides = array<i32>} : memref<4x8x128xf32, #tpu.memory_space<vmem>>, vector<1x8x128xf32>,
    %c2 = arith.constant 2 : index
    %c0_43 = arith.constant 0 : index
    %c0_44 = arith.constant 0 : index
    %90 = vector.load %arg14[%c2, %c0_43, %c0_44] : memref<4x8x512xf32, #tpu.memory_space<vmem>>, vector<1x8x512xf32>
    %91 = vector.shape_cast %90 : vector<1x8x512xf32> to vector<8x512xf32>
    %92 = arith.truncf %65 : vector<8x128xf32> to vector<8x128xbf16>
    %cst_45 = arith.constant dense<0.000000e+00> : vector<8x512xf32>
    %93 = tpu.matmul %92, %12, %cst_45 {dimension_numbers = #tpu.dot_dimension_numbers<[1], [0], [0], [1], [0, 0, 1, 1], [], []>} : vector<8x128xbf16>, vector<128x512xbf16>, vector<8x512xf32> -> vector<8x512xf32>
    %94 = arith.addf %91, %93 : vector<8x512xf32>
    %95 = vector.extract_strided_slice %94 {offsets = [0, 0], sizes = [8, 384], strides = [1, 1]} : vector<8x512xf32> to vector<8x384xf32>
    %96 = arith.negf %95 : vector<8x384xf32>
    %97 = math.exp %96 : vector<8x384xf32>
    %cst_46 = arith.constant 1.000000e+00 : f32
    %98 = vector.broadcast %cst_46 : f32 to vector<8x384xf32>
    %99 = arith.addf %98, %97 : vector<8x384xf32>
    %100 = arith.divf %98, %99 : vector<8x384xf32>
    %101 = vector.extract_strided_slice %94 {offsets = [0, 384], sizes = [8, 128], strides = [1, 1]} : vector<8x512xf32> to vector<8x128xf32>
    %102 = math.tanh %101 : vector<8x128xf32>
    %103 = vector.extract_strided_slice %100 {offsets = [0, 128], sizes = [8, 128], strides = [1, 1]} : vector<8x384xf32> to vector<8x128xf32>
    %104 = arith.mulf %103, %62 : vector<8x128xf32>
    %105 = vector.extract_strided_slice %100 {offsets = [0, 0], sizes = [8, 128], strides = [1, 1]} : vector<8x384xf32> to vector<8x128xf32>
    %106 = arith.mulf %105, %102 : vector<8x128xf32>
    %107 = arith.addf %104, %106 : vector<8x128xf32>
    %108 = vector.extract_strided_slice %100 {offsets = [0, 256], sizes = [8, 128], strides = [1, 1]} : vector<8x384xf32> to vector<8x128xf32>
    %109 = math.tanh %107 : vector<8x128xf32>
    %110 = arith.mulf %108, %109 : vector<8x128xf32>
    %111 = tpu.concatenate %65, %86 in 1 : vector<8x128xf32>, vector<8x128xf32> -> vector<8x256xf32>
    %112 = arith.truncf %111 : vector<8x256xf32> to vector<8x256xbf16>
    %cst_47 = arith.constant dense<0.000000e+00> : vector<8x512xf32>
    %113 = tpu.matmul %112, %13, %cst_47 {dimension_numbers = #tpu.dot_dimension_numbers<[1], [0], [0], [1], [0, 0, 1, 1], [], []>} : vector<8x256xbf16>, vector<256x512xbf16>, vector<8x512xf32> -> vector<8x512xf32>
    %114 = vector.broadcast %15 : vector<1x512xf32> to vector<8x512xf32>
    %115 = arith.addf %113, %114 : vector<8x512xf32>
    %116 = vector.extract_strided_slice %115 {offsets = [0, 0], sizes = [8, 384], strides = [1, 1]} : vector<8x512xf32> to vector<8x384xf32>
    %117 = arith.negf %116 : vector<8x384xf32>
    %118 = math.exp %117 : vector<8x384xf32>
    %cst_48 = arith.constant 1.000000e+00 : f32
    %119 = vector.broadcast %cst_48 : f32 to vector<8x384xf32>
    %120 = arith.addf %119, %118 : vector<8x384xf32>
    %121 = arith.divf %119, %120 : vector<8x384xf32>
    %122 = vector.extract_strided_slice %115 {offsets = [0, 384], sizes = [8, 128], strides = [1, 1]} : vector<8x512xf32> to vector<8x128xf32>
    %123 = math.tanh %122 : vector<8x128xf32>
    %124 = vector.extract_strided_slice %121 {offsets = [0, 128], sizes = [8, 128], strides = [1, 1]} : vector<8x384xf32> to vector<8x128xf32>
    %125 = arith.mulf %124, %83 : vector<8x128xf32>
    %126 = vector.extract_strided_slice %121 {offsets = [0, 0], sizes = [8, 128], strides = [1, 1]} : vector<8x384xf32> to vector<8x128xf32>
    %127 = arith.mulf %126, %123 : vector<8x128xf32>
    %128 = arith.addf %125, %127 : vector<8x128xf32>
    %129 = vector.extract_strided_slice %121 {offsets = [0, 256], sizes = [8, 128], strides = [1, 1]} : vector<8x384xf32> to vector<8x128xf32>
    %130 = math.tanh %128 : vector<8x128xf32>
    %131 = arith.mulf %129, %130 : vector<8x128xf32>
    %c1_49 = arith.constant 1 : index
    %c0_50 = arith.constant 0 : index
    %c0_51 = arith.constant 0 : index
    %132 = vector.load %arg13[%c1_49, %c0_50, %c0_51] : memref<4x8x128xf32, #tpu.memory_space<vmem>>, vector<1x8x128xf32>
    %133 = vector.shape_cast %132 : vector<1x8x128xf32> to vector<8x128xf32>
    %134 = vector.shape_cast %131 : vector<8x128xf32> to vector<1x8x128xf32>
    tpu.vector_store %arg13[%c1_49, %c0_50, %c0_51], %134 {strides = array<i32>} : memref<4x8x128xf32, #tpu.memory_space<vmem>>, vector<1x8x128xf32>,
    %c3 = arith.constant 3 : index
    %c0_52 = arith.constant 0 : index
    %c0_53 = arith.constant 0 : index
    %135 = vector.load %arg14[%c3, %c0_52, %c0_53] : memref<4x8x512xf32, #tpu.memory_space<vmem>>, vector<1x8x512xf32>
    %136 = vector.shape_cast %135 : vector<1x8x512xf32> to vector<8x512xf32>
    %137 = arith.truncf %110 : vector<8x128xf32> to vector<8x128xbf16>
    %cst_54 = arith.constant dense<0.000000e+00> : vector<8x512xf32>
    %138 = tpu.matmul %137, %12, %cst_54 {dimension_numbers = #tpu.dot_dimension_numbers<[1], [0], [0], [1], [0, 0, 1, 1], [], []>} : vector<8x128xbf16>, vector<128x512xbf16>, vector<8x512xf32> -> vector<8x512xf32>
    %139 = arith.addf %136, %138 : vector<8x512xf32>
    %140 = vector.extract_strided_slice %139 {offsets = [0, 0], sizes = [8, 384], strides = [1, 1]} : vector<8x512xf32> to vector<8x384xf32>
    %141 = arith.negf %140 : vector<8x384xf32>
    %142 = math.exp %141 : vector<8x384xf32>
    %cst_55 = arith.constant 1.000000e+00 : f32
    %143 = vector.broadcast %cst_55 : f32 to vector<8x384xf32>
    %144 = arith.addf %143, %142 : vector<8x384xf32>
    %145 = arith.divf %143, %144 : vector<8x384xf32>
    %146 = vector.extract_strided_slice %139 {offsets = [0, 384], sizes = [8, 128], strides = [1, 1]} : vector<8x512xf32> to vector<8x128xf32>
    %147 = math.tanh %146 : vector<8x128xf32>
    %148 = vector.extract_strided_slice %145 {offsets = [0, 128], sizes = [8, 128], strides = [1, 1]} : vector<8x384xf32> to vector<8x128xf32>
    %149 = arith.mulf %148, %107 : vector<8x128xf32>
    %150 = vector.extract_strided_slice %145 {offsets = [0, 0], sizes = [8, 128], strides = [1, 1]} : vector<8x384xf32> to vector<8x128xf32>
    %151 = arith.mulf %150, %147 : vector<8x128xf32>
    %152 = arith.addf %149, %151 : vector<8x128xf32>
    %153 = vector.extract_strided_slice %145 {offsets = [0, 256], sizes = [8, 128], strides = [1, 1]} : vector<8x384xf32> to vector<8x128xf32>
    %154 = math.tanh %152 : vector<8x128xf32>
    %155 = arith.mulf %153, %154 : vector<8x128xf32>
    %156 = tpu.concatenate %110, %131 in 1 : vector<8x128xf32>, vector<8x128xf32> -> vector<8x256xf32>
    %157 = arith.truncf %156 : vector<8x256xf32> to vector<8x256xbf16>
    %cst_56 = arith.constant dense<0.000000e+00> : vector<8x512xf32>
    %158 = tpu.matmul %157, %13, %cst_56 {dimension_numbers = #tpu.dot_dimension_numbers<[1], [0], [0], [1], [0, 0, 1, 1], [], []>} : vector<8x256xbf16>, vector<256x512xbf16>, vector<8x512xf32> -> vector<8x512xf32>
    %159 = vector.broadcast %15 : vector<1x512xf32> to vector<8x512xf32>
    %160 = arith.addf %158, %159 : vector<8x512xf32>
    %161 = vector.extract_strided_slice %160 {offsets = [0, 0], sizes = [8, 384], strides = [1, 1]} : vector<8x512xf32> to vector<8x384xf32>
    %162 = arith.negf %161 : vector<8x384xf32>
    %163 = math.exp %162 : vector<8x384xf32>
    %cst_57 = arith.constant 1.000000e+00 : f32
    %164 = vector.broadcast %cst_57 : f32 to vector<8x384xf32>
    %165 = arith.addf %164, %163 : vector<8x384xf32>
    %166 = arith.divf %164, %165 : vector<8x384xf32>
    %167 = vector.extract_strided_slice %160 {offsets = [0, 384], sizes = [8, 128], strides = [1, 1]} : vector<8x512xf32> to vector<8x128xf32>
    %168 = math.tanh %167 : vector<8x128xf32>
    %169 = vector.extract_strided_slice %166 {offsets = [0, 128], sizes = [8, 128], strides = [1, 1]} : vector<8x384xf32> to vector<8x128xf32>
    %170 = arith.mulf %169, %128 : vector<8x128xf32>
    %171 = vector.extract_strided_slice %166 {offsets = [0, 0], sizes = [8, 128], strides = [1, 1]} : vector<8x384xf32> to vector<8x128xf32>
    %172 = arith.mulf %171, %168 : vector<8x128xf32>
    %173 = arith.addf %170, %172 : vector<8x128xf32>
    %174 = vector.extract_strided_slice %166 {offsets = [0, 256], sizes = [8, 128], strides = [1, 1]} : vector<8x384xf32> to vector<8x128xf32>
    %175 = math.tanh %173 : vector<8x128xf32>
    %176 = arith.mulf %174, %175 : vector<8x128xf32>
    %c2_58 = arith.constant 2 : index
    %c0_59 = arith.constant 0 : index
    %c0_60 = arith.constant 0 : index
    %177 = vector.load %arg13[%c2_58, %c0_59, %c0_60] : memref<4x8x128xf32, #tpu.memory_space<vmem>>, vector<1x8x128xf32>
    %178 = vector.shape_cast %177 : vector<1x8x128xf32> to vector<8x128xf32>
    %179 = vector.shape_cast %176 : vector<8x128xf32> to vector<1x8x128xf32>
    tpu.vector_store %arg13[%c2_58, %c0_59, %c0_60], %179 {strides = array<i32>} : memref<4x8x128xf32, #tpu.memory_space<vmem>>, vector<1x8x128xf32>,
    %180 = tpu.concatenate %155, %176 in 1 : vector<8x128xf32>, vector<8x128xf32> -> vector<8x256xf32>
    %181 = arith.truncf %180 : vector<8x256xf32> to vector<8x256xbf16>
    %cst_61 = arith.constant dense<0.000000e+00> : vector<8x512xf32>
    %182 = tpu.matmul %181, %13, %cst_61 {dimension_numbers = #tpu.dot_dimension_numbers<[1], [0], [0], [1], [0, 0, 1, 1], [], []>} : vector<8x256xbf16>, vector<256x512xbf16>, vector<8x512xf32> -> vector<8x512xf32>
    %183 = vector.broadcast %15 : vector<1x512xf32> to vector<8x512xf32>
    %184 = arith.addf %182, %183 : vector<8x512xf32>
    %185 = vector.extract_strided_slice %184 {offsets = [0, 0], sizes = [8, 384], strides = [1, 1]} : vector<8x512xf32> to vector<8x384xf32>
    %186 = arith.negf %185 : vector<8x384xf32>
    %187 = math.exp %186 : vector<8x384xf32>
    %cst_62 = arith.constant 1.000000e+00 : f32
    %188 = vector.broadcast %cst_62 : f32 to vector<8x384xf32>
    %189 = arith.addf %188, %187 : vector<8x384xf32>
    %190 = arith.divf %188, %189 : vector<8x384xf32>
    %191 = vector.extract_strided_slice %184 {offsets = [0, 384], sizes = [8, 128], strides = [1, 1]} : vector<8x512xf32> to vector<8x128xf32>
    %192 = math.tanh %191 : vector<8x128xf32>
    %193 = vector.extract_strided_slice %190 {offsets = [0, 128], sizes = [8, 128], strides = [1, 1]} : vector<8x384xf32> to vector<8x128xf32>
    %194 = arith.mulf %193, %173 : vector<8x128xf32>
    %195 = vector.extract_strided_slice %190 {offsets = [0, 0], sizes = [8, 128], strides = [1, 1]} : vector<8x384xf32> to vector<8x128xf32>
    %196 = arith.mulf %195, %192 : vector<8x128xf32>
    %197 = arith.addf %194, %196 : vector<8x128xf32>
    %198 = vector.extract_strided_slice %190 {offsets = [0, 256], sizes = [8, 128], strides = [1, 1]} : vector<8x384xf32> to vector<8x128xf32>
    %199 = math.tanh %197 : vector<8x128xf32>
    %200 = arith.mulf %198, %199 : vector<8x128xf32>
    %c3_63 = arith.constant 3 : index
    %c0_64 = arith.constant 0 : index
    %c0_65 = arith.constant 0 : index
    %201 = vector.load %arg13[%c3_63, %c0_64, %c0_65] : memref<4x8x128xf32, #tpu.memory_space<vmem>>, vector<1x8x128xf32>
    %202 = vector.shape_cast %201 : vector<1x8x128xf32> to vector<8x128xf32>
    %203 = vector.shape_cast %200 : vector<8x128xf32> to vector<1x8x128xf32>
    tpu.vector_store %arg13[%c3_63, %c0_64, %c0_65], %203 {strides = array<i32>} : memref<4x8x128xf32, #tpu.memory_space<vmem>>, vector<1x8x128xf32>,
    %c0_66 = arith.constant 0 : index
    %c0_67 = arith.constant 0 : index
    %c0_68 = arith.constant 0 : index
    %204 = vector.load %arg11[%c0_66, %c0_67, %c0_68] : memref<2x8x128xf32, #tpu.memory_space<vmem>>, vector<1x8x128xf32>
    %205 = vector.shape_cast %204 : vector<1x8x128xf32> to vector<8x128xf32>
    %206 = vector.shape_cast %155 : vector<8x128xf32> to vector<1x8x128xf32>
    tpu.vector_store %arg11[%c0_66, %c0_67, %c0_68], %206 {strides = array<i32>} : memref<2x8x128xf32, #tpu.memory_space<vmem>>, vector<1x8x128xf32>,
    %c0_69 = arith.constant 0 : index
    %c0_70 = arith.constant 0 : index
    %c0_71 = arith.constant 0 : index
    %207 = vector.load %arg12[%c0_69, %c0_70, %c0_71] : memref<2x8x128xf32, #tpu.memory_space<vmem>>, vector<1x8x128xf32>
    %208 = vector.shape_cast %207 : vector<1x8x128xf32> to vector<8x128xf32>
    %209 = vector.shape_cast %152 : vector<8x128xf32> to vector<1x8x128xf32>
    tpu.vector_store %arg12[%c0_69, %c0_70, %c0_71], %209 {strides = array<i32>} : memref<2x8x128xf32, #tpu.memory_space<vmem>>, vector<1x8x128xf32>,
    %c1_72 = arith.constant 1 : index
    %c0_73 = arith.constant 0 : index
    %c0_74 = arith.constant 0 : index
    %210 = vector.load %arg11[%c1_72, %c0_73, %c0_74] : memref<2x8x128xf32, #tpu.memory_space<vmem>>, vector<1x8x128xf32>
    %211 = vector.shape_cast %210 : vector<1x8x128xf32> to vector<8x128xf32>
    %212 = vector.shape_cast %200 : vector<8x128xf32> to vector<1x8x128xf32>
    tpu.vector_store %arg11[%c1_72, %c0_73, %c0_74], %212 {strides = array<i32>} : memref<2x8x128xf32, #tpu.memory_space<vmem>>, vector<1x8x128xf32>,
    %c1_75 = arith.constant 1 : index
    %c0_76 = arith.constant 0 : index
    %c0_77 = arith.constant 0 : index
    %213 = vector.load %arg12[%c1_75, %c0_76, %c0_77] : memref<2x8x128xf32, #tpu.memory_space<vmem>>, vector<1x8x128xf32>
    %214 = vector.shape_cast %213 : vector<1x8x128xf32> to vector<8x128xf32>
    %215 = vector.shape_cast %197 : vector<8x128xf32> to vector<1x8x128xf32>
    tpu.vector_store %arg12[%c1_75, %c0_76, %c0_77], %215 {strides = array<i32>} : memref<2x8x128xf32, #tpu.memory_space<vmem>>, vector<1x8x128xf32>,
    %c0_78 = arith.constant 0 : index
    %c0_79 = arith.constant 0 : index
    %c0_80 = arith.constant 0 : index
    %216 = vector.load %arg13[%c0_78, %c0_79, %c0_80] : memref<4x8x128xf32, #tpu.memory_space<vmem>>, vector<4x8x128xf32>
    %217 = vector.shape_cast %216 : vector<4x8x128xf32> to vector<32x128xf32>
    %218 = arith.truncf %217 : vector<32x128xf32> to vector<32x128xbf16>
    %c0_81 = arith.constant 0 : index
    %c0_82 = arith.constant 0 : index
    %219 = vector.load %arg6[%c0_81, %c0_82] : memref<128x128xbf16, #tpu.memory_space<vmem>>, vector<128x128xbf16>
    %cst_83 = arith.constant dense<0.000000e+00> : vector<32x128xf32>
    %220 = tpu.matmul %218, %219, %cst_83 {dimension_numbers = #tpu.dot_dimension_numbers<[1], [0], [0], [1], [0, 0, 1, 1], [], []>} : vector<32x128xbf16>, vector<128x128xbf16>, vector<32x128xf32> -> vector<32x128xf32>
    %c0_84 = arith.constant 0 : index
    %c0_85 = arith.constant 0 : index
    %221 = vector.load %arg7[%c0_84, %c0_85] : memref<1x128xf32, #tpu.memory_space<vmem>>, vector<1x128xf32>
    %222 = vector.broadcast %221 : vector<1x128xf32> to vector<32x128xf32>
    %223 = arith.addf %220, %222 : vector<32x128xf32>
    %c0_86 = arith.constant 0 : index
    %c0_87 = arith.constant 0 : index
    %224 = vector.load %arg8[%c0_86, %c0_87] : memref<32x128xf32, #tpu.memory_space<vmem>>, vector<32x128xf32>
    tpu.vector_store %arg8[%c0_86, %c0_87], %223 {strides = array<i32>} : memref<32x128xf32, #tpu.memory_space<vmem>>, vector<32x128xf32>,
    %c1_i32 = arith.constant 1 : i32
    %225 = arith.cmpi eq, %arg0, %c1_i32 : i32
    %226 = arith.extui %225 : i1 to i32
    %c0_i32_88 = arith.constant 0 : i32
    %227 = arith.cmpi ne, %226, %c0_i32_88 : i32
    scf.if %227 {
      %c0_89 = arith.constant 0 : index
      %c0_90 = arith.constant 0 : index
      %c0_91 = arith.constant 0 : index
      %228 = vector.load %arg9[%c0_89, %c0_90, %c0_91] : memref<2x8x128xf32, #tpu.memory_space<vmem>>, vector<1x8x128xf32>
      %229 = vector.shape_cast %228 : vector<1x8x128xf32> to vector<8x128xf32>
      %230 = vector.shape_cast %155 : vector<8x128xf32> to vector<1x8x128xf32>
      tpu.vector_store %arg9[%c0_89, %c0_90, %c0_91], %230 {strides = array<i32>} : memref<2x8x128xf32, #tpu.memory_space<vmem>>, vector<1x8x128xf32>,
      %c1_92 = arith.constant 1 : index
      %c0_93 = arith.constant 0 : index
      %c0_94 = arith.constant 0 : index
      %231 = vector.load %arg9[%c1_92, %c0_93, %c0_94] : memref<2x8x128xf32, #tpu.memory_space<vmem>>, vector<1x8x128xf32>
      %232 = vector.shape_cast %231 : vector<1x8x128xf32> to vector<8x128xf32>
      %233 = vector.shape_cast %200 : vector<8x128xf32> to vector<1x8x128xf32>
      tpu.vector_store %arg9[%c1_92, %c0_93, %c0_94], %233 {strides = array<i32>} : memref<2x8x128xf32, #tpu.memory_space<vmem>>, vector<1x8x128xf32>,
      %c0_95 = arith.constant 0 : index
      %c0_96 = arith.constant 0 : index
      %c0_97 = arith.constant 0 : index
      %234 = vector.load %arg10[%c0_95, %c0_96, %c0_97] : memref<2x8x128xf32, #tpu.memory_space<vmem>>, vector<1x8x128xf32>
      %235 = vector.shape_cast %234 : vector<1x8x128xf32> to vector<8x128xf32>
      %236 = vector.shape_cast %152 : vector<8x128xf32> to vector<1x8x128xf32>
      tpu.vector_store %arg10[%c0_95, %c0_96, %c0_97], %236 {strides = array<i32>} : memref<2x8x128xf32, #tpu.memory_space<vmem>>, vector<1x8x128xf32>,
      %c1_98 = arith.constant 1 : index
      %c0_99 = arith.constant 0 : index
      %c0_100 = arith.constant 0 : index
      %237 = vector.load %arg10[%c1_98, %c0_99, %c0_100] : memref<2x8x128xf32, #tpu.memory_space<vmem>>, vector<1x8x128xf32>
      %238 = vector.shape_cast %237 : vector<1x8x128xf32> to vector<8x128xf32>
      %239 = vector.shape_cast %197 : vector<8x128xf32> to vector<1x8x128xf32>
      tpu.vector_store %arg10[%c1_98, %c0_99, %c0_100], %239 {strides = array<i32>} : memref<2x8x128xf32, #tpu.memory_space<vmem>>, vector<1x8x128xf32>,
    } else {
    }
    return
  }
  func.func @transform_0(%arg0: i32) -> (i32, i32) {
    %c0_i32 = arith.constant 0 : i32
    %c0_i32_0 = arith.constant 0 : i32
    return %arg0, %c0_i32 : i32, i32
  }
  func.func @transform_1(%arg0: i32) -> (i32, i32) {
    %c0_i32 = arith.constant 0 : i32
    %c0_i32_0 = arith.constant 0 : i32
    %c0_i32_1 = arith.constant 0 : i32
    return %c0_i32, %c0_i32_0 : i32, i32
  }
  func.func @transform_2(%arg0: i32) -> (i32, i32) {
    %c0_i32 = arith.constant 0 : i32
    %c0_i32_0 = arith.constant 0 : i32
    %c0_i32_1 = arith.constant 0 : i32
    return %c0_i32, %c0_i32_0 : i32, i32
  }
  func.func @transform_3(%arg0: i32) -> (i32, i32) {
    %c0_i32 = arith.constant 0 : i32
    %c0_i32_0 = arith.constant 0 : i32
    %c0_i32_1 = arith.constant 0 : i32
    return %c0_i32, %c0_i32_0 : i32, i32
  }
  func.func @transform_4(%arg0: i32) -> (i32, i32, i32) {
    %c0_i32 = arith.constant 0 : i32
    %c0_i32_0 = arith.constant 0 : i32
    %c0_i32_1 = arith.constant 0 : i32
    %c0_i32_2 = arith.constant 0 : i32
    return %c0_i32, %c0_i32_0, %c0_i32_1 : i32, i32, i32
  }
  func.func @transform_5(%arg0: i32) -> (i32, i32) {
    %c0_i32 = arith.constant 0 : i32
    %c0_i32_0 = arith.constant 0 : i32
    %c0_i32_1 = arith.constant 0 : i32
    return %c0_i32, %c0_i32_0 : i32, i32
  }
  func.func @transform_6(%arg0: i32) -> (i32, i32) {
    %c0_i32 = arith.constant 0 : i32
    %c0_i32_0 = arith.constant 0 : i32
    %c0_i32_1 = arith.constant 0 : i32
    return %c0_i32, %c0_i32_0 : i32, i32
  }
  func.func @transform_7(%arg0: i32) -> (i32, i32) {
    %c0_i32 = arith.constant 0 : i32
    %c0_i32_0 = arith.constant 0 : i32
    return %arg0, %c0_i32 : i32, i32
  }
  func.func @transform_8(%arg0: i32) -> (i32, i32, i32) {
    %c0_i32 = arith.constant 0 : i32
    %c0_i32_0 = arith.constant 0 : i32
    %c0_i32_1 = arith.constant 0 : i32
    %c0_i32_2 = arith.constant 0 : i32
    return %c0_i32, %c0_i32_0, %c0_i32_1 : i32, i32, i32
  }
  func.func @transform_9(%arg0: i32) -> (i32, i32, i32) {
    %c0_i32 = arith.constant 0 : i32
    %c0_i32_0 = arith.constant 0 : i32
    %c0_i32_1 = arith.constant 0 : i32
    %c0_i32_2 = arith.constant 0 : i32
    return %c0_i32, %c0_i32_0, %c0_i32_1 : i32, i32, i32
  }
}

</mosaic_0001>

<llo_original>
// kernel: char_rnn_forward.1
$region0: #{char_rnn_forward.1}
  #allocation0 [shape = 'u32[]', space=smem, size = 0x4, offset = 0x4, fixed_abs, tag = 'smem constant byte address 0x4 - core index']
  #allocation1 [shape = 'u32[72,128]{1,0:T(1,128)}', space=vmem, size = 0x9000, scoped, tag = 'internal scratch']
  #allocation2 [shape = 'f32[2,8,128]{2,1,0:T(8,128)}', space=vmem, size = 0x2000, scoped, tag = 'scratch operand']
  #allocation3 [shape = 'f32[2,8,128]{2,1,0:T(8,128)}', space=vmem, size = 0x2000, scoped, tag = 'scratch operand']
  #allocation4 [shape = 'f32[4,8,128]{2,1,0:T(8,128)}', space=vmem, size = 0x4000, scoped, tag = 'scratch operand']
  #allocation5 [shape = 'f32[4,8,512]{2,1,0:T(8,128)}', space=vmem, size = 0x10000, scoped, tag = 'scratch operand']
  %s0 = inlined_call_operand.vmem [shape: bf16[64,128], index: 0, kind: input, shape index: {}]
  %s1 = inlined_call_operand.vmem [shape: bf16[128,512], index: 1, kind: input, shape index: {}]
  %s2 = inlined_call_operand.vmem [shape: bf16[128,512], index: 2, kind: input, shape index: {}]
  %s3 = inlined_call_operand.vmem [shape: bf16[256,512], index: 3, kind: input, shape index: {}]
  %s4 = inlined_call_operand.vmem [shape: f32[2,1,512], index: 4, kind: input, shape index: {}]
  %s5 = inlined_call_operand.vmem [shape: bf16[128,128], index: 5, kind: input, shape index: {}]
  %s6 = inlined_call_operand.vmem [shape: f32[1,128], index: 6, kind: input, shape index: {}]
  %s7 = inlined_call_operand.vmem [shape: f32[64,128], index: 7, kind: output, shape index: {0}]
  %s8 = inlined_call_operand.vmem [shape: f32[2,8,128], index: 8, kind: output, shape index: {1}]
  %s9 = inlined_call_operand.vmem [shape: f32[2,8,128], index: 9, kind: output, shape index: {2}]
  %10 = xla_tuple %s7, %s8, %s9
  %s11 = sld [smem:[#allocation0]]
  $region85: #{char_rnn_forward.1} parent=0
    _
  %s13 = ssub.s32 1, %s11
  %s14 = scalar_select 0, %s13, %s11
  loop: start=0, step=1, limit=4
  $region2: #{char_rnn_forward.1} parent=0 // loop_pre_header
    _
  $region3: #{char_rnn_forward.1} parent=0 // loop_header
    %s16 = sphi 0, %s20
    %p17 = scmp.ge.s32.totalorder %s16, 4
    %s26 = sphi 0, %s28
    %s29 = sphi 0, %s26
    %s30 = sphi 0, %s29
    %s46 = sphi 0, %s30
    %s50 = sphi 0, %s50
    %s52 = sphi 0, %s50
    %s53 = sphi 0, %s52
    %s67 = sphi 0, %s53
    %s71 = sphi 0, %s71
    %s73 = sphi 0, %s71
    %s74 = sphi 0, %s73
    %s88 = sphi 0, %s74
    %s92 = sphi 0, %s92
    %s94 = sphi 0, %s92
    %s95 = sphi 0, %s94
    %s109 = sphi 0, %s95
    %s113 = sphi 0, %s113
    %s115 = sphi 0, %s113
    %s116 = sphi 0, %s115
    %s130 = sphi 0, %s116
    %s134 = sphi 0, %s134
    %s136 = sphi 0, %s134
    %s137 = sphi 0, %s136
    %s151 = sphi 0, %s137
    %s155 = sphi 0, %s155
    %s157 = sphi 0, %s155
    %s158 = sphi 0, %s157
    %s172 = sphi 0, %s158
    %s178 = sphi 0, %s180
    %s181 = sphi 0, %s178
    %s182 = sphi 0, %s181
    %s198 = sphi 0, %s182
    %s202 = sphi 0, %s202
    %s204 = sphi 0, %s202
    %s205 = sphi 0, %s204
    %s219 = sphi 0, %s205
    %s223 = sphi 0, %s223
    %s225 = sphi 0, %s223
    %s226 = sphi 0, %s225
    %s240 = sphi 0, %s226
  $region4: #{char_rnn_forward.1} parent=0 // loop_header_branch
    %19 = sbr.rel (%p17) target = $region8
  $region5: #{char_rnn_forward.1} parent=0 // loop_body
    %s21 = ssub.s32 %s16, 1
    %s22 = ssub.s32 %s16, 2
    %s23 = sadd.s32 %s16, 1
    %s24 = ssub.s32 %s16, %s23
    %p25 = scmp.eq.s32.totalorder %s24, 0
    %s27 = sadd.s32 %s26, 1
    %s28 = scalar_select %p25, %s26, %s27
    %p31 = pneg %p25
    %p32 = scmp.eq.s32.totalorder %s16, 1
    %p33 = por %p31, %p32
    %p34 = scmp.ne.s32.totalorder %s26, %s29
    %p35 = scmp.eq.s32.totalorder %s16, 0
    %p36 = por %p34, %p35
    %p37 = scmp.ne.s32.totalorder %s26, %s29
    %p38 = scmp.eq.s32.totalorder %s21, 1
    %p39 = por %p37, %p38
    %p40 = scmp.ne.s32.totalorder %s29, %s30
    %p41 = scmp.eq.s32.totalorder %s21, 0
    %p42 = por %p40, %p41
    %p43 = scmp.ne.s32.totalorder %s29, %s30
    %p44 = scmp.eq.s32.totalorder %s22, 1
    %p45 = por %p43, %p44
    %p47 = scmp.ne.s32.totalorder %s30, %s46
    %p48 = scmp.eq.s32.totalorder %s22, 0
    %p49 = por %p47, %p48
    %s51 = sadd.s32 %s50, 1
    %p54 = scmp.eq.s32.totalorder %s16, 1
    %p55 = scmp.ne.s32.totalorder %s50, %s52
    %p56 = scmp.eq.s32.totalorder %s16, 0
    %p57 = por %p55, %p56
    %p58 = scmp.ne.s32.totalorder %s50, %s52
    %p59 = scmp.eq.s32.totalorder %s21, 1
    %p60 = por %p58, %p59
    %p61 = scmp.ne.s32.totalorder %s52, %s53
    %p62 = scmp.eq.s32.totalorder %s21, 0
    %p63 = por %p61, %p62
    %p64 = scmp.ne.s32.totalorder %s52, %s53
    %p65 = scmp.eq.s32.totalorder %s22, 1
    %p66 = por %p64, %p65
    %p68 = scmp.ne.s32.totalorder %s53, %s67
    %p69 = scmp.eq.s32.totalorder %s22, 0
    %p70 = por %p68, %p69
    %s72 = sadd.s32 %s71, 1
    %p75 = scmp.eq.s32.totalorder %s16, 1
    %p76 = scmp.ne.s32.totalorder %s71, %s73
    %p77 = scmp.eq.s32.totalorder %s16, 0
    %p78 = por %p76, %p77
    %p79 = scmp.ne.s32.totalorder %s71, %s73
    %p80 = scmp.eq.s32.totalorder %s21, 1
    %p81 = por %p79, %p80
    %p82 = scmp.ne.s32.totalorder %s73, %s74
    %p83 = scmp.eq.s32.totalorder %s21, 0
    %p84 = por %p82, %p83
    %p85 = scmp.ne.s32.totalorder %s73, %s74
    %p86 = scmp.eq.s32.totalorder %s22, 1
    %p87 = por %p85, %p86
    %p89 = scmp.ne.s32.totalorder %s74, %s88
    %p90 = scmp.eq.s32.totalorder %s22, 0
    %p91 = por %p89, %p90
    %s93 = sadd.s32 %s92, 1
    %p96 = scmp.eq.s32.totalorder %s16, 1
    %p97 = scmp.ne.s32.totalorder %s92, %s94
    %p98 = scmp.eq.s32.totalorder %s16, 0
    %p99 = por %p97, %p98
    %p100 = scmp.ne.s32.totalorder %s92, %s94
    %p101 = scmp.eq.s32.totalorder %s21, 1
    %p102 = por %p100, %p101
    %p103 = scmp.ne.s32.totalorder %s94, %s95
    %p104 = scmp.eq.s32.totalorder %s21, 0
    %p105 = por %p103, %p104
    %p106 = scmp.ne.s32.totalorder %s94, %s95
    %p107 = scmp.eq.s32.totalorder %s22, 1
    %p108 = por %p106, %p107
    %p110 = scmp.ne.s32.totalorder %s95, %s109
    %p111 = scmp.eq.s32.totalorder %s22, 0
    %p112 = por %p110, %p111
    %s114 = sadd.s32 %s113, 1
    %p117 = scmp.eq.s32.totalorder %s16, 1
    %p118 = scmp.ne.s32.totalorder %s113, %s115
    %p119 = scmp.eq.s32.totalorder %s16, 0
    %p120 = por %p118, %p119
    %p121 = scmp.ne.s32.totalorder %s113, %s115
    %p122 = scmp.eq.s32.totalorder %s21, 1
    %p123 = por %p121, %p122
    %p124 = scmp.ne.s32.totalorder %s115, %s116
    %p125 = scmp.eq.s32.totalorder %s21, 0
    %p126 = por %p124, %p125
    %p127 = scmp.ne.s32.totalorder %s115, %s116
    %p128 = scmp.eq.s32.totalorder %s22, 1
    %p129 = por %p127, %p128
    %p131 = scmp.ne.s32.totalorder %s116, %s130
    %p132 = scmp.eq.s32.totalorder %s22, 0
    %p133 = por %p131, %p132
    %s135 = sadd.s32 %s134, 1
    %p138 = scmp.eq.s32.totalorder %s16, 1
    %p139 = scmp.ne.s32.totalorder %s134, %s136
    %p140 = scmp.eq.s32.totalorder %s16, 0
    %p141 = por %p139, %p140
    %p142 = scmp.ne.s32.totalorder %s134, %s136
    %p143 = scmp.eq.s32.totalorder %s21, 1
    %p144 = por %p142, %p143
    %p145 = scmp.ne.s32.totalorder %s136, %s137
    %p146 = scmp.eq.s32.totalorder %s21, 0
    %p147 = por %p145, %p146
    %p148 = scmp.ne.s32.totalorder %s136, %s137
    %p149 = scmp.eq.s32.totalorder %s22, 1
    %p150 = por %p148, %p149
    %p152 = scmp.ne.s32.totalorder %s137, %s151
    %p153 = scmp.eq.s32.totalorder %s22, 0
    %p154 = por %p152, %p153
    %s156 = sadd.s32 %s155, 1
    %p159 = scmp.eq.s32.totalorder %s16, 1
    %p160 = scmp.ne.s32.totalorder %s155, %s157
    %p161 = scmp.eq.s32.totalorder %s16, 0
    %p162 = por %p160, %p161
    %p163 = scmp.ne.s32.totalorder %s155, %s157
    %p164 = scmp.eq.s32.totalorder %s21, 1
    %p165 = por %p163, %p164
    %p166 = scmp.ne.s32.totalorder %s157, %s158
    %p167 = scmp.eq.s32.totalorder %s21, 0
    %p168 = por %p166, %p167
    %p169 = scmp.ne.s32.totalorder %s157, %s158
    %p170 = scmp.eq.s32.totalorder %s22, 1
    %p171 = por %p169, %p170
    %p173 = scmp.ne.s32.totalorder %s158, %s172
    %p174 = scmp.eq.s32.totalorder %s22, 0
    %p175 = por %p173, %p174
    %s176 = ssub.s32 %s16, %s23
    %p177 = scmp.eq.s32.totalorder %s176, 0
    %s179 = sadd.s32 %s178, 1
    %s180 = scalar_select %p177, %s178, %s179
    %p183 = pneg %p177
    %p184 = scmp.eq.s32.totalorder %s16, 1
    %p185 = por %p183, %p184
    %p186 = scmp.ne.s32.totalorder %s178, %s181
    %p187 = scmp.eq.s32.totalorder %s16, 0
    %p188 = por %p186, %p187
    %p189 = scmp.ne.s32.totalorder %s178, %s181
    %p190 = scmp.eq.s32.totalorder %s21, 1
    %p191 = por %p189, %p190
    %p192 = scmp.ne.s32.totalorder %s181, %s182
    %p193 = scmp.eq.s32.totalorder %s21, 0
    %p194 = por %p192, %p193
    %p195 = scmp.ne.s32.totalorder %s181, %s182
    %p196 = scmp.eq.s32.totalorder %s22, 1
    %p197 = por %p195, %p196
    %p199 = scmp.ne.s32.totalorder %s182, %s198
    %p200 = scmp.eq.s32.totalorder %s22, 0
    %p201 = por %p199, %p200
    %s203 = sadd.s32 %s202, 1
    %p206 = scmp.eq.s32.totalorder %s16, 1
    %p207 = scmp.ne.s32.totalorder %s202, %s204
    %p208 = scmp.eq.s32.totalorder %s16, 0
    %p209 = por %p207, %p208
    %p210 = scmp.ne.s32.totalorder %s202, %s204
    %p211 = scmp.eq.s32.totalorder %s21, 1
    %p212 = por %p210, %p211
    %p213 = scmp.ne.s32.totalorder %s204, %s205
    %p214 = scmp.eq.s32.totalorder %s21, 0
    %p215 = por %p213, %p214
    %p216 = scmp.ne.s32.totalorder %s204, %s205
    %p217 = scmp.eq.s32.totalorder %s22, 1
    %p218 = por %p216, %p217
    %p220 = scmp.ne.s32.totalorder %s205, %s219
    %p221 = scmp.eq.s32.totalorder %s22, 0
    %p222 = por %p220, %p221
    %s224 = sadd.s32 %s223, 1
    %p227 = scmp.eq.s32.totalorder %s16, 1
    %p228 = scmp.ne.s32.totalorder %s223, %s225
    %p229 = scmp.eq.s32.totalorder %s16, 0
    %p230 = por %p228, %p229
    %p231 = scmp.ne.s32.totalorder %s223, %s225
    %p232 = scmp.eq.s32.totalorder %s21, 1
    %p233 = por %p231, %p232
    %p234 = scmp.ne.s32.totalorder %s225, %s226
    %p235 = scmp.eq.s32.totalorder %s21, 0
    %p236 = por %p234, %p235
    %p237 = scmp.ne.s32.totalorder %s225, %s226
    %p238 = scmp.eq.s32.totalorder %s22, 1
    %p239 = por %p237, %p238
    %p241 = scmp.ne.s32.totalorder %s226, %s240
    %p242 = scmp.eq.s32.totalorder %s22, 0
    %p243 = por %p241, %p242
    %p244 = scmp.le.s32.totalorder 1, %s16
    %p245 = scmp.lt.s32.totalorder %s16, 3
    %p246 = pnand %p244, %p245
    %p247 = pneg %p246
    // Predicated region
    $region9: #{char_rnn_forward.1} parent=5 // pred_check
      _
    $region10: #{char_rnn_forward.1} parent=5 // pred_check_branch
      %249 = sbr.rel (%p246) target = $region12
    $region11: #{char_rnn_forward.1} parent=5 // pred_region
      %s250 = ssub.s32 %s16, 1
      // Predicated region
      $region13: #{char_rnn_forward.1} parent=11 // pred_check
        %p251 = pneg %p63
      $region14: #{char_rnn_forward.1} parent=11 // pred_check_branch
        %253 = sbr.rel (%p251) target = $region16
      $region15: #{char_rnn_forward.1} parent=11 // pred_region
        _
      $region16: #{char_rnn_forward.1} parent=11 // pred_fallthru
        _
      // Predicated region
      $region17: #{char_rnn_forward.1} parent=11 // pred_check
        %p254 = pneg %p84
      $region18: #{char_rnn_forward.1} parent=11 // pred_check_branch
        %256 = sbr.rel (%p254) target = $region20
      $region19: #{char_rnn_forward.1} parent=11 // pred_region
        _
      $region20: #{char_rnn_forward.1} parent=11 // pred_fallthru
        _
      // Predicated region
      $region21: #{char_rnn_forward.1} parent=11 // pred_check
        %p257 = pneg %p105
      $region22: #{char_rnn_forward.1} parent=11 // pred_check_branch
        %259 = sbr.rel (%p257) target = $region24
      $region23: #{char_rnn_forward.1} parent=11 // pred_region
        _
      $region24: #{char_rnn_forward.1} parent=11 // pred_fallthru
        _
      // Predicated region
      $region25: #{char_rnn_forward.1} parent=11 // pred_check
        %p260 = pneg %p126
      $region26: #{char_rnn_forward.1} parent=11 // pred_check_branch
        %262 = sbr.rel (%p260) target = $region28
      $region27: #{char_rnn_forward.1} parent=11 // pred_region
        _
      $region28: #{char_rnn_forward.1} parent=11 // pred_fallthru
        _
      // Predicated region
      $region29: #{char_rnn_forward.1} parent=11 // pred_check
        %p263 = pneg %p147
      $region30: #{char_rnn_forward.1} parent=11 // pred_check_branch
        %265 = sbr.rel (%p263) target = $region32
      $region31: #{char_rnn_forward.1} parent=11 // pred_region
        _
      $region32: #{char_rnn_forward.1} parent=11 // pred_fallthru
        _
      // Predicated region
      $region33: #{char_rnn_forward.1} parent=11 // pred_check
        %p266 = pneg %p168
      $region34: #{char_rnn_forward.1} parent=11 // pred_check_branch
        %268 = sbr.rel (%p266) target = $region36
      $region35: #{char_rnn_forward.1} parent=11 // pred_region
        _
      $region36: #{char_rnn_forward.1} parent=11 // pred_fallthru
        _
    $region12: #{char_rnn_forward.1} parent=5 // pred_fallthru
      _
    %p269 = scmp.lt.s32.totalorder %s16, 2
    // Predicated region
    $region37: #{char_rnn_forward.1} parent=5 // pred_check
      %p270 = pneg %p269
    $region38: #{char_rnn_forward.1} parent=5 // pred_check_branch
      %272 = sbr.rel (%p270) target = $region40
    $region39: #{char_rnn_forward.1} parent=5 // pred_region
      // Predicated region
      $region41: #{char_rnn_forward.1} parent=39 // pred_check
        %p273 = pneg %p36
      $region42: #{char_rnn_forward.1} parent=39 // pred_check_branch
        %275 = sbr.rel (%p273) target = $region44
      $region43: #{char_rnn_forward.1} parent=39 // pred_region
        %s276 = smul.u32 4, %s16
        %p277 = scmp.lt.s32.totalorder %s276, 7
        %s278 = scalar_select %p277, %s276, 7
        %s279 = smul.addr %s278, 4
        %s280 = scalar_lea.vmem %s0, %s279
        %s281 = smul.u32 4, %s16
      $region44: #{char_rnn_forward.1} parent=39 // pred_fallthru
        _
    $region40: #{char_rnn_forward.1} parent=5 // pred_fallthru
      _
    %p282 = scmp.le.s32.totalorder 1, %s16
    %p283 = scmp.lt.s32.totalorder %s16, 3
    %p284 = pnand %p282, %p283
    %p285 = pneg %p284
    // Predicated region
    $region45: #{char_rnn_forward.1} parent=5 // pred_check
      _
    $region46: #{char_rnn_forward.1} parent=5 // pred_check_branch
      %287 = sbr.rel (%p284) target = $region48
    $region47: #{char_rnn_forward.1} parent=5 // pred_region
      %s288 = ssub.s32 %s16, 1
      %s289 = smul.u32 4, %s21
      %p290 = scmp.lt.s32.totalorder %s289, 7
      %s291 = scalar_select %p290, %s289, 7
      %s292 = smul.addr %s291, 4
      %s293 = scalar_lea.vmem %s0, %s292
      %p294 = pneg %p42
      %p295 = pneg %p39
      %p296 = pneg %p63
      %p297 = pneg %p60
      %p298 = pneg %p84
      %p299 = pneg %p81
      %p300 = pneg %p105
      %p301 = pneg %p102
      %p302 = pneg %p126
      %p303 = pneg %p123
      %p304 = pneg %p147
      %p305 = pneg %p144
      %p306 = pneg %p168
      %p307 = pneg %p165
      %p308 = pneg %p194
      %p309 = pneg %p191
      %s310 = smul.u32 4, %s21
      %p311 = scmp.lt.s32.totalorder %s310, 7
      %s312 = scalar_select %p311, %s310, 7
      %s313 = smul.addr %s312, 8
      %s314 = scalar_lea.vmem %s7, %s313
      %p315 = pneg %p215
      %p316 = pneg %p212
      %p317 = pneg %p236
      %p318 = pneg %p233
      %s319 = smul.u32 4, %s21
      %p320 = scmp.lt.s32.totalorder %s319, 7
      %s321 = scalar_select %p320, %s319, 7
      %s322 = smul.addr %s321, 4
      %s323 = scalar_lea.vmem %s0, %s322
      %s324 = smul.u32 4, %s21
      %s325 = smul.u32 4, %s21
      %p326 = scmp.lt.s32.totalorder %s325, 7
      %s327 = scalar_select %p326, %s325, 7
      %s328 = smul.addr %s327, 8
      %s329 = scalar_lea.vmem %s7, %s328
      %s330 = smul.u32 4, %s21
      %p331 = scmp.eq.s32.totalorder %s21, 0
      // Predicated region
      $region49: #{char_rnn_forward.1} parent=47 // pred_check
        %p332 = pneg %p331
      $region50: #{char_rnn_forward.1} parent=47 // pred_check_branch
        %334 = sbr.rel (%p332) target = $region52
      $region51: #{char_rnn_forward.1} parent=47 // pred_region
        %335 = vst [vmem:[#allocation2] sm:$0xff] 0.0
        %336 = vst [vmem:[#allocation2 + $0x8] sm:$0xff] 0.0
        %337 = vst [vmem:[#allocation3] sm:$0xff] 0.0
        %338 = vst [vmem:[#allocation3 + $0x8] sm:$0xff] 0.0
      $region52: #{char_rnn_forward.1} parent=47 // pred_fallthru
        _
      %v339 = vld [vmem:[%s323] sm:$0xf]
      %v340 = vld [vmem:[%s323 + $0x4] sm:$0xf]
      %v341 = vld [vmem:[%s323 + $0x8] sm:$0xf]
      %v342 = vld [vmem:[%s323 + $0xc] sm:$0xf]
      %v343 = vld [vmem:[%s1] sm:$0xff]
      %v344 = vld [vmem:[%s1 + $0x8] sm:$0xff]
      %v345 = vld [vmem:[%s1 + $0x10] sm:$0xff]
      %v346 = vld [vmem:[%s1 + $0x18] sm:$0xff]
      %v347 = vld [vmem:[%s1 + $0x20] sm:$0xff]
      %v348 = vld [vmem:[%s1 + $0x28] sm:$0xff]
      %v349 = vld [vmem:[%s1 + $0x30] sm:$0xff]
      %v350 = vld [vmem:[%s1 + $0x38] sm:$0xff]
      %v351 = vld [vmem:[%s1 + $0x40] sm:$0xff]
      %v352 = vld [vmem:[%s1 + $0x48] sm:$0xff]
      %v353 = vld [vmem:[%s1 + $0x50] sm:$0xff]
      %v354 = vld [vmem:[%s1 + $0x58] sm:$0xff]
      %v355 = vld [vmem:[%s1 + $0x60] sm:$0xff]
      %v356 = vld [vmem:[%s1 + $0x68] sm:$0xff]
      %v357 = vld [vmem:[%s1 + $0x70] sm:$0xff]
      %v358 = vld [vmem:[%s1 + $0x78] sm:$0xff]
      %v359 = vld [vmem:[%s1 + $0x80] sm:$0xff]
      %v360 = vld [vmem:[%s1 + $0x88] sm:$0xff]
      %v361 = vld [vmem:[%s1 + $0x90] sm:$0xff]
      %v362 = vld [vmem:[%s1 + $0x98] sm:$0xff]
      %v363 = vld [vmem:[%s1 + $0xa0] sm:$0xff]
      %v364 = vld [vmem:[%s1 + $0xa8] sm:$0xff]
      %v365 = vld [vmem:[%s1 + $0xb0] sm:$0xff]
      %v366 = vld [vmem:[%s1 + $0xb8] sm:$0xff]
      %v367 = vld [vmem:[%s1 + $0xc0] sm:$0xff]
      %v368 = vld [vmem:[%s1 + $0xc8] sm:$0xff]
      %v369 = vld [vmem:[%s1 + $0xd0] sm:$0xff]
      %v370 = vld [vmem:[%s1 + $0xd8] sm:$0xff]
      %v371 = vld [vmem:[%s1 + $0xe0] sm:$0xff]
      %v372 = vld [vmem:[%s1 + $0xe8] sm:$0xff]
      %v373 = vld [vmem:[%s1 + $0xf0] sm:$0xff]
      %v374 = vld [vmem:[%s1 + $0xf8] sm:$0xff]
      %v375 = vld [vmem:[%s4] sm:$0xf]
      %v377 = vperm.slane %v375, 0
      %v378 = vperm.slane %v375, 1
      %v379 = vperm.slane %v375, 2
      %v380 = vperm.slane %v375, 3
      %v389 = vunpack.c.l.b16 %v339
      %v390 = vunpack.c.l.b16 %v340
      %v391 = vunpack.c.l.b16 %v341
      %v392 = vunpack.c.l.b16 %v342
      %v393 = vpack.c.b16 %v390, %v389
      %v394 = vpack.c.b16 %v392, %v391
      %v429 = vunpack.c.l.b16 %v343
      %v430 = vunpack.c.h.b16 %v343
      %v431 = vunpack.c.l.b16 %v344
      %v432 = vunpack.c.h.b16 %v344
      %v433 = vunpack.c.l.b16 %v345
      %v434 = vunpack.c.h.b16 %v345
      %v435 = vunpack.c.l.b16 %v346
      %v436 = vunpack.c.h.b16 %v346
      %v437 = vunpack.c.l.b16 %v347
      %v438 = vunpack.c.h.b16 %v347
      %v439 = vunpack.c.l.b16 %v348
      %v440 = vunpack.c.h.b16 %v348
      %v441 = vunpack.c.l.b16 %v349
      %v442 = vunpack.c.h.b16 %v349
      %v443 = vunpack.c.l.b16 %v350
      %v444 = vunpack.c.h.b16 %v350
      %v445 = vunpack.c.l.b16 %v351
      %v446 = vunpack.c.h.b16 %v351
      %v447 = vunpack.c.l.b16 %v352
      %v448 = vunpack.c.h.b16 %v352
      %v449 = vunpack.c.l.b16 %v353
      %v450 = vunpack.c.h.b16 %v353
      %v451 = vunpack.c.l.b16 %v354
      %v452 = vunpack.c.h.b16 %v354
      %v453 = vunpack.c.l.b16 %v355
      %v454 = vunpack.c.h.b16 %v355
      %v455 = vunpack.c.l.b16 %v356
      %v456 = vunpack.c.h.b16 %v356
      %v457 = vunpack.c.l.b16 %v357
      %v458 = vunpack.c.h.b16 %v357
      %v459 = vunpack.c.l.b16 %v358
      %v460 = vunpack.c.h.b16 %v358
      %v461 = vunpack.c.l.b16 %v359
      %v462 = vunpack.c.h.b16 %v359
      %v463 = vunpack.c.l.b16 %v360
      %v464 = vunpack.c.h.b16 %v360
      %v465 = vunpack.c.l.b16 %v361
      %v466 = vunpack.c.h.b16 %v361
      %v467 = vunpack.c.l.b16 %v362
      %v468 = vunpack.c.h.b16 %v362
      %v469 = vunpack.c.l.b16 %v363
      %v470 = vunpack.c.h.b16 %v363
      %v471 = vunpack.c.l.b16 %v364
      %v472 = vunpack.c.h.b16 %v364
      %v473 = vunpack.c.l.b16 %v365
      %v474 = vunpack.c.h.b16 %v365
      %v475 = vunpack.c.l.b16 %v366
      %v476 = vunpack.c.h.b16 %v366
      %v477 = vunpack.c.l.b16 %v367
      %v478 = vunpack.c.h.b16 %v367
      %v479 = vunpack.c.l.b16 %v368
      %v480 = vunpack.c.h.b16 %v368
      %v481 = vunpack.c.l.b16 %v369
      %v482 = vunpack.c.h.b16 %v369
      %v483 = vunpack.c.l.b16 %v370
      %v484 = vunpack.c.h.b16 %v370
      %v485 = vunpack.c.l.b16 %v371
      %v486 = vunpack.c.h.b16 %v371
      %v487 = vunpack.c.l.b16 %v372
      %v488 = vunpack.c.h.b16 %v372
      %v489 = vunpack.c.l.b16 %v373
      %v490 = vunpack.c.h.b16 %v373
      %v491 = vunpack.c.l.b16 %v374
      %v492 = vunpack.c.h.b16 %v374
      %v493 = vpack.c.b16 %v433, %v429
      %v494 = vpack.c.b16 %v434, %v430
      %v495 = vpack.c.b16 %v435, %v431
      %v496 = vpack.c.b16 %v436, %v432
      %v497 = vpack.c.b16 %v441, %v437
      %v498 = vpack.c.b16 %v442, %v438
      %v499 = vpack.c.b16 %v443, %v439
      %v500 = vpack.c.b16 %v444, %v440
      %v501 = vpack.c.b16 %v449, %v445
      %v502 = vpack.c.b16 %v450, %v446
      %v503 = vpack.c.b16 %v451, %v447
      %v504 = vpack.c.b16 %v452, %v448
      %v505 = vpack.c.b16 %v457, %v453
      %v506 = vpack.c.b16 %v458, %v454
      %v507 = vpack.c.b16 %v459, %v455
      %v508 = vpack.c.b16 %v460, %v456
      %v509 = vpack.c.b16 %v465, %v461
      %v510 = vpack.c.b16 %v466, %v462
      %v511 = vpack.c.b16 %v467, %v463
      %v512 = vpack.c.b16 %v468, %v464
      %v513 = vpack.c.b16 %v473, %v469
      %v514 = vpack.c.b16 %v474, %v470
      %v515 = vpack.c.b16 %v475, %v471
      %v516 = vpack.c.b16 %v476, %v472
      %v517 = vpack.c.b16 %v481, %v477
      %v518 = vpack.c.b16 %v482, %v478
      %v519 = vpack.c.b16 %v483, %v479
      %v520 = vpack.c.b16 %v484, %v480
      %v521 = vpack.c.b16 %v489, %v485
      %v522 = vpack.c.b16 %v490, %v486
      %v523 = vpack.c.b16 %v491, %v487
      %v524 = vpack.c.b16 %v492, %v488
      %557 = vmatpush.bf16.msra.mxu0 %v521
      %558 = vmatpush.bf16.msra.mxu0 %v517
      %559 = vmatpush.bf16.msra.mxu0 %v513
      %560 = vmatpush.bf16.msra.mxu0 %v509
      %561 = vmatpush.bf16.msra.mxu0 %v505
      %562 = vmatpush.bf16.msra.mxu0 %v501
      %563 = vmatpush.bf16.msra.mxu0 %v497
      %564 = vmatpush.bf16.msra.mxu0 %v493
      %565 = vmatmul.bf16.gmra.mxu0 %v393
      %v566 = vpop.f32.mrf.mxu0
      %v567 = vadd.f32 %v377, %v566
      %v568 = vpop.f32.mrf.mxu0
      %v569 = vadd.f32 %v377, %v568
      %570 = vmatmul.bf16.gmra.mxu0 %v394
      %v571 = vpop.f32.mrf.mxu0
      %v572 = vadd.f32 %v377, %v571
      %v573 = vpop.f32.mrf.mxu0
      %v574 = vadd.f32 %v377, %v573
      %575 = vdwg.mxu0
      %576 = vmatpush.bf16.msra.mxu0 %v522
      %577 = vmatpush.bf16.msra.mxu0 %v518
      %578 = vmatpush.bf16.msra.mxu0 %v514
      %579 = vmatpush.bf16.msra.mxu0 %v510
      %580 = vmatpush.bf16.msra.mxu0 %v506
      %581 = vmatpush.bf16.msra.mxu0 %v502
      %582 = vmatpush.bf16.msra.mxu0 %v498
      %583 = vmatpush.bf16.msra.mxu0 %v494
      %584 = vmatmul.bf16.gmra.mxu0 %v393
      %v585 = vpop.f32.mrf.mxu0
      %v586 = vadd.f32 %v378, %v585
      %v587 = vpop.f32.mrf.mxu0
      %v588 = vadd.f32 %v378, %v587
      %589 = vmatmul.bf16.gmra.mxu0 %v394
      %v590 = vpop.f32.mrf.mxu0
      %v591 = vadd.f32 %v378, %v590
      %v592 = vpop.f32.mrf.mxu0
      %v593 = vadd.f32 %v378, %v592
      %594 = vdwg.mxu0
      %595 = vmatpush.bf16.msra.mxu0 %v523
      %596 = vmatpush.bf16.msra.mxu0 %v519
      %597 = vmatpush.bf16.msra.mxu0 %v515
      %598 = vmatpush.bf16.msra.mxu0 %v511
      %599 = vmatpush.bf16.msra.mxu0 %v507
      %600 = vmatpush.bf16.msra.mxu0 %v503
      %601 = vmatpush.bf16.msra.mxu0 %v499
      %602 = vmatpush.bf16.msra.mxu0 %v495
      %603 = vmatmul.bf16.gmra.mxu0 %v393
      %v604 = vpop.f32.mrf.mxu0
      %v605 = vadd.f32 %v379, %v604
      %v606 = vpop.f32.mrf.mxu0
      %v607 = vadd.f32 %v379, %v606
      %608 = vmatmul.bf16.gmra.mxu0 %v394
      %v609 = vpop.f32.mrf.mxu0
      %v610 = vadd.f32 %v379, %v609
      %v611 = vpop.f32.mrf.mxu0
      %v612 = vadd.f32 %v379, %v611
      %613 = vdwg.mxu0
      %614 = vmatpush.bf16.msra.mxu0 %v524
      %615 = vmatpush.bf16.msra.mxu0 %v520
      %616 = vmatpush.bf16.msra.mxu0 %v516
      %617 = vmatpush.bf16.msra.mxu0 %v512
      %618 = vmatpush.bf16.msra.mxu0 %v508
      %619 = vmatpush.bf16.msra.mxu0 %v504
      %620 = vmatpush.bf16.msra.mxu0 %v500
      %621 = vmatpush.bf16.msra.mxu0 %v496
      %622 = vmatmul.bf16.gmra.mxu0 %v393
      %v623 = vpop.f32.mrf.mxu0
      %v624 = vadd.f32 %v380, %v623
      %v625 = vpop.f32.mrf.mxu0
      %v626 = vadd.f32 %v380, %v625
      %627 = vmatmul.bf16.gmra.mxu0 %v394
      %v628 = vpop.f32.mrf.mxu0
      %v629 = vadd.f32 %v380, %v628
      %v630 = vpop.f32.mrf.mxu0
      %v631 = vadd.f32 %v380, %v630
      %632 = vdwg.mxu0
      %633 = vst [vmem:[#allocation5] sm:$0xff] %v567
      %634 = vst [vmem:[#allocation5 + $0x8] sm:$0xff] %v586
      %635 = vst [vmem:[#allocation5 + $0x10] sm:$0xff] %v605
      %636 = vst [vmem:[#allocation5 + $0x18] sm:$0xff] %v624
      %637 = vst [vmem:[#allocation5 + $0x20] sm:$0xff] %v569
      %638 = vst [vmem:[#allocation5 + $0x28] sm:$0xff] %v588
      %639 = vst [vmem:[#allocation5 + $0x30] sm:$0xff] %v607
      %640 = vst [vmem:[#allocation5 + $0x38] sm:$0xff] %v626
      %641 = vst [vmem:[#allocation5 + $0x40] sm:$0xff] %v572
      %642 = vst [vmem:[#allocation5 + $0x48] sm:$0xff] %v591
      %643 = vst [vmem:[#allocation5 + $0x50] sm:$0xff] %v610
      %644 = vst [vmem:[#allocation5 + $0x58] sm:$0xff] %v629
      %645 = vst [vmem:[#allocation5 + $0x60] sm:$0xff] %v574
      %646 = vst [vmem:[#allocation5 + $0x68] sm:$0xff] %v593
      %647 = vst [vmem:[#allocation5 + $0x70] sm:$0xff] %v612
      %648 = vst [vmem:[#allocation5 + $0x78] sm:$0xff] %v631
      %v649 = vld [vmem:[%s2] sm:$0xff]
      %v650 = vld [vmem:[%s2 + $0x8] sm:$0xff]
      %v651 = vld [vmem:[%s2 + $0x10] sm:$0xff]
      %v652 = vld [vmem:[%s2 + $0x18] sm:$0xff]
      %v653 = vld [vmem:[%s2 + $0x20] sm:$0xff]
      %v654 = vld [vmem:[%s2 + $0x28] sm:$0xff]
      %v655 = vld [vmem:[%s2 + $0x30] sm:$0xff]
      %v656 = vld [vmem:[%s2 + $0x38] sm:$0xff]
      %v657 = vld [vmem:[%s2 + $0x40] sm:$0xff]
      %v658 = vld [vmem:[%s2 + $0x48] sm:$0xff]
      %v659 = vld [vmem:[%s2 + $0x50] sm:$0xff]
      %v660 = vld [vmem:[%s2 + $0x58] sm:$0xff]
      %v661 = vld [vmem:[%s2 + $0x60] sm:$0xff]
      %v662 = vld [vmem:[%s2 + $0x68] sm:$0xff]
      %v663 = vld [vmem:[%s2 + $0x70] sm:$0xff]
      %v664 = vld [vmem:[%s2 + $0x78] sm:$0xff]
      %v665 = vld [vmem:[%s2 + $0x80] sm:$0xff]
      %v666 = vld [vmem:[%s2 + $0x88] sm:$0xff]
      %v667 = vld [vmem:[%s2 + $0x90] sm:$0xff]
      %v668 = vld [vmem:[%s2 + $0x98] sm:$0xff]
      %v669 = vld [vmem:[%s2 + $0xa0] sm:$0xff]
      %v670 = vld [vmem:[%s2 + $0xa8] sm:$0xff]
      %v671 = vld [vmem:[%s2 + $0xb0] sm:$0xff]
      %v672 = vld [vmem:[%s2 + $0xb8] sm:$0xff]
      %v673 = vld [vmem:[%s2 + $0xc0] sm:$0xff]
      %v674 = vld [vmem:[%s2 + $0xc8] sm:$0xff]
      %v675 = vld [vmem:[%s2 + $0xd0] sm:$0xff]
      %v676 = vld [vmem:[%s2 + $0xd8] sm:$0xff]
      %v677 = vld [vmem:[%s2 + $0xe0] sm:$0xff]
      %v678 = vld [vmem:[%s2 + $0xe8] sm:$0xff]
      %v679 = vld [vmem:[%s2 + $0xf0] sm:$0xff]
      %v680 = vld [vmem:[%s2 + $0xf8] sm:$0xff]
      %v681 = vld [vmem:[%s3] sm:$0xff]
      %v682 = vld [vmem:[%s3 + $0x8] sm:$0xff]
      %v683 = vld [vmem:[%s3 + $0x10] sm:$0xff]
      %v684 = vld [vmem:[%s3 + $0x18] sm:$0xff]
      %v685 = vld [vmem:[%s3 + $0x20] sm:$0xff]
      %v686 = vld [vmem:[%s3 + $0x28] sm:$0xff]
      %v687 = vld [vmem:[%s3 + $0x30] sm:$0xff]
      %v688 = vld [vmem:[%s3 + $0x38] sm:$0xff]
      %v689 = vld [vmem:[%s3 + $0x40] sm:$0xff]
      %v690 = vld [vmem:[%s3 + $0x48] sm:$0xff]
      %v691 = vld [vmem:[%s3 + $0x50] sm:$0xff]
      %v692 = vld [vmem:[%s3 + $0x58] sm:$0xff]
      %v693 = vld [vmem:[%s3 + $0x60] sm:$0xff]
      %v694 = vld [vmem:[%s3 + $0x68] sm:$0xff]
      %v695 = vld [vmem:[%s3 + $0x70] sm:$0xff]
      %v696 = vld [vmem:[%s3 + $0x78] sm:$0xff]
      %v697 = vld [vmem:[%s3 + $0x80] sm:$0xff]
      %v698 = vld [vmem:[%s3 + $0x88] sm:$0xff]
      %v699 = vld [vmem:[%s3 + $0x90] sm:$0xff]
      %v700 = vld [vmem:[%s3 + $0x98] sm:$0xff]
      %v701 = vld [vmem:[%s3 + $0xa0] sm:$0xff]
      %v702 = vld [vmem:[%s3 + $0xa8] sm:$0xff]
      %v703 = vld [vmem:[%s3 + $0xb0] sm:$0xff]
      %v704 = vld [vmem:[%s3 + $0xb8] sm:$0xff]
      %v705 = vld [vmem:[%s3 + $0xc0] sm:$0xff]
      %v706 = vld [vmem:[%s3 + $0xc8] sm:$0xff]
      %v707 = vld [vmem:[%s3 + $0xd0] sm:$0xff]
      %v708 = vld [vmem:[%s3 + $0xd8] sm:$0xff]
      %v709 = vld [vmem:[%s3 + $0xe0] sm:$0xff]
      %v710 = vld [vmem:[%s3 + $0xe8] sm:$0xff]
      %v711 = vld [vmem:[%s3 + $0xf0] sm:$0xff]
      %v712 = vld [vmem:[%s3 + $0xf8] sm:$0xff]
      %v713 = vld [vmem:[%s3 + $0x100] sm:$0xff]
      %v714 = vld [vmem:[%s3 + $0x108] sm:$0xff]
      %v715 = vld [vmem:[%s3 + $0x110] sm:$0xff]
      %v716 = vld [vmem:[%s3 + $0x118] sm:$0xff]
      %v717 = vld [vmem:[%s3 + $0x120] sm:$0xff]
      %v718 = vld [vmem:[%s3 + $0x128] sm:$0xff]
      %v719 = vld [vmem:[%s3 + $0x130] sm:$0xff]
      %v720 = vld [vmem:[%s3 + $0x138] sm:$0xff]
      %v721 = vld [vmem:[%s3 + $0x140] sm:$0xff]
      %v722 = vld [vmem:[%s3 + $0x148] sm:$0xff]
      %v723 = vld [vmem:[%s3 + $0x150] sm:$0xff]
      %v724 = vld [vmem:[%s3 + $0x158] sm:$0xff]
      %v725 = vld [vmem:[%s3 + $0x160] sm:$0xff]
      %v726 = vld [vmem:[%s3 + $0x168] sm:$0xff]
      %v727 = vld [vmem:[%s3 + $0x170] sm:$0xff]
      %v728 = vld [vmem:[%s3 + $0x178] sm:$0xff]
      %v729 = vld [vmem:[%s3 + $0x180] sm:$0xff]
      %v730 = vld [vmem:[%s3 + $0x188] sm:$0xff]
      %v731 = vld [vmem:[%s3 + $0x190] sm:$0xff]
      %v732 = vld [vmem:[%s3 + $0x198] sm:$0xff]
      %v733 = vld [vmem:[%s3 + $0x1a0] sm:$0xff]
      %v734 = vld [vmem:[%s3 + $0x1a8] sm:$0xff]
      %v735 = vld [vmem:[%s3 + $0x1b0] sm:$0xff]
      %v736 = vld [vmem:[%s3 + $0x1b8] sm:$0xff]
      %v737 = vld [vmem:[%s3 + $0x1c0] sm:$0xff]
      %v738 = vld [vmem:[%s3 + $0x1c8] sm:$0xff]
      %v739 = vld [vmem:[%s3 + $0x1d0] sm:$0xff]
      %v740 = vld [vmem:[%s3 + $0x1d8] sm:$0xff]
      %v741 = vld [vmem:[%s3 + $0x1e0] sm:$0xff]
      %v742 = vld [vmem:[%s3 + $0x1e8] sm:$0xff]
      %v743 = vld [vmem:[%s3 + $0x1f0] sm:$0xff]
      %v744 = vld [vmem:[%s3 + $0x1f8] sm:$0xff]
      %s745 = scalar_lea.vmem %s4, 4
      %v746 = vld [vmem:[%s745] sm:$0xf]
      %v747 = vld [vmem:[#allocation2] sm:$0xff]
      %v748 = vld [vmem:[#allocation3] sm:$0xff]
      %s749 = scalar_lea.vmem [#allocation2], 8
      %v750 = vld [vmem:[%s749] sm:$0xff]
      %s751 = scalar_lea.vmem [#allocation3], 8
      %v752 = vld [vmem:[%s751] sm:$0xff]
      %v753 = vld [vmem:[#allocation5] sm:$0xff]
      %v754 = vld [vmem:[#allocation5 + $0x8] sm:$0xff]
      %v755 = vld [vmem:[#allocation5 + $0x10] sm:$0xff]
      %v756 = vld [vmem:[#allocation5 + $0x18] sm:$0xff]
      %v757 = vpack.c.bf16 %v747, %v747
      %v790 = vunpack.c.l.b16 %v649
      %v791 = vunpack.c.h.b16 %v649
      %v792 = vunpack.c.l.b16 %v650
      %v793 = vunpack.c.h.b16 %v650
      %v794 = vunpack.c.l.b16 %v651
      %v795 = vunpack.c.h.b16 %v651
      %v796 = vunpack.c.l.b16 %v652
      %v797 = vunpack.c.h.b16 %v652
      %v798 = vunpack.c.l.b16 %v653
      %v799 = vunpack.c.h.b16 %v653
      %v800 = vunpack.c.l.b16 %v654
      %v801 = vunpack.c.h.b16 %v654
      %v802 = vunpack.c.l.b16 %v655
      %v803 = vunpack.c.h.b16 %v655
      %v804 = vunpack.c.l.b16 %v656
      %v805 = vunpack.c.h.b16 %v656
      %v806 = vunpack.c.l.b16 %v657
      %v807 = vunpack.c.h.b16 %v657
      %v808 = vunpack.c.l.b16 %v658
      %v809 = vunpack.c.h.b16 %v658
      %v810 = vunpack.c.l.b16 %v659
      %v811 = vunpack.c.h.b16 %v659
      %v812 = vunpack.c.l.b16 %v660
      %v813 = vunpack.c.h.b16 %v660
      %v814 = vunpack.c.l.b16 %v661
      %v815 = vunpack.c.h.b16 %v661
      %v816 = vunpack.c.l.b16 %v662
      %v817 = vunpack.c.h.b16 %v662
      %v818 = vunpack.c.l.b16 %v663
      %v819 = vunpack.c.h.b16 %v663
      %v820 = vunpack.c.l.b16 %v664
      %v821 = vunpack.c.h.b16 %v664
      %v822 = vunpack.c.l.b16 %v665
      %v823 = vunpack.c.h.b16 %v665
      %v824 = vunpack.c.l.b16 %v666
      %v825 = vunpack.c.h.b16 %v666
      %v826 = vunpack.c.l.b16 %v667
      %v827 = vunpack.c.h.b16 %v667
      %v828 = vunpack.c.l.b16 %v668
      %v829 = vunpack.c.h.b16 %v668
      %v830 = vunpack.c.l.b16 %v669
      %v831 = vunpack.c.h.b16 %v669
      %v832 = vunpack.c.l.b16 %v670
      %v833 = vunpack.c.h.b16 %v670
      %v834 = vunpack.c.l.b16 %v671
      %v835 = vunpack.c.h.b16 %v671
      %v836 = vunpack.c.l.b16 %v672
      %v837 = vunpack.c.h.b16 %v672
      %v838 = vunpack.c.l.b16 %v673
      %v839 = vunpack.c.h.b16 %v673
      %v840 = vunpack.c.l.b16 %v674
      %v841 = vunpack.c.h.b16 %v674
      %v842 = vunpack.c.l.b16 %v675
      %v843 = vunpack.c.h.b16 %v675
      %v844 = vunpack.c.l.b16 %v676
      %v845 = vunpack.c.h.b16 %v676
      %v846 = vunpack.c.l.b16 %v677
      %v847 = vunpack.c.h.b16 %v677
      %v848 = vunpack.c.l.b16 %v678
      %v849 = vunpack.c.h.b16 %v678
      %v850 = vunpack.c.l.b16 %v679
      %v851 = vunpack.c.h.b16 %v679
      %v852 = vunpack.c.l.b16 %v680
      %v853 = vunpack.c.h.b16 %v680
      %v854 = vpack.c.b16 %v794, %v790
      %v855 = vpack.c.b16 %v795, %v791
      %v856 = vpack.c.b16 %v796, %v792
      %v857 = vpack.c.b16 %v797, %v793
      %v858 = vpack.c.b16 %v802, %v798
      %v859 = vpack.c.b16 %v803, %v799
      %v860 = vpack.c.b16 %v804, %v800
      %v861 = vpack.c.b16 %v805, %v801
      %v862 = vpack.c.b16 %v810, %v806
      %v863 = vpack.c.b16 %v811, %v807
      %v864 = vpack.c.b16 %v812, %v808
      %v865 = vpack.c.b16 %v813, %v809
      %v866 = vpack.c.b16 %v818, %v814
      %v867 = vpack.c.b16 %v819, %v815
      %v868 = vpack.c.b16 %v820, %v816
      %v869 = vpack.c.b16 %v821, %v817
      %v870 = vpack.c.b16 %v826, %v822
      %v871 = vpack.c.b16 %v827, %v823
      %v872 = vpack.c.b16 %v828, %v824
      %v873 = vpack.c.b16 %v829, %v825
      %v874 = vpack.c.b16 %v834, %v830
      %v875 = vpack.c.b16 %v835, %v831
      %v876 = vpack.c.b16 %v836, %v832
      %v877 = vpack.c.b16 %v837, %v833
      %v878 = vpack.c.b16 %v842, %v838
      %v879 = vpack.c.b16 %v843, %v839
      %v880 = vpack.c.b16 %v844, %v840
      %v881 = vpack.c.b16 %v845, %v841
      %v882 = vpack.c.b16 %v850, %v846
      %v883 = vpack.c.b16 %v851, %v847
      %v884 = vpack.c.b16 %v852, %v848
      %v885 = vpack.c.b16 %v853, %v849
      %918 = vmatpush.bf16.msra.mxu0 %v882
      %919 = vmatpush.bf16.msra.mxu0 %v878
      %920 = vmatpush.bf16.msra.mxu0 %v874
      %921 = vmatpush.bf16.msra.mxu0 %v870
      %922 = vmatpush.bf16.msra.mxu0 %v866
      %923 = vmatpush.bf16.msra.mxu0 %v862
      %924 = vmatpush.bf16.msra.mxu0 %v858
      %925 = vmatpush.bf16.msra.mxu0 %v854
      %926 = vmatmul.bf16.gmra.mxu0 %v757
      %v927 = vpop.f32.mrf.mxu0
      %v928 = vadd.f32 0.0, %v927
      %v929 = vpop.f32.mrf.mxu0
      %930 = vdwg.mxu0
      %931 = vmatpush.bf16.msra.mxu0 %v883
      %932 = vmatpush.bf16.msra.mxu0 %v879
      %933 = vmatpush.bf16.msra.mxu0 %v875
      %934 = vmatpush.bf16.msra.mxu0 %v871
      %935 = vmatpush.bf16.msra.mxu0 %v867
      %936 = vmatpush.bf16.msra.mxu0 %v863
      %937 = vmatpush.bf16.msra.mxu0 %v859
      %938 = vmatpush.bf16.msra.mxu0 %v855
      %939 = vmatmul.bf16.gmra.mxu0 %v757
      %v940 = vpop.f32.mrf.mxu0
      %v941 = vadd.f32 0.0, %v940
      %v942 = vpop.f32.mrf.mxu0
      %943 = vdwg.mxu0
      %944 = vmatpush.bf16.msra.mxu0 %v884
      %945 = vmatpush.bf16.msra.mxu0 %v880
      %946 = vmatpush.bf16.msra.mxu0 %v876
      %947 = vmatpush.bf16.msra.mxu0 %v872
      %948 = vmatpush.bf16.msra.mxu0 %v868
      %949 = vmatpush.bf16.msra.mxu0 %v864
      %950 = vmatpush.bf16.msra.mxu0 %v860
      %951 = vmatpush.bf16.msra.mxu0 %v856
      %952 = vmatmul.bf16.gmra.mxu0 %v757
      %v953 = vpop.f32.mrf.mxu0
      %v954 = vadd.f32 0.0, %v953
      %v955 = vpop.f32.mrf.mxu0
      %956 = vdwg.mxu0
      %957 = vmatpush.bf16.msra.mxu0 %v885
      %958 = vmatpush.bf16.msra.mxu0 %v881
      %959 = vmatpush.bf16.msra.mxu0 %v877
      %960 = vmatpush.bf16.msra.mxu0 %v873
      %961 = vmatpush.bf16.msra.mxu0 %v869
      %962 = vmatpush.bf16.msra.mxu0 %v865
      %963 = vmatpush.bf16.msra.mxu0 %v861
      %964 = vmatpush.bf16.msra.mxu0 %v857
      %965 = vmatmul.bf16.gmra.mxu0 %v757
      %v966 = vpop.f32.mrf.mxu0
      %v967 = vadd.f32 0.0, %v966
      %v968 = vpop.f32.mrf.mxu0
      %969 = vdwg.mxu0
      %v970 = vadd.f32 %v753, %v928
      %v971 = vadd.f32 %v754, %v941
      %v972 = vadd.f32 %v755, %v954
      %v973 = vadd.f32 %v756, %v967
      %v974 = vxor.u32 %v970, 2147483648
      %v975 = vxor.u32 %v971, 2147483648
      %v976 = vxor.u32 %v972, 2147483648
      %v977 = vmul.f32 %v974, 1.442695
      %v978 = vpow.pop %v977
      %v979 = vmul.f32 %v975, 1.442695
      %v980 = vpow.pop %v979
      %v981 = vmul.f32 %v976, 1.442695
      %v982 = vpow.pop %v981
      %v983 = vadd.f32 %v978, 1.0
      %v984 = vadd.f32 %v980, 1.0
      %v985 = vadd.f32 %v982, 1.0
      %v986 = vrcp.pop %v983
      %v987 = vmul.f32 %v983, %v986
      %v988 = vsub.f32 1.0, %v987
      %v989 = vmul.f32 %v986, %v988
      %v990 = vadd.f32 %v986, %v989
      %vm991 = vweird.f32 %v983
      %vm992 = vweird.f32 %v986
      %vm993 = vmor %vm991, %vm992
      %v994 = vsel %vm993, %v986, %v990
      %v995 = vand.u32 2147483647, %v983
      %vm996 = vcmp.eq.f32.partialorder %v995, 8.507059e+37
      %v997 = vand.u32 %v983, 2147483648
      %v998 = vor.u32 1.1754944e-38, %v997
      %v999 = vsel %vm996, %v998, %v994
      %v1000 = vmul.f32 1.0, %v999
      %v1001 = vrcp.pop %v984
      %v1002 = vmul.f32 %v984, %v1001
      %v1003 = vsub.f32 1.0, %v1002
      %v1004 = vmul.f32 %v1001, %v1003
      %v1005 = vadd.f32 %v1001, %v1004
      %vm1006 = vweird.f32 %v984
      %vm1007 = vweird.f32 %v1001
      %vm1008 = vmor %vm1006, %vm1007
      %v1009 = vsel %vm1008, %v1001, %v1005
      %v1010 = vand.u32 2147483647, %v984
      %vm1011 = vcmp.eq.f32.partialorder %v1010, 8.507059e+37
      %v1012 = vand.u32 %v984, 2147483648
      %v1013 = vor.u32 1.1754944e-38, %v1012
      %v1014 = vsel %vm1011, %v1013, %v1009
      %v1015 = vmul.f32 1.0, %v1014
      %v1016 = vrcp.pop %v985
      %v1017 = vmul.f32 %v985, %v1016
      %v1018 = vsub.f32 1.0, %v1017
      %v1019 = vmul.f32 %v1016, %v1018
      %v1020 = vadd.f32 %v1016, %v1019
      %vm1021 = vweird.f32 %v985
      %vm1022 = vweird.f32 %v1016
      %vm1023 = vmor %vm1021, %vm1022
      %v1024 = vsel %vm1023, %v1016, %v1020
      %v1025 = vand.u32 2147483647, %v985
      %vm1026 = vcmp.eq.f32.partialorder %v1025, 8.507059e+37
      %v1027 = vand.u32 %v985, 2147483648
      %v1028 = vor.u32 1.1754944e-38, %v1027
      %v1029 = vsel %vm1026, %v1028, %v1024
      %v1030 = vmul.f32 1.0, %v1029
      %v1031 = vtanh.pop %v973
      %v1032 = vmul.f32 %v1015, %v748
      %v1033 = vmul.f32 %v1000, %v1031
      %v1034 = vadd.f32 %v1032, %v1033
      %v1035 = vtanh.pop %v1034
      %v1036 = vmul.f32 %v1030, %v1035
      %s1037 = scalar_lea.vmem [#allocation5], 32
      %v1038 = vld [vmem:[%s1037] sm:$0xff]
      %v1039 = vld [vmem:[%s1037 + $0x8] sm:$0xff]
      %v1040 = vld [vmem:[%s1037 + $0x10] sm:$0xff]
      %v1041 = vld [vmem:[%s1037 + $0x18] sm:$0xff]
      %v1042 = vpack.c.bf16 %v1036, %v1036
      %1043 = vmatpush.bf16.msra.mxu0 %v882
      %1044 = vmatpush.bf16.msra.mxu0 %v878
      %1045 = vmatpush.bf16.msra.mxu0 %v874
      %1046 = vmatpush.bf16.msra.mxu0 %v870
      %1047 = vmatpush.bf16.msra.mxu0 %v866
      %1048 = vmatpush.bf16.msra.mxu0 %v862
      %1049 = vmatpush.bf16.msra.mxu0 %v858
      %1050 = vmatpush.bf16.msra.mxu0 %v854
      %1051 = vmatmul.bf16.gmra.mxu0 %v1042
      %v1052 = vpop.f32.mrf.mxu0
      %v1053 = vadd.f32 0.0, %v1052
      %v1054 = vpop.f32.mrf.mxu0
      %1055 = vdwg.mxu0
      %1056 = vmatpush.bf16.msra.mxu0 %v883
      %1057 = vmatpush.bf16.msra.mxu0 %v879
      %1058 = vmatpush.bf16.msra.mxu0 %v875
      %1059 = vmatpush.bf16.msra.mxu0 %v871
      %1060 = vmatpush.bf16.msra.mxu0 %v867
      %1061 = vmatpush.bf16.msra.mxu0 %v863
      %1062 = vmatpush.bf16.msra.mxu0 %v859
      %1063 = vmatpush.bf16.msra.mxu0 %v855
      %1064 = vmatmul.bf16.gmra.mxu0 %v1042
      %v1065 = vpop.f32.mrf.mxu0
      %v1066 = vadd.f32 0.0, %v1065
      %v1067 = vpop.f32.mrf.mxu0
      %1068 = vdwg.mxu0
      %1069 = vmatpush.bf16.msra.mxu0 %v884
      %1070 = vmatpush.bf16.msra.mxu0 %v880
      %1071 = vmatpush.bf16.msra.mxu0 %v876
      %1072 = vmatpush.bf16.msra.mxu0 %v872
      %1073 = vmatpush.bf16.msra.mxu0 %v868
      %1074 = vmatpush.bf16.msra.mxu0 %v864
      %1075 = vmatpush.bf16.msra.mxu0 %v860
      %1076 = vmatpush.bf16.msra.mxu0 %v856
      %1077 = vmatmul.bf16.gmra.mxu0 %v1042
      %v1078 = vpop.f32.mrf.mxu0
      %v1079 = vadd.f32 0.0, %v1078
      %v1080 = vpop.f32.mrf.mxu0
      %1081 = vdwg.mxu0
      %1082 = vmatpush.bf16.msra.mxu0 %v885
      %1083 = vmatpush.bf16.msra.mxu0 %v881
      %1084 = vmatpush.bf16.msra.mxu0 %v877
      %1085 = vmatpush.bf16.msra.mxu0 %v873
      %1086 = vmatpush.bf16.msra.mxu0 %v869
      %1087 = vmatpush.bf16.msra.mxu0 %v865
      %1088 = vmatpush.bf16.msra.mxu0 %v861
      %1089 = vmatpush.bf16.msra.mxu0 %v857
      %1090 = vmatmul.bf16.gmra.mxu0 %v1042
      %v1091 = vpop.f32.mrf.mxu0
      %v1092 = vadd.f32 0.0, %v1091
      %v1093 = vpop.f32.mrf.mxu0
      %1094 = vdwg.mxu0
      %v1095 = vadd.f32 %v1038, %v1053
      %v1096 = vadd.f32 %v1039, %v1066
      %v1097 = vadd.f32 %v1040, %v1079
      %v1098 = vadd.f32 %v1041, %v1092
      %v1099 = vxor.u32 %v1095, 2147483648
      %v1100 = vxor.u32 %v1096, 2147483648
      %v1101 = vxor.u32 %v1097, 2147483648
      %v1102 = vmul.f32 %v1099, 1.442695
      %v1103 = vpow.pop %v1102
      %v1104 = vmul.f32 %v1100, 1.442695
      %v1105 = vpow.pop %v1104
      %v1106 = vmul.f32 %v1101, 1.442695
      %v1107 = vpow.pop %v1106
      %v1108 = vadd.f32 %v1103, 1.0
      %v1109 = vadd.f32 %v1105, 1.0
      %v1110 = vadd.f32 %v1107, 1.0
      %v1111 = vrcp.pop %v1108
      %v1112 = vmul.f32 %v1108, %v1111
      %v1113 = vsub.f32 1.0, %v1112
      %v1114 = vmul.f32 %v1111, %v1113
      %v1115 = vadd.f32 %v1111, %v1114
      %vm1116 = vweird.f32 %v1108
      %vm1117 = vweird.f32 %v1111
      %vm1118 = vmor %vm1116, %vm1117
      %v1119 = vsel %vm1118, %v1111, %v1115
      %v1120 = vand.u32 2147483647, %v1108
      %vm1121 = vcmp.eq.f32.partialorder %v1120, 8.507059e+37
      %v1122 = vand.u32 %v1108, 2147483648
      %v1123 = vor.u32 1.1754944e-38, %v1122
      %v1124 = vsel %vm1121, %v1123, %v1119
      %v1125 = vmul.f32 1.0, %v1124
      %v1126 = vrcp.pop %v1109
      %v1127 = vmul.f32 %v1109, %v1126
      %v1128 = vsub.f32 1.0, %v1127
      %v1129 = vmul.f32 %v1126, %v1128
      %v1130 = vadd.f32 %v1126, %v1129
      %vm1131 = vweird.f32 %v1109
      %vm1132 = vweird.f32 %v1126
      %vm1133 = vmor %vm1131, %vm1132
      %v1134 = vsel %vm1133, %v1126, %v1130
      %v1135 = vand.u32 2147483647, %v1109
      %vm1136 = vcmp.eq.f32.partialorder %v1135, 8.507059e+37
      %v1137 = vand.u32 %v1109, 2147483648
      %v1138 = vor.u32 1.1754944e-38, %v1137
      %v1139 = vsel %vm1136, %v1138, %v1134
      %v1140 = vmul.f32 1.0, %v1139
      %v1141 = vrcp.pop %v1110
      %v1142 = vmul.f32 %v1110, %v1141
      %v1143 = vsub.f32 1.0, %v1142
      %v1144 = vmul.f32 %v1141, %v1143
      %v1145 = vadd.f32 %v1141, %v1144
      %vm1146 = vweird.f32 %v1110
      %vm1147 = vweird.f32 %v1141
      %vm1148 = vmor %vm1146, %vm1147
      %v1149 = vsel %vm1148, %v1141, %v1145
      %v1150 = vand.u32 2147483647, %v1110
      %vm1151 = vcmp.eq.f32.partialorder %v1150, 8.507059e+37
      %v1152 = vand.u32 %v1110, 2147483648
      %v1153 = vor.u32 1.1754944e-38, %v1152
      %v1154 = vsel %vm1151, %v1153, %v1149
      %v1155 = vmul.f32 1.0, %v1154
      %v1156 = vtanh.pop %v1098
      %v1157 = vmul.f32 %v1140, %v1034
      %v1158 = vmul.f32 %v1125, %v1156
      %v1159 = vadd.f32 %v1157, %v1158
      %v1160 = vtanh.pop %v1159
      %v1161 = vmul.f32 %v1155, %v1160
      %v1162 = vpack.c.bf16 %v750, %v750
      %v1164 = vperm.slane %v746, 0
      %v1165 = vperm.slane %v746, 1
      %v1166 = vperm.slane %v746, 2
      %v1167 = vperm.slane %v746, 3
      %v1236 = vunpack.c.l.b16 %v681
      %v1237 = vunpack.c.h.b16 %v681
      %v1238 = vunpack.c.l.b16 %v682
      %v1239 = vunpack.c.h.b16 %v682
      %v1240 = vunpack.c.l.b16 %v683
      %v1241 = vunpack.c.h.b16 %v683
      %v1242 = vunpack.c.l.b16 %v684
      %v1243 = vunpack.c.h.b16 %v684
      %v1244 = vunpack.c.l.b16 %v685
      %v1245 = vunpack.c.h.b16 %v685
      %v1246 = vunpack.c.l.b16 %v686
      %v1247 = vunpack.c.h.b16 %v686
      %v1248 = vunpack.c.l.b16 %v687
      %v1249 = vunpack.c.h.b16 %v687
      %v1250 = vunpack.c.l.b16 %v688
      %v1251 = vunpack.c.h.b16 %v688
      %v1252 = vunpack.c.l.b16 %v689
      %v1253 = vunpack.c.h.b16 %v689
      %v1254 = vunpack.c.l.b16 %v690
      %v1255 = vunpack.c.h.b16 %v690
      %v1256 = vunpack.c.l.b16 %v691
      %v1257 = vunpack.c.h.b16 %v691
      %v1258 = vunpack.c.l.b16 %v692
      %v1259 = vunpack.c.h.b16 %v692
      %v1260 = vunpack.c.l.b16 %v693
      %v1261 = vunpack.c.h.b16 %v693
      %v1262 = vunpack.c.l.b16 %v694
      %v1263 = vunpack.c.h.b16 %v694
      %v1264 = vunpack.c.l.b16 %v695
      %v1265 = vunpack.c.h.b16 %v695
      %v1266 = vunpack.c.l.b16 %v696
      %v1267 = vunpack.c.h.b16 %v696
      %v1268 = vunpack.c.l.b16 %v697
      %v1269 = vunpack.c.h.b16 %v697
      %v1270 = vunpack.c.l.b16 %v698
      %v1271 = vunpack.c.h.b16 %v698
      %v1272 = vunpack.c.l.b16 %v699
      %v1273 = vunpack.c.h.b16 %v699
      %v1274 = vunpack.c.l.b16 %v700
      %v1275 = vunpack.c.h.b16 %v700
      %v1276 = vunpack.c.l.b16 %v701
      %v1277 = vunpack.c.h.b16 %v701
      %v1278 = vunpack.c.l.b16 %v702
      %v1279 = vunpack.c.h.b16 %v702
      %v1280 = vunpack.c.l.b16 %v703
      %v1281 = vunpack.c.h.b16 %v703
      %v1282 = vunpack.c.l.b16 %v704
      %v1283 = vunpack.c.h.b16 %v704
      %v1284 = vunpack.c.l.b16 %v705
      %v1285 = vunpack.c.h.b16 %v705
      %v1286 = vunpack.c.l.b16 %v706
      %v1287 = vunpack.c.h.b16 %v706
      %v1288 = vunpack.c.l.b16 %v707
      %v1289 = vunpack.c.h.b16 %v707
      %v1290 = vunpack.c.l.b16 %v708
      %v1291 = vunpack.c.h.b16 %v708
      %v1292 = vunpack.c.l.b16 %v709
      %v1293 = vunpack.c.h.b16 %v709
      %v1294 = vunpack.c.l.b16 %v710
      %v1295 = vunpack.c.h.b16 %v710
      %v1296 = vunpack.c.l.b16 %v711
      %v1297 = vunpack.c.h.b16 %v711
      %v1298 = vunpack.c.l.b16 %v712
      %v1299 = vunpack.c.h.b16 %v712
      %v1300 = vunpack.c.l.b16 %v713
      %v1301 = vunpack.c.h.b16 %v713
      %v1302 = vunpack.c.l.b16 %v714
      %v1303 = vunpack.c.h.b16 %v714
      %v1304 = vunpack.c.l.b16 %v715
      %v1305 = vunpack.c.h.b16 %v715
      %v1306 = vunpack.c.l.b16 %v716
      %v1307 = vunpack.c.h.b16 %v716
      %v1308 = vunpack.c.l.b16 %v717
      %v1309 = vunpack.c.h.b16 %v717
      %v1310 = vunpack.c.l.b16 %v718
      %v1311 = vunpack.c.h.b16 %v718
      %v1312 = vunpack.c.l.b16 %v719
      %v1313 = vunpack.c.h.b16 %v719
      %v1314 = vunpack.c.l.b16 %v720
      %v1315 = vunpack.c.h.b16 %v720
      %v1316 = vunpack.c.l.b16 %v721
      %v1317 = vunpack.c.h.b16 %v721
      %v1318 = vunpack.c.l.b16 %v722
      %v1319 = vunpack.c.h.b16 %v722
      %v1320 = vunpack.c.l.b16 %v723
      %v1321 = vunpack.c.h.b16 %v723
      %v1322 = vunpack.c.l.b16 %v724
      %v1323 = vunpack.c.h.b16 %v724
      %v1324 = vunpack.c.l.b16 %v725
      %v1325 = vunpack.c.h.b16 %v725
      %v1326 = vunpack.c.l.b16 %v726
      %v1327 = vunpack.c.h.b16 %v726
      %v1328 = vunpack.c.l.b16 %v727
      %v1329 = vunpack.c.h.b16 %v727
      %v1330 = vunpack.c.l.b16 %v728
      %v1331 = vunpack.c.h.b16 %v728
      %v1332 = vunpack.c.l.b16 %v729
      %v1333 = vunpack.c.h.b16 %v729
      %v1334 = vunpack.c.l.b16 %v730
      %v1335 = vunpack.c.h.b16 %v730
      %v1336 = vunpack.c.l.b16 %v731
      %v1337 = vunpack.c.h.b16 %v731
      %v1338 = vunpack.c.l.b16 %v732
      %v1339 = vunpack.c.h.b16 %v732
      %v1340 = vunpack.c.l.b16 %v733
      %v1341 = vunpack.c.h.b16 %v733
      %v1342 = vunpack.c.l.b16 %v734
      %v1343 = vunpack.c.h.b16 %v734
      %v1344 = vunpack.c.l.b16 %v735
      %v1345 = vunpack.c.h.b16 %v735
      %v1346 = vunpack.c.l.b16 %v736
      %v1347 = vunpack.c.h.b16 %v736
      %v1348 = vunpack.c.l.b16 %v737
      %v1349 = vunpack.c.h.b16 %v737
      %v1350 = vunpack.c.l.b16 %v738
      %v1351 = vunpack.c.h.b16 %v738
      %v1352 = vunpack.c.l.b16 %v739
      %v1353 = vunpack.c.h.b16 %v739
      %v1354 = vunpack.c.l.b16 %v740
      %v1355 = vunpack.c.h.b16 %v740
      %v1356 = vunpack.c.l.b16 %v741
      %v1357 = vunpack.c.h.b16 %v741
      %v1358 = vunpack.c.l.b16 %v742
      %v1359 = vunpack.c.h.b16 %v742
      %v1360 = vunpack.c.l.b16 %v743
      %v1361 = vunpack.c.h.b16 %v743
      %v1362 = vunpack.c.l.b16 %v744
      %v1363 = vunpack.c.h.b16 %v744
      %v1364 = vpack.c.b16 %v1240, %v1236
      %v1365 = vpack.c.b16 %v1241, %v1237
      %v1366 = vpack.c.b16 %v1242, %v1238
      %v1367 = vpack.c.b16 %v1243, %v1239
      %v1368 = vpack.c.b16 %v1248, %v1244
      %v1369 = vpack.c.b16 %v1249, %v1245
      %v1370 = vpack.c.b16 %v1250, %v1246
      %v1371 = vpack.c.b16 %v1251, %v1247
      %v1372 = vpack.c.b16 %v1256, %v1252
      %v1373 = vpack.c.b16 %v1257, %v1253
      %v1374 = vpack.c.b16 %v1258, %v1254
      %v1375 = vpack.c.b16 %v1259, %v1255
      %v1376 = vpack.c.b16 %v1264, %v1260
      %v1377 = vpack.c.b16 %v1265, %v1261
      %v1378 = vpack.c.b16 %v1266, %v1262
      %v1379 = vpack.c.b16 %v1267, %v1263
      %v1380 = vpack.c.b16 %v1272, %v1268
      %v1381 = vpack.c.b16 %v1273, %v1269
      %v1382 = vpack.c.b16 %v1274, %v1270
      %v1383 = vpack.c.b16 %v1275, %v1271
      %v1384 = vpack.c.b16 %v1280, %v1276
      %v1385 = vpack.c.b16 %v1281, %v1277
      %v1386 = vpack.c.b16 %v1282, %v1278
      %v1387 = vpack.c.b16 %v1283, %v1279
      %v1388 = vpack.c.b16 %v1288, %v1284
      %v1389 = vpack.c.b16 %v1289, %v1285
      %v1390 = vpack.c.b16 %v1290, %v1286
      %v1391 = vpack.c.b16 %v1291, %v1287
      %v1392 = vpack.c.b16 %v1296, %v1292
      %v1393 = vpack.c.b16 %v1297, %v1293
      %v1394 = vpack.c.b16 %v1298, %v1294
      %v1395 = vpack.c.b16 %v1299, %v1295
      %v1396 = vpack.c.b16 %v1304, %v1300
      %v1397 = vpack.c.b16 %v1305, %v1301
      %v1398 = vpack.c.b16 %v1306, %v1302
      %v1399 = vpack.c.b16 %v1307, %v1303
      %v1400 = vpack.c.b16 %v1312, %v1308
      %v1401 = vpack.c.b16 %v1313, %v1309
      %v1402 = vpack.c.b16 %v1314, %v1310
      %v1403 = vpack.c.b16 %v1315, %v1311
      %v1404 = vpack.c.b16 %v1320, %v1316
      %v1405 = vpack.c.b16 %v1321, %v1317
      %v1406 = vpack.c.b16 %v1322, %v1318
      %v1407 = vpack.c.b16 %v1323, %v1319
      %v1408 = vpack.c.b16 %v1328, %v1324
      %v1409 = vpack.c.b16 %v1329, %v1325
      %v1410 = vpack.c.b16 %v1330, %v1326
      %v1411 = vpack.c.b16 %v1331, %v1327
      %v1412 = vpack.c.b16 %v1336, %v1332
      %v1413 = vpack.c.b16 %v1337, %v1333
      %v1414 = vpack.c.b16 %v1338, %v1334
      %v1415 = vpack.c.b16 %v1339, %v1335
      %v1416 = vpack.c.b16 %v1344, %v1340
      %v1417 = vpack.c.b16 %v1345, %v1341
      %v1418 = vpack.c.b16 %v1346, %v1342
      %v1419 = vpack.c.b16 %v1347, %v1343
      %v1420 = vpack.c.b16 %v1352, %v1348
      %v1421 = vpack.c.b16 %v1353, %v1349
      %v1422 = vpack.c.b16 %v1354, %v1350
      %v1423 = vpack.c.b16 %v1355, %v1351
      %v1424 = vpack.c.b16 %v1360, %v1356
      %v1425 = vpack.c.b16 %v1361, %v1357
      %v1426 = vpack.c.b16 %v1362, %v1358
      %v1427 = vpack.c.b16 %v1363, %v1359
      %1492 = vmatpush.bf16.msra.mxu0 %v1392
      %1493 = vmatpush.bf16.msra.mxu0 %v1388
      %1494 = vmatpush.bf16.msra.mxu0 %v1384
      %1495 = vmatpush.bf16.msra.mxu0 %v1380
      %1496 = vmatpush.bf16.msra.mxu0 %v1376
      %1497 = vmatpush.bf16.msra.mxu0 %v1372
      %1498 = vmatpush.bf16.msra.mxu0 %v1368
      %1499 = vmatpush.bf16.msra.mxu0 %v1364
      %1500 = vmatmul.bf16.gmra.mxu0 %v1042
      %v1501 = vpop.f32.mrf.mxu0
      %v1502 = vadd.f32 %v1164, %v1501
      %v1503 = vpop.f32.mrf.mxu0
      %1504 = vdwg.mxu0
      %1505 = vmatpush.bf16.msra.mxu0 %v1424
      %1506 = vmatpush.bf16.msra.mxu0 %v1420
      %1507 = vmatpush.bf16.msra.mxu0 %v1416
      %1508 = vmatpush.bf16.msra.mxu0 %v1412
      %1509 = vmatpush.bf16.msra.mxu0 %v1408
      %1510 = vmatpush.bf16.msra.mxu0 %v1404
      %1511 = vmatpush.bf16.msra.mxu0 %v1400
      %1512 = vmatpush.bf16.msra.mxu0 %v1396
      %1513 = vmatmul.bf16.gmra.mxu0 %v1162
      %v1514 = vpop.f32.mrf.mxu0
      %v1515 = vadd.f32 %v1502, %v1514
      %v1516 = vpop.f32.mrf.mxu0
      %1517 = vdwg.mxu0
      %1518 = vmatpush.bf16.msra.mxu0 %v1393
      %1519 = vmatpush.bf16.msra.mxu0 %v1389
      %1520 = vmatpush.bf16.msra.mxu0 %v1385
      %1521 = vmatpush.bf16.msra.mxu0 %v1381
      %1522 = vmatpush.bf16.msra.mxu0 %v1377
      %1523 = vmatpush.bf16.msra.mxu0 %v1373
      %1524 = vmatpush.bf16.msra.mxu0 %v1369
      %1525 = vmatpush.bf16.msra.mxu0 %v1365
      %1526 = vmatmul.bf16.gmra.mxu0 %v1042
      %v1527 = vpop.f32.mrf.mxu0
      %v1528 = vadd.f32 %v1165, %v1527
      %v1529 = vpop.f32.mrf.mxu0
      %1530 = vdwg.mxu0
      %1531 = vmatpush.bf16.msra.mxu0 %v1425
      %1532 = vmatpush.bf16.msra.mxu0 %v1421
      %1533 = vmatpush.bf16.msra.mxu0 %v1417
      %1534 = vmatpush.bf16.msra.mxu0 %v1413
      %1535 = vmatpush.bf16.msra.mxu0 %v1409
      %1536 = vmatpush.bf16.msra.mxu0 %v1405
      %1537 = vmatpush.bf16.msra.mxu0 %v1401
      %1538 = vmatpush.bf16.msra.mxu0 %v1397
      %1539 = vmatmul.bf16.gmra.mxu0 %v1162
      %v1540 = vpop.f32.mrf.mxu0
      %v1541 = vadd.f32 %v1528, %v1540
      %v1542 = vpop.f32.mrf.mxu0
      %1543 = vdwg.mxu0
      %1544 = vmatpush.bf16.msra.mxu0 %v1394
      %1545 = vmatpush.bf16.msra.mxu0 %v1390
      %1546 = vmatpush.bf16.msra.mxu0 %v1386
      %1547 = vmatpush.bf16.msra.mxu0 %v1382
      %1548 = vmatpush.bf16.msra.mxu0 %v1378
      %1549 = vmatpush.bf16.msra.mxu0 %v1374
      %1550 = vmatpush.bf16.msra.mxu0 %v1370
      %1551 = vmatpush.bf16.msra.mxu0 %v1366
      %1552 = vmatmul.bf16.gmra.mxu0 %v1042
      %v1553 = vpop.f32.mrf.mxu0
      %v1554 = vadd.f32 %v1166, %v1553
      %v1555 = vpop.f32.mrf.mxu0
      %1556 = vdwg.mxu0
      %1557 = vmatpush.bf16.msra.mxu0 %v1426
      %1558 = vmatpush.bf16.msra.mxu0 %v1422
      %1559 = vmatpush.bf16.msra.mxu0 %v1418
      %1560 = vmatpush.bf16.msra.mxu0 %v1414
      %1561 = vmatpush.bf16.msra.mxu0 %v1410
      %1562 = vmatpush.bf16.msra.mxu0 %v1406
      %1563 = vmatpush.bf16.msra.mxu0 %v1402
      %1564 = vmatpush.bf16.msra.mxu0 %v1398
      %1565 = vmatmul.bf16.gmra.mxu0 %v1162
      %v1566 = vpop.f32.mrf.mxu0
      %v1567 = vadd.f32 %v1554, %v1566
      %v1568 = vpop.f32.mrf.mxu0
      %1569 = vdwg.mxu0
      %1570 = vmatpush.bf16.msra.mxu0 %v1395
      %1571 = vmatpush.bf16.msra.mxu0 %v1391
      %1572 = vmatpush.bf16.msra.mxu0 %v1387
      %1573 = vmatpush.bf16.msra.mxu0 %v1383
      %1574 = vmatpush.bf16.msra.mxu0 %v1379
      %1575 = vmatpush.bf16.msra.mxu0 %v1375
      %1576 = vmatpush.bf16.msra.mxu0 %v1371
      %1577 = vmatpush.bf16.msra.mxu0 %v1367
      %1578 = vmatmul.bf16.gmra.mxu0 %v1042
      %v1579 = vpop.f32.mrf.mxu0
      %v1580 = vadd.f32 %v1167, %v1579
      %v1581 = vpop.f32.mrf.mxu0
      %1582 = vdwg.mxu0
      %1583 = vmatpush.bf16.msra.mxu0 %v1427
      %1584 = vmatpush.bf16.msra.mxu0 %v1423
      %1585 = vmatpush.bf16.msra.mxu0 %v1419
      %1586 = vmatpush.bf16.msra.mxu0 %v1415
      %1587 = vmatpush.bf16.msra.mxu0 %v1411
      %1588 = vmatpush.bf16.msra.mxu0 %v1407
      %1589 = vmatpush.bf16.msra.mxu0 %v1403
      %1590 = vmatpush.bf16.msra.mxu0 %v1399
      %1591 = vmatmul.bf16.gmra.mxu0 %v1162
      %v1592 = vpop.f32.mrf.mxu0
      %v1593 = vadd.f32 %v1580, %v1592
      %v1594 = vpop.f32.mrf.mxu0
      %1595 = vdwg.mxu0
      %v1596 = vxor.u32 %v1515, 2147483648
      %v1597 = vxor.u32 %v1541, 2147483648
      %v1598 = vxor.u32 %v1567, 2147483648
      %v1599 = vmul.f32 %v1596, 1.442695
      %v1600 = vpow.pop %v1599
      %v1601 = vmul.f32 %v1597, 1.442695
      %v1602 = vpow.pop %v1601
      %v1603 = vmul.f32 %v1598, 1.442695
      %v1604 = vpow.pop %v1603
      %v1605 = vadd.f32 %v1600, 1.0
      %v1606 = vadd.f32 %v1602, 1.0
      %v1607 = vadd.f32 %v1604, 1.0
      %v1608 = vrcp.pop %v1605
      %v1609 = vmul.f32 %v1605, %v1608
      %v1610 = vsub.f32 1.0, %v1609
      %v1611 = vmul.f32 %v1608, %v1610
      %v1612 = vadd.f32 %v1608, %v1611
      %vm1613 = vweird.f32 %v1605
      %vm1614 = vweird.f32 %v1608
      %vm1615 = vmor %vm1613, %vm1614
      %v1616 = vsel %vm1615, %v1608, %v1612
      %v1617 = vand.u32 2147483647, %v1605
      %vm1618 = vcmp.eq.f32.partialorder %v1617, 8.507059e+37
      %v1619 = vand.u32 %v1605, 2147483648
      %v1620 = vor.u32 1.1754944e-38, %v1619
      %v1621 = vsel %vm1618, %v1620, %v1616
      %v1622 = vmul.f32 1.0, %v1621
      %v1623 = vrcp.pop %v1606
      %v1624 = vmul.f32 %v1606, %v1623
      %v1625 = vsub.f32 1.0, %v1624
      %v1626 = vmul.f32 %v1623, %v1625
      %v1627 = vadd.f32 %v1623, %v1626
      %vm1628 = vweird.f32 %v1606
      %vm1629 = vweird.f32 %v1623
      %vm1630 = vmor %vm1628, %vm1629
      %v1631 = vsel %vm1630, %v1623, %v1627
      %v1632 = vand.u32 2147483647, %v1606
      %vm1633 = vcmp.eq.f32.partialorder %v1632, 8.507059e+37
      %v1634 = vand.u32 %v1606, 2147483648
      %v1635 = vor.u32 1.1754944e-38, %v1634
      %v1636 = vsel %vm1633, %v1635, %v1631
      %v1637 = vmul.f32 1.0, %v1636
      %v1638 = vrcp.pop %v1607
      %v1639 = vmul.f32 %v1607, %v1638
      %v1640 = vsub.f32 1.0, %v1639
      %v1641 = vmul.f32 %v1638, %v1640
      %v1642 = vadd.f32 %v1638, %v1641
      %vm1643 = vweird.f32 %v1607
      %vm1644 = vweird.f32 %v1638
      %vm1645 = vmor %vm1643, %vm1644
      %v1646 = vsel %vm1645, %v1638, %v1642
      %v1647 = vand.u32 2147483647, %v1607
      %vm1648 = vcmp.eq.f32.partialorder %v1647, 8.507059e+37
      %v1649 = vand.u32 %v1607, 2147483648
      %v1650 = vor.u32 1.1754944e-38, %v1649
      %v1651 = vsel %vm1648, %v1650, %v1646
      %v1652 = vmul.f32 1.0, %v1651
      %v1653 = vtanh.pop %v1593
      %v1654 = vmul.f32 %v1637, %v752
      %v1655 = vmul.f32 %v1622, %v1653
      %v1656 = vadd.f32 %v1654, %v1655
      %v1657 = vtanh.pop %v1656
      %v1658 = vmul.f32 %v1652, %v1657
      %1659 = vst [vmem:[#allocation4] sm:$0xff] %v1658
      %s1660 = scalar_lea.vmem [#allocation5], 64
      %v1661 = vld [vmem:[%s1660] sm:$0xff]
      %v1662 = vld [vmem:[%s1660 + $0x8] sm:$0xff]
      %v1663 = vld [vmem:[%s1660 + $0x10] sm:$0xff]
      %v1664 = vld [vmem:[%s1660 + $0x18] sm:$0xff]
      %v1665 = vpack.c.bf16 %v1161, %v1161
      %1666 = vmatpush.bf16.msra.mxu0 %v882
      %1667 = vmatpush.bf16.msra.mxu0 %v878
      %1668 = vmatpush.bf16.msra.mxu0 %v874
      %1669 = vmatpush.bf16.msra.mxu0 %v870
      %1670 = vmatpush.bf16.msra.mxu0 %v866
      %1671 = vmatpush.bf16.msra.mxu0 %v862
      %1672 = vmatpush.bf16.msra.mxu0 %v858
      %1673 = vmatpush.bf16.msra.mxu0 %v854
      %1674 = vmatmul.bf16.gmra.mxu0 %v1665
      %v1675 = vpop.f32.mrf.mxu0
      %v1676 = vadd.f32 0.0, %v1675
      %v1677 = vpop.f32.mrf.mxu0
      %1678 = vdwg.mxu0
      %1679 = vmatpush.bf16.msra.mxu0 %v883
      %1680 = vmatpush.bf16.msra.mxu0 %v879
      %1681 = vmatpush.bf16.msra.mxu0 %v875
      %1682 = vmatpush.bf16.msra.mxu0 %v871
      %1683 = vmatpush.bf16.msra.mxu0 %v867
      %1684 = vmatpush.bf16.msra.mxu0 %v863
      %1685 = vmatpush.bf16.msra.mxu0 %v859
      %1686 = vmatpush.bf16.msra.mxu0 %v855
      %1687 = vmatmul.bf16.gmra.mxu0 %v1665
      %v1688 = vpop.f32.mrf.mxu0
      %v1689 = vadd.f32 0.0, %v1688
      %v1690 = vpop.f32.mrf.mxu0
      %1691 = vdwg.mxu0
      %1692 = vmatpush.bf16.msra.mxu0 %v884
      %1693 = vmatpush.bf16.msra.mxu0 %v880
      %1694 = vmatpush.bf16.msra.mxu0 %v876
      %1695 = vmatpush.bf16.msra.mxu0 %v872
      %1696 = vmatpush.bf16.msra.mxu0 %v868
      %1697 = vmatpush.bf16.msra.mxu0 %v864
      %1698 = vmatpush.bf16.msra.mxu0 %v860
      %1699 = vmatpush.bf16.msra.mxu0 %v856
      %1700 = vmatmul.bf16.gmra.mxu0 %v1665
      %v1701 = vpop.f32.mrf.mxu0
      %v1702 = vadd.f32 0.0, %v1701
      %v1703 = vpop.f32.mrf.mxu0
      %1704 = vdwg.mxu0
      %1705 = vmatpush.bf16.msra.mxu0 %v885
      %1706 = vmatpush.bf16.msra.mxu0 %v881
      %1707 = vmatpush.bf16.msra.mxu0 %v877
      %1708 = vmatpush.bf16.msra.mxu0 %v873
      %1709 = vmatpush.bf16.msra.mxu0 %v869
      %1710 = vmatpush.bf16.msra.mxu0 %v865
      %1711 = vmatpush.bf16.msra.mxu0 %v861
      %1712 = vmatpush.bf16.msra.mxu0 %v857
      %1713 = vmatmul.bf16.gmra.mxu0 %v1665
      %v1714 = vpop.f32.mrf.mxu0
      %v1715 = vadd.f32 0.0, %v1714
      %v1716 = vpop.f32.mrf.mxu0
      %1717 = vdwg.mxu0
      %v1718 = vadd.f32 %v1661, %v1676
      %v1719 = vadd.f32 %v1662, %v1689
      %v1720 = vadd.f32 %v1663, %v1702
      %v1721 = vadd.f32 %v1664, %v1715
      %v1722 = vxor.u32 %v1718, 2147483648
      %v1723 = vxor.u32 %v1719, 2147483648
      %v1724 = vxor.u32 %v1720, 2147483648
      %v1725 = vmul.f32 %v1722, 1.442695
      %v1726 = vpow.pop %v1725
      %v1727 = vmul.f32 %v1723, 1.442695
      %v1728 = vpow.pop %v1727
      %v1729 = vmul.f32 %v1724, 1.442695
      %v1730 = vpow.pop %v1729
      %v1731 = vadd.f32 %v1726, 1.0
      %v1732 = vadd.f32 %v1728, 1.0
      %v1733 = vadd.f32 %v1730, 1.0
      %v1734 = vrcp.pop %v1731
      %v1735 = vmul.f32 %v1731, %v1734
      %v1736 = vsub.f32 1.0, %v1735
      %v1737 = vmul.f32 %v1734, %v1736
      %v1738 = vadd.f32 %v1734, %v1737
      %vm1739 = vweird.f32 %v1731
      %vm1740 = vweird.f32 %v1734
      %vm1741 = vmor %vm1739, %vm1740
      %v1742 = vsel %vm1741, %v1734, %v1738
      %v1743 = vand.u32 2147483647, %v1731
      %vm1744 = vcmp.eq.f32.partialorder %v1743, 8.507059e+37
      %v1745 = vand.u32 %v1731, 2147483648
      %v1746 = vor.u32 1.1754944e-38, %v1745
      %v1747 = vsel %vm1744, %v1746, %v1742
      %v1748 = vmul.f32 1.0, %v1747
      %v1749 = vrcp.pop %v1732
      %v1750 = vmul.f32 %v1732, %v1749
      %v1751 = vsub.f32 1.0, %v1750
      %v1752 = vmul.f32 %v1749, %v1751
      %v1753 = vadd.f32 %v1749, %v1752
      %vm1754 = vweird.f32 %v1732
      %vm1755 = vweird.f32 %v1749
      %vm1756 = vmor %vm1754, %vm1755
      %v1757 = vsel %vm1756, %v1749, %v1753
      %v1758 = vand.u32 2147483647, %v1732
      %vm1759 = vcmp.eq.f32.partialorder %v1758, 8.507059e+37
      %v1760 = vand.u32 %v1732, 2147483648
      %v1761 = vor.u32 1.1754944e-38, %v1760
      %v1762 = vsel %vm1759, %v1761, %v1757
      %v1763 = vmul.f32 1.0, %v1762
      %v1764 = vrcp.pop %v1733
      %v1765 = vmul.f32 %v1733, %v1764
      %v1766 = vsub.f32 1.0, %v1765
      %v1767 = vmul.f32 %v1764, %v1766
      %v1768 = vadd.f32 %v1764, %v1767
      %vm1769 = vweird.f32 %v1733
      %vm1770 = vweird.f32 %v1764
      %vm1771 = vmor %vm1769, %vm1770
      %v1772 = vsel %vm1771, %v1764, %v1768
      %v1773 = vand.u32 2147483647, %v1733
      %vm1774 = vcmp.eq.f32.partialorder %v1773, 8.507059e+37
      %v1775 = vand.u32 %v1733, 2147483648
      %v1776 = vor.u32 1.1754944e-38, %v1775
      %v1777 = vsel %vm1774, %v1776, %v1772
      %v1778 = vmul.f32 1.0, %v1777
      %v1779 = vtanh.pop %v1721
      %v1780 = vmul.f32 %v1763, %v1159
      %v1781 = vmul.f32 %v1748, %v1779
      %v1782 = vadd.f32 %v1780, %v1781
      %v1783 = vtanh.pop %v1782
      %v1784 = vmul.f32 %v1778, %v1783
      %v1785 = vpack.c.bf16 %v1658, %v1658
      %1786 = vmatpush.bf16.msra.mxu0 %v1392
      %1787 = vmatpush.bf16.msra.mxu0 %v1388
      %1788 = vmatpush.bf16.msra.mxu0 %v1384
      %1789 = vmatpush.bf16.msra.mxu0 %v1380
      %1790 = vmatpush.bf16.msra.mxu0 %v1376
      %1791 = vmatpush.bf16.msra.mxu0 %v1372
      %1792 = vmatpush.bf16.msra.mxu0 %v1368
      %1793 = vmatpush.bf16.msra.mxu0 %v1364
      %1794 = vmatmul.bf16.gmra.mxu0 %v1665
      %v1795 = vpop.f32.mrf.mxu0
      %v1796 = vadd.f32 %v1164, %v1795
      %v1797 = vpop.f32.mrf.mxu0
      %1798 = vdwg.mxu0
      %1799 = vmatpush.bf16.msra.mxu0 %v1424
      %1800 = vmatpush.bf16.msra.mxu0 %v1420
      %1801 = vmatpush.bf16.msra.mxu0 %v1416
      %1802 = vmatpush.bf16.msra.mxu0 %v1412
      %1803 = vmatpush.bf16.msra.mxu0 %v1408
      %1804 = vmatpush.bf16.msra.mxu0 %v1404
      %1805 = vmatpush.bf16.msra.mxu0 %v1400
      %1806 = vmatpush.bf16.msra.mxu0 %v1396
      %1807 = vmatmul.bf16.gmra.mxu0 %v1785
      %v1808 = vpop.f32.mrf.mxu0
      %v1809 = vadd.f32 %v1796, %v1808
      %v1810 = vpop.f32.mrf.mxu0
      %1811 = vdwg.mxu0
      %1812 = vmatpush.bf16.msra.mxu0 %v1393
      %1813 = vmatpush.bf16.msra.mxu0 %v1389
      %1814 = vmatpush.bf16.msra.mxu0 %v1385
      %1815 = vmatpush.bf16.msra.mxu0 %v1381
      %1816 = vmatpush.bf16.msra.mxu0 %v1377
      %1817 = vmatpush.bf16.msra.mxu0 %v1373
      %1818 = vmatpush.bf16.msra.mxu0 %v1369
      %1819 = vmatpush.bf16.msra.mxu0 %v1365
      %1820 = vmatmul.bf16.gmra.mxu0 %v1665
      %v1821 = vpop.f32.mrf.mxu0
      %v1822 = vadd.f32 %v1165, %v1821
      %v1823 = vpop.f32.mrf.mxu0
      %1824 = vdwg.mxu0
      %1825 = vmatpush.bf16.msra.mxu0 %v1425
      %1826 = vmatpush.bf16.msra.mxu0 %v1421
      %1827 = vmatpush.bf16.msra.mxu0 %v1417
      %1828 = vmatpush.bf16.msra.mxu0 %v1413
      %1829 = vmatpush.bf16.msra.mxu0 %v1409
      %1830 = vmatpush.bf16.msra.mxu0 %v1405
      %1831 = vmatpush.bf16.msra.mxu0 %v1401
      %1832 = vmatpush.bf16.msra.mxu0 %v1397
      %1833 = vmatmul.bf16.gmra.mxu0 %v1785
      %v1834 = vpop.f32.mrf.mxu0
      %v1835 = vadd.f32 %v1822, %v1834
      %v1836 = vpop.f32.mrf.mxu0
      %1837 = vdwg.mxu0
      %1838 = vmatpush.bf16.msra.mxu0 %v1394
      %1839 = vmatpush.bf16.msra.mxu0 %v1390
      %1840 = vmatpush.bf16.msra.mxu0 %v1386
      %1841 = vmatpush.bf16.msra.mxu0 %v1382
      %1842 = vmatpush.bf16.msra.mxu0 %v1378
      %1843 = vmatpush.bf16.msra.mxu0 %v1374
      %1844 = vmatpush.bf16.msra.mxu0 %v1370
      %1845 = vmatpush.bf16.msra.mxu0 %v1366
      %1846 = vmatmul.bf16.gmra.mxu0 %v1665
      %v1847 = vpop.f32.mrf.mxu0
      %v1848 = vadd.f32 %v1166, %v1847
      %v1849 = vpop.f32.mrf.mxu0
      %1850 = vdwg.mxu0
      %1851 = vmatpush.bf16.msra.mxu0 %v1426
      %1852 = vmatpush.bf16.msra.mxu0 %v1422
      %1853 = vmatpush.bf16.msra.mxu0 %v1418
      %1854 = vmatpush.bf16.msra.mxu0 %v1414
      %1855 = vmatpush.bf16.msra.mxu0 %v1410
      %1856 = vmatpush.bf16.msra.mxu0 %v1406
      %1857 = vmatpush.bf16.msra.mxu0 %v1402
      %1858 = vmatpush.bf16.msra.mxu0 %v1398
      %1859 = vmatmul.bf16.gmra.mxu0 %v1785
      %v1860 = vpop.f32.mrf.mxu0
      %v1861 = vadd.f32 %v1848, %v1860
      %v1862 = vpop.f32.mrf.mxu0
      %1863 = vdwg.mxu0
      %1864 = vmatpush.bf16.msra.mxu0 %v1395
      %1865 = vmatpush.bf16.msra.mxu0 %v1391
      %1866 = vmatpush.bf16.msra.mxu0 %v1387
      %1867 = vmatpush.bf16.msra.mxu0 %v1383
      %1868 = vmatpush.bf16.msra.mxu0 %v1379
      %1869 = vmatpush.bf16.msra.mxu0 %v1375
      %1870 = vmatpush.bf16.msra.mxu0 %v1371
      %1871 = vmatpush.bf16.msra.mxu0 %v1367
      %1872 = vmatmul.bf16.gmra.mxu0 %v1665
      %v1873 = vpop.f32.mrf.mxu0
      %v1874 = vadd.f32 %v1167, %v1873
      %v1875 = vpop.f32.mrf.mxu0
      %1876 = vdwg.mxu0
      %1877 = vmatpush.bf16.msra.mxu0 %v1427
      %1878 = vmatpush.bf16.msra.mxu0 %v1423
      %1879 = vmatpush.bf16.msra.mxu0 %v1419
      %1880 = vmatpush.bf16.msra.mxu0 %v1415
      %1881 = vmatpush.bf16.msra.mxu0 %v1411
      %1882 = vmatpush.bf16.msra.mxu0 %v1407
      %1883 = vmatpush.bf16.msra.mxu0 %v1403
      %1884 = vmatpush.bf16.msra.mxu0 %v1399
      %1885 = vmatmul.bf16.gmra.mxu0 %v1785
      %v1886 = vpop.f32.mrf.mxu0
      %v1887 = vadd.f32 %v1874, %v1886
      %v1888 = vpop.f32.mrf.mxu0
      %1889 = vdwg.mxu0
      %v1890 = vxor.u32 %v1809, 2147483648
      %v1891 = vxor.u32 %v1835, 2147483648
      %v1892 = vxor.u32 %v1861, 2147483648
      %v1893 = vmul.f32 %v1890, 1.442695
      %v1894 = vpow.pop %v1893
      %v1895 = vmul.f32 %v1891, 1.442695
      %v1896 = vpow.pop %v1895
      %v1897 = vmul.f32 %v1892, 1.442695
      %v1898 = vpow.pop %v1897
      %v1899 = vadd.f32 %v1894, 1.0
      %v1900 = vadd.f32 %v1896, 1.0
      %v1901 = vadd.f32 %v1898, 1.0
      %v1902 = vrcp.pop %v1899
      %v1903 = vmul.f32 %v1899, %v1902
      %v1904 = vsub.f32 1.0, %v1903
      %v1905 = vmul.f32 %v1902, %v1904
      %v1906 = vadd.f32 %v1902, %v1905
      %vm1907 = vweird.f32 %v1899
      %vm1908 = vweird.f32 %v1902
      %vm1909 = vmor %vm1907, %vm1908
      %v1910 = vsel %vm1909, %v1902, %v1906
      %v1911 = vand.u32 2147483647, %v1899
      %vm1912 = vcmp.eq.f32.partialorder %v1911, 8.507059e+37
      %v1913 = vand.u32 %v1899, 2147483648
      %v1914 = vor.u32 1.1754944e-38, %v1913
      %v1915 = vsel %vm1912, %v1914, %v1910
      %v1916 = vmul.f32 1.0, %v1915
      %v1917 = vrcp.pop %v1900
      %v1918 = vmul.f32 %v1900, %v1917
      %v1919 = vsub.f32 1.0, %v1918
      %v1920 = vmul.f32 %v1917, %v1919
      %v1921 = vadd.f32 %v1917, %v1920
      %vm1922 = vweird.f32 %v1900
      %vm1923 = vweird.f32 %v1917
      %vm1924 = vmor %vm1922, %vm1923
      %v1925 = vsel %vm1924, %v1917, %v1921
      %v1926 = vand.u32 2147483647, %v1900
      %vm1927 = vcmp.eq.f32.partialorder %v1926, 8.507059e+37
      %v1928 = vand.u32 %v1900, 2147483648
      %v1929 = vor.u32 1.1754944e-38, %v1928
      %v1930 = vsel %vm1927, %v1929, %v1925
      %v1931 = vmul.f32 1.0, %v1930
      %v1932 = vrcp.pop %v1901
      %v1933 = vmul.f32 %v1901, %v1932
      %v1934 = vsub.f32 1.0, %v1933
      %v1935 = vmul.f32 %v1932, %v1934
      %v1936 = vadd.f32 %v1932, %v1935
      %vm1937 = vweird.f32 %v1901
      %vm1938 = vweird.f32 %v1932
      %vm1939 = vmor %vm1937, %vm1938
      %v1940 = vsel %vm1939, %v1932, %v1936
      %v1941 = vand.u32 2147483647, %v1901
      %vm1942 = vcmp.eq.f32.partialorder %v1941, 8.507059e+37
      %v1943 = vand.u32 %v1901, 2147483648
      %v1944 = vor.u32 1.1754944e-38, %v1943
      %v1945 = vsel %vm1942, %v1944, %v1940
      %v1946 = vmul.f32 1.0, %v1945
      %v1947 = vtanh.pop %v1887
      %v1948 = vmul.f32 %v1931, %v1656
      %v1949 = vmul.f32 %v1916, %v1947
      %v1950 = vadd.f32 %v1948, %v1949
      %v1951 = vtanh.pop %v1950
      %v1952 = vmul.f32 %v1946, %v1951
      %s1953 = scalar_lea.vmem [#allocation4], 8
      %1954 = vst [vmem:[%s1953] sm:$0xff] %v1952
      %s1955 = scalar_lea.vmem [#allocation5], 96
      %v1956 = vld [vmem:[%s1955] sm:$0xff]
      %v1957 = vld [vmem:[%s1955 + $0x8] sm:$0xff]
      %v1958 = vld [vmem:[%s1955 + $0x10] sm:$0xff]
      %v1959 = vld [vmem:[%s1955 + $0x18] sm:$0xff]
      %v1960 = vpack.c.bf16 %v1784, %v1784
      %1961 = vmatpush.bf16.msra.mxu0 %v882
      %1962 = vmatpush.bf16.msra.mxu0 %v878
      %1963 = vmatpush.bf16.msra.mxu0 %v874
      %1964 = vmatpush.bf16.msra.mxu0 %v870
      %1965 = vmatpush.bf16.msra.mxu0 %v866
      %1966 = vmatpush.bf16.msra.mxu0 %v862
      %1967 = vmatpush.bf16.msra.mxu0 %v858
      %1968 = vmatpush.bf16.msra.mxu0 %v854
      %1969 = vmatmul.bf16.gmra.mxu0 %v1960
      %v1970 = vpop.f32.mrf.mxu0
      %v1971 = vadd.f32 0.0, %v1970
      %v1972 = vpop.f32.mrf.mxu0
      %1973 = vdwg.mxu0
      %1974 = vmatpush.bf16.msra.mxu0 %v883
      %1975 = vmatpush.bf16.msra.mxu0 %v879
      %1976 = vmatpush.bf16.msra.mxu0 %v875
      %1977 = vmatpush.bf16.msra.mxu0 %v871
      %1978 = vmatpush.bf16.msra.mxu0 %v867
      %1979 = vmatpush.bf16.msra.mxu0 %v863
      %1980 = vmatpush.bf16.msra.mxu0 %v859
      %1981 = vmatpush.bf16.msra.mxu0 %v855
      %1982 = vmatmul.bf16.gmra.mxu0 %v1960
      %v1983 = vpop.f32.mrf.mxu0
      %v1984 = vadd.f32 0.0, %v1983
      %v1985 = vpop.f32.mrf.mxu0
      %1986 = vdwg.mxu0
      %1987 = vmatpush.bf16.msra.mxu0 %v884
      %1988 = vmatpush.bf16.msra.mxu0 %v880
      %1989 = vmatpush.bf16.msra.mxu0 %v876
      %1990 = vmatpush.bf16.msra.mxu0 %v872
      %1991 = vmatpush.bf16.msra.mxu0 %v868
      %1992 = vmatpush.bf16.msra.mxu0 %v864
      %1993 = vmatpush.bf16.msra.mxu0 %v860
      %1994 = vmatpush.bf16.msra.mxu0 %v856
      %1995 = vmatmul.bf16.gmra.mxu0 %v1960
      %v1996 = vpop.f32.mrf.mxu0
      %v1997 = vadd.f32 0.0, %v1996
      %v1998 = vpop.f32.mrf.mxu0
      %1999 = vdwg.mxu0
      %2000 = vmatpush.bf16.msra.mxu0 %v885
      %2001 = vmatpush.bf16.msra.mxu0 %v881
      %2002 = vmatpush.bf16.msra.mxu0 %v877
      %2003 = vmatpush.bf16.msra.mxu0 %v873
      %2004 = vmatpush.bf16.msra.mxu0 %v869
      %2005 = vmatpush.bf16.msra.mxu0 %v865
      %2006 = vmatpush.bf16.msra.mxu0 %v861
      %2007 = vmatpush.bf16.msra.mxu0 %v857
      %2008 = vmatmul.bf16.gmra.mxu0 %v1960
      %v2009 = vpop.f32.mrf.mxu0
      %v2010 = vadd.f32 0.0, %v2009
      %v2011 = vpop.f32.mrf.mxu0
      %2012 = vdwg.mxu0
      %v2013 = vadd.f32 %v1956, %v1971
      %v2014 = vadd.f32 %v1957, %v1984
      %v2015 = vadd.f32 %v1958, %v1997
      %v2016 = vadd.f32 %v1959, %v2010
      %v2017 = vxor.u32 %v2013, 2147483648
      %v2018 = vxor.u32 %v2014, 2147483648
      %v2019 = vxor.u32 %v2015, 2147483648
      %v2020 = vmul.f32 %v2017, 1.442695
      %v2021 = vpow.pop %v2020
      %v2022 = vmul.f32 %v2018, 1.442695
      %v2023 = vpow.pop %v2022
      %v2024 = vmul.f32 %v2019, 1.442695
      %v2025 = vpow.pop %v2024
      %v2026 = vadd.f32 %v2021, 1.0
      %v2027 = vadd.f32 %v2023, 1.0
      %v2028 = vadd.f32 %v2025, 1.0
      %v2029 = vrcp.pop %v2026
      %v2030 = vmul.f32 %v2026, %v2029
      %v2031 = vsub.f32 1.0, %v2030
      %v2032 = vmul.f32 %v2029, %v2031
      %v2033 = vadd.f32 %v2029, %v2032
      %vm2034 = vweird.f32 %v2026
      %vm2035 = vweird.f32 %v2029
      %vm2036 = vmor %vm2034, %vm2035
      %v2037 = vsel %vm2036, %v2029, %v2033
      %v2038 = vand.u32 2147483647, %v2026
      %vm2039 = vcmp.eq.f32.partialorder %v2038, 8.507059e+37
      %v2040 = vand.u32 %v2026, 2147483648
      %v2041 = vor.u32 1.1754944e-38, %v2040
      %v2042 = vsel %vm2039, %v2041, %v2037
      %v2043 = vmul.f32 1.0, %v2042
      %v2044 = vrcp.pop %v2027
      %v2045 = vmul.f32 %v2027, %v2044
      %v2046 = vsub.f32 1.0, %v2045
      %v2047 = vmul.f32 %v2044, %v2046
      %v2048 = vadd.f32 %v2044, %v2047
      %vm2049 = vweird.f32 %v2027
      %vm2050 = vweird.f32 %v2044
      %vm2051 = vmor %vm2049, %vm2050
      %v2052 = vsel %vm2051, %v2044, %v2048
      %v2053 = vand.u32 2147483647, %v2027
      %vm2054 = vcmp.eq.f32.partialorder %v2053, 8.507059e+37
      %v2055 = vand.u32 %v2027, 2147483648
      %v2056 = vor.u32 1.1754944e-38, %v2055
      %v2057 = vsel %vm2054, %v2056, %v2052
      %v2058 = vmul.f32 1.0, %v2057
      %v2059 = vrcp.pop %v2028
      %v2060 = vmul.f32 %v2028, %v2059
      %v2061 = vsub.f32 1.0, %v2060
      %v2062 = vmul.f32 %v2059, %v2061
      %v2063 = vadd.f32 %v2059, %v2062
      %vm2064 = vweird.f32 %v2028
      %vm2065 = vweird.f32 %v2059
      %vm2066 = vmor %vm2064, %vm2065
      %v2067 = vsel %vm2066, %v2059, %v2063
      %v2068 = vand.u32 2147483647, %v2028
      %vm2069 = vcmp.eq.f32.partialorder %v2068, 8.507059e+37
      %v2070 = vand.u32 %v2028, 2147483648
      %v2071 = vor.u32 1.1754944e-38, %v2070
      %v2072 = vsel %vm2069, %v2071, %v2067
      %v2073 = vmul.f32 1.0, %v2072
      %v2074 = vtanh.pop %v2016
      %v2075 = vmul.f32 %v2058, %v1782
      %v2076 = vmul.f32 %v2043, %v2074
      %v2077 = vadd.f32 %v2075, %v2076
      %v2078 = vtanh.pop %v2077
      %v2079 = vmul.f32 %v2073, %v2078
      %v2080 = vpack.c.bf16 %v1952, %v1952
      %2081 = vmatpush.bf16.msra.mxu0 %v1392
      %2082 = vmatpush.bf16.msra.mxu0 %v1388
      %2083 = vmatpush.bf16.msra.mxu0 %v1384
      %2084 = vmatpush.bf16.msra.mxu0 %v1380
      %2085 = vmatpush.bf16.msra.mxu0 %v1376
      %2086 = vmatpush.bf16.msra.mxu0 %v1372
      %2087 = vmatpush.bf16.msra.mxu0 %v1368
      %2088 = vmatpush.bf16.msra.mxu0 %v1364
      %2089 = vmatmul.bf16.gmra.mxu0 %v1960
      %v2090 = vpop.f32.mrf.mxu0
      %v2091 = vadd.f32 %v1164, %v2090
      %v2092 = vpop.f32.mrf.mxu0
      %2093 = vdwg.mxu0
      %2094 = vmatpush.bf16.msra.mxu0 %v1424
      %2095 = vmatpush.bf16.msra.mxu0 %v1420
      %2096 = vmatpush.bf16.msra.mxu0 %v1416
      %2097 = vmatpush.bf16.msra.mxu0 %v1412
      %2098 = vmatpush.bf16.msra.mxu0 %v1408
      %2099 = vmatpush.bf16.msra.mxu0 %v1404
      %2100 = vmatpush.bf16.msra.mxu0 %v1400
      %2101 = vmatpush.bf16.msra.mxu0 %v1396
      %2102 = vmatmul.bf16.gmra.mxu0 %v2080
      %v2103 = vpop.f32.mrf.mxu0
      %v2104 = vadd.f32 %v2091, %v2103
      %v2105 = vpop.f32.mrf.mxu0
      %2106 = vdwg.mxu0
      %2107 = vmatpush.bf16.msra.mxu0 %v1393
      %2108 = vmatpush.bf16.msra.mxu0 %v1389
      %2109 = vmatpush.bf16.msra.mxu0 %v1385
      %2110 = vmatpush.bf16.msra.mxu0 %v1381
      %2111 = vmatpush.bf16.msra.mxu0 %v1377
      %2112 = vmatpush.bf16.msra.mxu0 %v1373
      %2113 = vmatpush.bf16.msra.mxu0 %v1369
      %2114 = vmatpush.bf16.msra.mxu0 %v1365
      %2115 = vmatmul.bf16.gmra.mxu0 %v1960
      %v2116 = vpop.f32.mrf.mxu0
      %v2117 = vadd.f32 %v1165, %v2116
      %v2118 = vpop.f32.mrf.mxu0
      %2119 = vdwg.mxu0
      %2120 = vmatpush.bf16.msra.mxu0 %v1425
      %2121 = vmatpush.bf16.msra.mxu0 %v1421
      %2122 = vmatpush.bf16.msra.mxu0 %v1417
      %2123 = vmatpush.bf16.msra.mxu0 %v1413
      %2124 = vmatpush.bf16.msra.mxu0 %v1409
      %2125 = vmatpush.bf16.msra.mxu0 %v1405
      %2126 = vmatpush.bf16.msra.mxu0 %v1401
      %2127 = vmatpush.bf16.msra.mxu0 %v1397
      %2128 = vmatmul.bf16.gmra.mxu0 %v2080
      %v2129 = vpop.f32.mrf.mxu0
      %v2130 = vadd.f32 %v2117, %v2129
      %v2131 = vpop.f32.mrf.mxu0
      %2132 = vdwg.mxu0
      %2133 = vmatpush.bf16.msra.mxu0 %v1394
      %2134 = vmatpush.bf16.msra.mxu0 %v1390
      %2135 = vmatpush.bf16.msra.mxu0 %v1386
      %2136 = vmatpush.bf16.msra.mxu0 %v1382
      %2137 = vmatpush.bf16.msra.mxu0 %v1378
      %2138 = vmatpush.bf16.msra.mxu0 %v1374
      %2139 = vmatpush.bf16.msra.mxu0 %v1370
      %2140 = vmatpush.bf16.msra.mxu0 %v1366
      %2141 = vmatmul.bf16.gmra.mxu0 %v1960
      %v2142 = vpop.f32.mrf.mxu0
      %v2143 = vadd.f32 %v1166, %v2142
      %v2144 = vpop.f32.mrf.mxu0
      %2145 = vdwg.mxu0
      %2146 = vmatpush.bf16.msra.mxu0 %v1426
      %2147 = vmatpush.bf16.msra.mxu0 %v1422
      %2148 = vmatpush.bf16.msra.mxu0 %v1418
      %2149 = vmatpush.bf16.msra.mxu0 %v1414
      %2150 = vmatpush.bf16.msra.mxu0 %v1410
      %2151 = vmatpush.bf16.msra.mxu0 %v1406
      %2152 = vmatpush.bf16.msra.mxu0 %v1402
      %2153 = vmatpush.bf16.msra.mxu0 %v1398
      %2154 = vmatmul.bf16.gmra.mxu0 %v2080
      %v2155 = vpop.f32.mrf.mxu0
      %v2156 = vadd.f32 %v2143, %v2155
      %v2157 = vpop.f32.mrf.mxu0
      %2158 = vdwg.mxu0
      %2159 = vmatpush.bf16.msra.mxu0 %v1395
      %2160 = vmatpush.bf16.msra.mxu0 %v1391
      %2161 = vmatpush.bf16.msra.mxu0 %v1387
      %2162 = vmatpush.bf16.msra.mxu0 %v1383
      %2163 = vmatpush.bf16.msra.mxu0 %v1379
      %2164 = vmatpush.bf16.msra.mxu0 %v1375
      %2165 = vmatpush.bf16.msra.mxu0 %v1371
      %2166 = vmatpush.bf16.msra.mxu0 %v1367
      %2167 = vmatmul.bf16.gmra.mxu0 %v1960
      %v2168 = vpop.f32.mrf.mxu0
      %v2169 = vadd.f32 %v1167, %v2168
      %v2170 = vpop.f32.mrf.mxu0
      %2171 = vdwg.mxu0
      %2172 = vmatpush.bf16.msra.mxu0 %v1427
      %2173 = vmatpush.bf16.msra.mxu0 %v1423
      %2174 = vmatpush.bf16.msra.mxu0 %v1419
      %2175 = vmatpush.bf16.msra.mxu0 %v1415
      %2176 = vmatpush.bf16.msra.mxu0 %v1411
      %2177 = vmatpush.bf16.msra.mxu0 %v1407
      %2178 = vmatpush.bf16.msra.mxu0 %v1403
      %2179 = vmatpush.bf16.msra.mxu0 %v1399
      %2180 = vmatmul.bf16.gmra.mxu0 %v2080
      %v2181 = vpop.f32.mrf.mxu0
      %v2182 = vadd.f32 %v2169, %v2181
      %v2183 = vpop.f32.mrf.mxu0
      %2184 = vdwg.mxu0
      %v2185 = vxor.u32 %v2104, 2147483648
      %v2186 = vxor.u32 %v2130, 2147483648
      %v2187 = vxor.u32 %v2156, 2147483648
      %v2188 = vmul.f32 %v2185, 1.442695
      %v2189 = vpow.pop %v2188
      %v2190 = vmul.f32 %v2186, 1.442695
      %v2191 = vpow.pop %v2190
      %v2192 = vmul.f32 %v2187, 1.442695
      %v2193 = vpow.pop %v2192
      %v2194 = vadd.f32 %v2189, 1.0
      %v2195 = vadd.f32 %v2191, 1.0
      %v2196 = vadd.f32 %v2193, 1.0
      %v2197 = vrcp.pop %v2194
      %v2198 = vmul.f32 %v2194, %v2197
      %v2199 = vsub.f32 1.0, %v2198
      %v2200 = vmul.f32 %v2197, %v2199
      %v2201 = vadd.f32 %v2197, %v2200
      %vm2202 = vweird.f32 %v2194
      %vm2203 = vweird.f32 %v2197
      %vm2204 = vmor %vm2202, %vm2203
      %v2205 = vsel %vm2204, %v2197, %v2201
      %v2206 = vand.u32 2147483647, %v2194
      %vm2207 = vcmp.eq.f32.partialorder %v2206, 8.507059e+37
      %v2208 = vand.u32 %v2194, 2147483648
      %v2209 = vor.u32 1.1754944e-38, %v2208
      %v2210 = vsel %vm2207, %v2209, %v2205
      %v2211 = vmul.f32 1.0, %v2210
      %v2212 = vrcp.pop %v2195
      %v2213 = vmul.f32 %v2195, %v2212
      %v2214 = vsub.f32 1.0, %v2213
      %v2215 = vmul.f32 %v2212, %v2214
      %v2216 = vadd.f32 %v2212, %v2215
      %vm2217 = vweird.f32 %v2195
      %vm2218 = vweird.f32 %v2212
      %vm2219 = vmor %vm2217, %vm2218
      %v2220 = vsel %vm2219, %v2212, %v2216
      %v2221 = vand.u32 2147483647, %v2195
      %vm2222 = vcmp.eq.f32.partialorder %v2221, 8.507059e+37
      %v2223 = vand.u32 %v2195, 2147483648
      %v2224 = vor.u32 1.1754944e-38, %v2223
      %v2225 = vsel %vm2222, %v2224, %v2220
      %v2226 = vmul.f32 1.0, %v2225
      %v2227 = vrcp.pop %v2196
      %v2228 = vmul.f32 %v2196, %v2227
      %v2229 = vsub.f32 1.0, %v2228
      %v2230 = vmul.f32 %v2227, %v2229
      %v2231 = vadd.f32 %v2227, %v2230
      %vm2232 = vweird.f32 %v2196
      %vm2233 = vweird.f32 %v2227
      %vm2234 = vmor %vm2232, %vm2233
      %v2235 = vsel %vm2234, %v2227, %v2231
      %v2236 = vand.u32 2147483647, %v2196
      %vm2237 = vcmp.eq.f32.partialorder %v2236, 8.507059e+37
      %v2238 = vand.u32 %v2196, 2147483648
      %v2239 = vor.u32 1.1754944e-38, %v2238
      %v2240 = vsel %vm2237, %v2239, %v2235
      %v2241 = vmul.f32 1.0, %v2240
      %v2242 = vtanh.pop %v2182
      %v2243 = vmul.f32 %v2226, %v1950
      %v2244 = vmul.f32 %v2211, %v2242
      %v2245 = vadd.f32 %v2243, %v2244
      %v2246 = vtanh.pop %v2245
      %v2247 = vmul.f32 %v2241, %v2246
      %s2248 = scalar_lea.vmem [#allocation4], 16
      %2249 = vst [vmem:[%s2248] sm:$0xff] %v2247
      %v2250 = vpack.c.bf16 %v2079, %v2079
      %v2251 = vpack.c.bf16 %v2247, %v2247
      %2252 = vmatpush.bf16.msra.mxu0 %v1392
      %2253 = vmatpush.bf16.msra.mxu0 %v1388
      %2254 = vmatpush.bf16.msra.mxu0 %v1384
      %2255 = vmatpush.bf16.msra.mxu0 %v1380
      %2256 = vmatpush.bf16.msra.mxu0 %v1376
      %2257 = vmatpush.bf16.msra.mxu0 %v1372
      %2258 = vmatpush.bf16.msra.mxu0 %v1368
      %2259 = vmatpush.bf16.msra.mxu0 %v1364
      %2260 = vmatmul.bf16.gmra.mxu0 %v2250
      %v2261 = vpop.f32.mrf.mxu0
      %v2262 = vadd.f32 %v1164, %v2261
      %v2263 = vpop.f32.mrf.mxu0
      %2264 = vdwg.mxu0
      %2265 = vmatpush.bf16.msra.mxu0 %v1424
      %2266 = vmatpush.bf16.msra.mxu0 %v1420
      %2267 = vmatpush.bf16.msra.mxu0 %v1416
      %2268 = vmatpush.bf16.msra.mxu0 %v1412
      %2269 = vmatpush.bf16.msra.mxu0 %v1408
      %2270 = vmatpush.bf16.msra.mxu0 %v1404
      %2271 = vmatpush.bf16.msra.mxu0 %v1400
      %2272 = vmatpush.bf16.msra.mxu0 %v1396
      %2273 = vmatmul.bf16.gmra.mxu0 %v2251
      %v2274 = vpop.f32.mrf.mxu0
      %v2275 = vadd.f32 %v2262, %v2274
      %v2276 = vpop.f32.mrf.mxu0
      %2277 = vdwg.mxu0
      %2278 = vmatpush.bf16.msra.mxu0 %v1393
      %2279 = vmatpush.bf16.msra.mxu0 %v1389
      %2280 = vmatpush.bf16.msra.mxu0 %v1385
      %2281 = vmatpush.bf16.msra.mxu0 %v1381
      %2282 = vmatpush.bf16.msra.mxu0 %v1377
      %2283 = vmatpush.bf16.msra.mxu0 %v1373
      %2284 = vmatpush.bf16.msra.mxu0 %v1369
      %2285 = vmatpush.bf16.msra.mxu0 %v1365
      %2286 = vmatmul.bf16.gmra.mxu0 %v2250
      %v2287 = vpop.f32.mrf.mxu0
      %v2288 = vadd.f32 %v1165, %v2287
      %v2289 = vpop.f32.mrf.mxu0
      %2290 = vdwg.mxu0
      %2291 = vmatpush.bf16.msra.mxu0 %v1425
      %2292 = vmatpush.bf16.msra.mxu0 %v1421
      %2293 = vmatpush.bf16.msra.mxu0 %v1417
      %2294 = vmatpush.bf16.msra.mxu0 %v1413
      %2295 = vmatpush.bf16.msra.mxu0 %v1409
      %2296 = vmatpush.bf16.msra.mxu0 %v1405
      %2297 = vmatpush.bf16.msra.mxu0 %v1401
      %2298 = vmatpush.bf16.msra.mxu0 %v1397
      %2299 = vmatmul.bf16.gmra.mxu0 %v2251
      %v2300 = vpop.f32.mrf.mxu0
      %v2301 = vadd.f32 %v2288, %v2300
      %v2302 = vpop.f32.mrf.mxu0
      %2303 = vdwg.mxu0
      %2304 = vmatpush.bf16.msra.mxu0 %v1394
      %2305 = vmatpush.bf16.msra.mxu0 %v1390
      %2306 = vmatpush.bf16.msra.mxu0 %v1386
      %2307 = vmatpush.bf16.msra.mxu0 %v1382
      %2308 = vmatpush.bf16.msra.mxu0 %v1378
      %2309 = vmatpush.bf16.msra.mxu0 %v1374
      %2310 = vmatpush.bf16.msra.mxu0 %v1370
      %2311 = vmatpush.bf16.msra.mxu0 %v1366
      %2312 = vmatmul.bf16.gmra.mxu0 %v2250
      %v2313 = vpop.f32.mrf.mxu0
      %v2314 = vadd.f32 %v1166, %v2313
      %v2315 = vpop.f32.mrf.mxu0
      %2316 = vdwg.mxu0
      %2317 = vmatpush.bf16.msra.mxu0 %v1426
      %2318 = vmatpush.bf16.msra.mxu0 %v1422
      %2319 = vmatpush.bf16.msra.mxu0 %v1418
      %2320 = vmatpush.bf16.msra.mxu0 %v1414
      %2321 = vmatpush.bf16.msra.mxu0 %v1410
      %2322 = vmatpush.bf16.msra.mxu0 %v1406
      %2323 = vmatpush.bf16.msra.mxu0 %v1402
      %2324 = vmatpush.bf16.msra.mxu0 %v1398
      %2325 = vmatmul.bf16.gmra.mxu0 %v2251
      %v2326 = vpop.f32.mrf.mxu0
      %v2327 = vadd.f32 %v2314, %v2326
      %v2328 = vpop.f32.mrf.mxu0
      %2329 = vdwg.mxu0
      %2330 = vmatpush.bf16.msra.mxu0 %v1395
      %2331 = vmatpush.bf16.msra.mxu0 %v1391
      %2332 = vmatpush.bf16.msra.mxu0 %v1387
      %2333 = vmatpush.bf16.msra.mxu0 %v1383
      %2334 = vmatpush.bf16.msra.mxu0 %v1379
      %2335 = vmatpush.bf16.msra.mxu0 %v1375
      %2336 = vmatpush.bf16.msra.mxu0 %v1371
      %2337 = vmatpush.bf16.msra.mxu0 %v1367
      %2338 = vmatmul.bf16.gmra.mxu0 %v2250
      %v2339 = vpop.f32.mrf.mxu0
      %v2340 = vadd.f32 %v1167, %v2339
      %v2341 = vpop.f32.mrf.mxu0
      %2342 = vdwg.mxu0
      %2343 = vmatpush.bf16.msra.mxu0 %v1427
      %2344 = vmatpush.bf16.msra.mxu0 %v1423
      %2345 = vmatpush.bf16.msra.mxu0 %v1419
      %2346 = vmatpush.bf16.msra.mxu0 %v1415
      %2347 = vmatpush.bf16.msra.mxu0 %v1411
      %2348 = vmatpush.bf16.msra.mxu0 %v1407
      %2349 = vmatpush.bf16.msra.mxu0 %v1403
      %2350 = vmatpush.bf16.msra.mxu0 %v1399
      %2351 = vmatmul.bf16.gmra.mxu0 %v2251
      %v2352 = vpop.f32.mrf.mxu0
      %v2353 = vadd.f32 %v2340, %v2352
      %v2354 = vpop.f32.mrf.mxu0
      %2355 = vdwg.mxu0
      %v2356 = vxor.u32 %v2275, 2147483648
      %v2357 = vxor.u32 %v2301, 2147483648
      %v2358 = vxor.u32 %v2327, 2147483648
      %v2359 = vmul.f32 %v2356, 1.442695
      %v2360 = vpow.pop %v2359
      %v2361 = vmul.f32 %v2357, 1.442695
      %v2362 = vpow.pop %v2361
      %v2363 = vmul.f32 %v2358, 1.442695
      %v2364 = vpow.pop %v2363
      %v2365 = vadd.f32 %v2360, 1.0
      %v2366 = vadd.f32 %v2362, 1.0
      %v2367 = vadd.f32 %v2364, 1.0
      %v2368 = vrcp.pop %v2365
      %v2369 = vmul.f32 %v2365, %v2368
      %v2370 = vsub.f32 1.0, %v2369
      %v2371 = vmul.f32 %v2368, %v2370
      %v2372 = vadd.f32 %v2368, %v2371
      %vm2373 = vweird.f32 %v2365
      %vm2374 = vweird.f32 %v2368
      %vm2375 = vmor %vm2373, %vm2374
      %v2376 = vsel %vm2375, %v2368, %v2372
      %v2377 = vand.u32 2147483647, %v2365
      %vm2378 = vcmp.eq.f32.partialorder %v2377, 8.507059e+37
      %v2379 = vand.u32 %v2365, 2147483648
      %v2380 = vor.u32 1.1754944e-38, %v2379
      %v2381 = vsel %vm2378, %v2380, %v2376
      %v2382 = vmul.f32 1.0, %v2381
      %v2383 = vrcp.pop %v2366
      %v2384 = vmul.f32 %v2366, %v2383
      %v2385 = vsub.f32 1.0, %v2384
      %v2386 = vmul.f32 %v2383, %v2385
      %v2387 = vadd.f32 %v2383, %v2386
      %vm2388 = vweird.f32 %v2366
      %vm2389 = vweird.f32 %v2383
      %vm2390 = vmor %vm2388, %vm2389
      %v2391 = vsel %vm2390, %v2383, %v2387
      %v2392 = vand.u32 2147483647, %v2366
      %vm2393 = vcmp.eq.f32.partialorder %v2392, 8.507059e+37
      %v2394 = vand.u32 %v2366, 2147483648
      %v2395 = vor.u32 1.1754944e-38, %v2394
      %v2396 = vsel %vm2393, %v2395, %v2391
      %v2397 = vmul.f32 1.0, %v2396
      %v2398 = vrcp.pop %v2367
      %v2399 = vmul.f32 %v2367, %v2398
      %v2400 = vsub.f32 1.0, %v2399
      %v2401 = vmul.f32 %v2398, %v2400
      %v2402 = vadd.f32 %v2398, %v2401
      %vm2403 = vweird.f32 %v2367
      %vm2404 = vweird.f32 %v2398
      %vm2405 = vmor %vm2403, %vm2404
      %v2406 = vsel %vm2405, %v2398, %v2402
      %v2407 = vand.u32 2147483647, %v2367
      %vm2408 = vcmp.eq.f32.partialorder %v2407, 8.507059e+37
      %v2409 = vand.u32 %v2367, 2147483648
      %v2410 = vor.u32 1.1754944e-38, %v2409
      %v2411 = vsel %vm2408, %v2410, %v2406
      %v2412 = vmul.f32 1.0, %v2411
      %v2413 = vtanh.pop %v2353
      %v2414 = vmul.f32 %v2397, %v2245
      %v2415 = vmul.f32 %v2382, %v2413
      %v2416 = vadd.f32 %v2414, %v2415
      %v2417 = vtanh.pop %v2416
      %v2418 = vmul.f32 %v2412, %v2417
      %s2419 = scalar_lea.vmem [#allocation4], 24
      %2420 = vst [vmem:[%s2419] sm:$0xff] %v2418
      %2421 = vst [vmem:[#allocation2] sm:$0xff] %v2079
      %2422 = vst [vmem:[#allocation3] sm:$0xff] %v2077
      %2423 = vst [vmem:[%s749] sm:$0xff] %v2418
      %2424 = vst [vmem:[%s751] sm:$0xff] %v2416
      %v2425 = vld [vmem:[#allocation4] sm:$0xff]
      %v2426 = vld [vmem:[#allocation4 + $0x8] sm:$0xff]
      %v2427 = vld [vmem:[#allocation4 + $0x10] sm:$0xff]
      %v2428 = vld [vmem:[#allocation4 + $0x18] sm:$0xff]
      %v2429 = vpack.c.bf16 %v2426, %v2425
      %v2430 = vpack.c.bf16 %v2428, %v2427
      %v2431 = vld [vmem:[%s5] sm:$0xf]
      %v2432 = vld [vmem:[%s5 + $0x4] sm:$0xf]
      %v2433 = vld [vmem:[%s5 + $0x8] sm:$0xf]
      %v2434 = vld [vmem:[%s5 + $0xc] sm:$0xf]
      %v2435 = vld [vmem:[%s5 + $0x10] sm:$0xf]
      %v2436 = vld [vmem:[%s5 + $0x14] sm:$0xf]
      %v2437 = vld [vmem:[%s5 + $0x18] sm:$0xf]
      %v2438 = vld [vmem:[%s5 + $0x1c] sm:$0xf]
      %v2439 = vld [vmem:[%s5 + $0x20] sm:$0xf]
      %v2440 = vld [vmem:[%s5 + $0x24] sm:$0xf]
      %v2441 = vld [vmem:[%s5 + $0x28] sm:$0xf]
      %v2442 = vld [vmem:[%s5 + $0x2c] sm:$0xf]
      %v2443 = vld [vmem:[%s5 + $0x30] sm:$0xf]
      %v2444 = vld [vmem:[%s5 + $0x34] sm:$0xf]
      %v2445 = vld [vmem:[%s5 + $0x38] sm:$0xf]
      %v2446 = vld [vmem:[%s5 + $0x3c] sm:$0xf]
      %v2447 = vld [vmem:[%s6] sm:$0x1]
      %v2449 = vperm.slane %v2447, 0
      %v2467 = vunpack.c.l.b16 %v2431
      %v2468 = vunpack.c.l.b16 %v2432
      %v2469 = vunpack.c.l.b16 %v2433
      %v2470 = vunpack.c.l.b16 %v2434
      %v2471 = vunpack.c.l.b16 %v2435
      %v2472 = vunpack.c.l.b16 %v2436
      %v2473 = vunpack.c.l.b16 %v2437
      %v2474 = vunpack.c.l.b16 %v2438
      %v2475 = vunpack.c.l.b16 %v2439
      %v2476 = vunpack.c.l.b16 %v2440
      %v2477 = vunpack.c.l.b16 %v2441
      %v2478 = vunpack.c.l.b16 %v2442
      %v2479 = vunpack.c.l.b16 %v2443
      %v2480 = vunpack.c.l.b16 %v2444
      %v2481 = vunpack.c.l.b16 %v2445
      %v2482 = vunpack.c.l.b16 %v2446
      %v2483 = vpack.c.b16 %v2468, %v2467
      %v2484 = vpack.c.b16 %v2470, %v2469
      %v2485 = vpack.c.b16 %v2472, %v2471
      %v2486 = vpack.c.b16 %v2474, %v2473
      %v2487 = vpack.c.b16 %v2476, %v2475
      %v2488 = vpack.c.b16 %v2478, %v2477
      %v2489 = vpack.c.b16 %v2480, %v2479
      %v2490 = vpack.c.b16 %v2482, %v2481
      %2499 = vmatpush.bf16.msra.mxu0 %v2490
      %2500 = vmatpush.bf16.msra.mxu0 %v2489
      %2501 = vmatpush.bf16.msra.mxu0 %v2488
      %2502 = vmatpush.bf16.msra.mxu0 %v2487
      %2503 = vmatpush.bf16.msra.mxu0 %v2486
      %2504 = vmatpush.bf16.msra.mxu0 %v2485
      %2505 = vmatpush.bf16.msra.mxu0 %v2484
      %2506 = vmatpush.bf16.msra.mxu0 %v2483
      %2507 = vmatmul.bf16.gmra.mxu0 %v2429
      %v2508 = vpop.f32.mrf.mxu0
      %v2509 = vadd.f32 %v2449, %v2508
      %v2510 = vpop.f32.mrf.mxu0
      %v2511 = vadd.f32 %v2449, %v2510
      %2512 = vmatmul.bf16.gmra.mxu0 %v2430
      %v2513 = vpop.f32.mrf.mxu0
      %v2514 = vadd.f32 %v2449, %v2513
      %v2515 = vpop.f32.mrf.mxu0
      %v2516 = vadd.f32 %v2449, %v2515
      %2517 = vdwg.mxu0
      %2518 = vst [vmem:[%s329] sm:$0xff] %v2509
      %2519 = vst [vmem:[%s329 + $0x8] sm:$0xff] %v2511
      %2520 = vst [vmem:[%s329 + $0x10] sm:$0xff] %v2514
      %2521 = vst [vmem:[%s329 + $0x18] sm:$0xff] %v2516
      %p2522 = scmp.eq.s32.totalorder %s21, 1
      // Predicated region
      $region53: #{char_rnn_forward.1} parent=47 // pred_check
        %p2523 = pneg %p2522
      $region54: #{char_rnn_forward.1} parent=47 // pred_check_branch
        %2525 = sbr.rel (%p2523) target = $region56
      $region55: #{char_rnn_forward.1} parent=47 // pred_region
        %2526 = vst [vmem:[%s8] sm:$0xff] %v2079
        %s2527 = scalar_lea.vmem %s8, 8
        %2528 = vst [vmem:[%s2527] sm:$0xff] %v2418
        %2529 = vst [vmem:[%s9] sm:$0xff] %v2077
        %s2530 = scalar_lea.vmem %s9, 8
        %2531 = vst [vmem:[%s2530] sm:$0xff] %v2416
      $region56: #{char_rnn_forward.1} parent=47 // pred_fallthru
        _
      %s2532 = smul.u32 4, %s21
      %p2533 = scmp.lt.s32.totalorder %s2532, 7
      %s2534 = scalar_select %p2533, %s2532, 7
      %s2535 = smul.addr %s2534, 8
      %s2536 = scalar_lea.vmem %s7, %s2535
      // Predicated region
      $region57: #{char_rnn_forward.1} parent=47 // pred_check
        %p2537 = pneg %p191
      $region58: #{char_rnn_forward.1} parent=47 // pred_check_branch
        %2539 = sbr.rel (%p2537) target = $region60
      $region59: #{char_rnn_forward.1} parent=47 // pred_region
        %s2540 = smul.u32 4, %s21
      $region60: #{char_rnn_forward.1} parent=47 // pred_fallthru
        _
      // Predicated region
      $region61: #{char_rnn_forward.1} parent=47 // pred_check
        %p2541 = pneg %p212
      $region62: #{char_rnn_forward.1} parent=47 // pred_check_branch
        %2543 = sbr.rel (%p2541) target = $region64
      $region63: #{char_rnn_forward.1} parent=47 // pred_region
        _
      $region64: #{char_rnn_forward.1} parent=47 // pred_fallthru
        _
      // Predicated region
      $region65: #{char_rnn_forward.1} parent=47 // pred_check
        %p2544 = pneg %p233
      $region66: #{char_rnn_forward.1} parent=47 // pred_check_branch
        %2546 = sbr.rel (%p2544) target = $region68
      $region67: #{char_rnn_forward.1} parent=47 // pred_region
        _
      $region68: #{char_rnn_forward.1} parent=47 // pred_fallthru
        _
      // Predicated region
      $region69: #{char_rnn_forward.1} parent=47 // pred_check
        %p2547 = pneg %p212
      $region70: #{char_rnn_forward.1} parent=47 // pred_check_branch
        %2549 = sbr.rel (%p2547) target = $region72
      $region71: #{char_rnn_forward.1} parent=47 // pred_region
        _
      $region72: #{char_rnn_forward.1} parent=47 // pred_fallthru
        _
      // Predicated region
      $region73: #{char_rnn_forward.1} parent=47 // pred_check
        %p2550 = pneg %p233
      $region74: #{char_rnn_forward.1} parent=47 // pred_check_branch
        %2552 = sbr.rel (%p2550) target = $region76
      $region75: #{char_rnn_forward.1} parent=47 // pred_region
        _
      $region76: #{char_rnn_forward.1} parent=47 // pred_fallthru
        _
    $region48: #{char_rnn_forward.1} parent=5 // pred_fallthru
      _
    %p2553 = scmp.le.s32.totalorder 2, %s16
    // Predicated region
    $region77: #{char_rnn_forward.1} parent=5 // pred_check
      %p2554 = pneg %p2553
    $region78: #{char_rnn_forward.1} parent=5 // pred_check_branch
      %2556 = sbr.rel (%p2554) target = $region80
    $region79: #{char_rnn_forward.1} parent=5 // pred_region
      %s2557 = ssub.s32 %s16, 2
      // Predicated region
      $region81: #{char_rnn_forward.1} parent=79 // pred_check
        %p2558 = pneg %p197
      $region82: #{char_rnn_forward.1} parent=79 // pred_check_branch
        %2560 = sbr.rel (%p2558) target = $region84
      $region83: #{char_rnn_forward.1} parent=79 // pred_region
        %s2561 = smul.u32 4, %s22
        %p2562 = scmp.lt.s32.totalorder %s2561, 7
        %s2563 = scalar_select %p2562, %s2561, 7
        %s2564 = smul.addr %s2563, 8
        %s2565 = scalar_lea.vmem %s7, %s2564
      $region84: #{char_rnn_forward.1} parent=79 // pred_fallthru
        _
    $region80: #{char_rnn_forward.1} parent=5 // pred_fallthru
      _
  $region6: #{char_rnn_forward.1} parent=0 // loop_footer
    %s20 = sadd.s32 1, %s16
  $region7: #{char_rnn_forward.1} parent=0 // loop_footer_branch
    %15 = sbr.rel target = $region3
  $region8: #{char_rnn_forward.1} parent=0 // loop_exit
    _

</llo_original>
